<compile_context>
chip_gen: v6e
topology: v6e:2x2x1
jax: 0.10.0
libtpu: 0.0.40
codegen_flags: <defaults>
</compile_context>

<pallas_src>
import functools

import numpy as np
import jax
import jax.numpy as jnp
from jax.experimental import pallas as pl
from jax.experimental.pallas import tpu as pltpu

CP = 128      # padded channel width (exactly one lane tile) used throughout
LEAK = 0.2
BN_EPS = 0.8  # second positional arg of nn.BatchNorm2d(out, 0.8) is eps


# ---------------------------------------------------------------------------
# Fused Pallas kernel
# ---------------------------------------------------------------------------
def _gather_weight(y_bf16, a_ref, wcat_ref):
    """Compute  sum_t A_t @ (Y @ W_t)  with tap-stacked weights.

    y_bf16   : (M_prev, CP) bf16      activation of the previous stage
    a_ref    : (T, M_out, M_prev) f32 0/1 gather matrices (tap adjacency, zero rows = padding)
    wcat_ref : (CP, T*W) bf16         per-tap weights concatenated along lanes
    returns  : (M_out, W) f32
    """
    n_taps, m_out, _ = a_ref.shape
    width = wcat_ref.shape[1] // n_taps
    # One lane-dense bf16 MXU matmul does the channel mixing for all taps at once.
    z = jnp.dot(y_bf16, wcat_ref[...], preferred_element_type=jnp.float32)
    acc = jnp.zeros((m_out, width), jnp.float32)
    for t in range(n_taps):
        # f32 gather matmul on an aligned 128-lane slice: no extra rounding is introduced.
        acc = acc + jnp.dot(a_ref[t], z[:, t * width:(t + 1) * width],
                            preferred_element_type=jnp.float32)
    return acc


def _epilogue(acc, e_ref):
    """bias -> LeakyReLU(0.2) -> eval-mode BatchNorm affine.  e_ref rows = [bias; scale; shift]."""
    y = acc + e_ref[0]
    y = jnp.maximum(y, LEAK * y)          # lean f32 LeakyReLU (single VPU max)
    return y * e_ref[1] + e_ref[2]        # padded channels stay exactly 0


def fused_discriminator_kernel(p0_ref, w1_ref, e1_ref,
                               a2_ref, wc2_ref, e2_ref,
                               a3_ref, wc3_ref, e3_ref,
                               a4_ref, wc4_ref, e4_ref,
                               hsel_ref, whc_ref, bh_ref,
                               out_ref):
    # Block 1: wrapper-provided im2col patches -> single MXU matmul + fused epilogue.
    acc = jnp.dot(p0_ref[...], w1_ref[...], preferred_element_type=jnp.float32)
    y = _epilogue(acc, e1_ref).astype(jnp.bfloat16)

    # Blocks 2..4: in-VMEM conv = tap-gather matmuls + channel-mix matmul + fused epilogue.
    for a_ref, wc_ref, e_ref in ((a2_ref, wc2_ref, e2_ref),
                                 (a3_ref, wc3_ref, e3_ref),
                                 (a4_ref, wc4_ref, e4_ref)):
        acc = _gather_weight(y, a_ref, wc_ref)
        y = _epilogue(acc, e_ref).astype(jnp.bfloat16)

    # Heads: both SNLinear layers fused into one lane-dense 128-wide matmul.
    out = _gather_weight(y, hsel_ref, whc_ref) + bh_ref[...]
    out_ref[...] = out


def _vmem_spec():
    return pl.BlockSpec(memory_space=pltpu.MemorySpace.VMEM)


# ---------------------------------------------------------------------------
# Shape-derived constants (0/1 gather matrices), built once at trace time.
# ---------------------------------------------------------------------------
@functools.lru_cache(maxsize=None)
def _conv_gather_constants(batch, img_size):
    """Tap-gather matrices mapping previous feature-map rows -> conv-output rows.

    Block-diagonal across batch (fine for small N; for large N one would switch to a
    batched einsum with per-sample (Ho*Wo, H*W) matrices to avoid O(N^2) growth).
    """
    sizes = [img_size // (2 ** k) for k in range(5)]   # e.g. 16, 8, 4, 2, 1
    mats = []
    for b in range(1, 4):                              # inputs of blocks 2..4
        h = sizes[b]
        ho = (h - 1) // 2 + 1
        m_out, m_prev = batch * ho * ho, batch * h * h
        a = np.zeros((9, m_out, m_prev), np.float32)
        for ki in range(3):
            for kj in range(3):
                t = ki * 3 + kj
                for nn in range(batch):
                    for oi in range(ho):
                        for oj in range(ho):
                            ii = 2 * oi + ki - 1       # stride 2, pad 1
                            jj = 2 * oj + kj - 1
                            if 0 <= ii < h and 0 <= jj < h:
                                a[t, nn * ho * ho + oi * ho + oj,
                                  nn * h * h + ii * h + jj] = 1.0
        mats.append(a)
    ds = sizes[4]
    s4 = ds * ds
    m4 = batch * s4
    hsel = np.zeros((s4, batch, m4), np.float32)       # head row selection (identity when ds=1)
    for s in range(s4):
        for nn in range(batch):
            hsel[s, nn, nn * s4 + s] = 1.0
    return tuple(mats) + (hsel,)


# ---------------------------------------------------------------------------
# JAX glue: im2col for block 1, spectral norm, parameter init
# ---------------------------------------------------------------------------
def extract_patches_3x3_s2(x_nhwc):
    """im2col for 3x3 conv, stride 2, pad 1 -- block 1 only (tiny input, pure XLA indexing)."""
    N, H, W, C = x_nhwc.shape
    Ho = (H + 2 - 3) // 2 + 1
    Wo = (W + 2 - 3) // 2 + 1
    xp = jnp.pad(x_nhwc, ((0, 0), (1, 1), (1, 1), (0, 0)))
    cols = []
    for ki in range(3):
        for kj in range(3):
            cols.append(xp[:, ki:ki + 2 * Ho - 1:2, kj:kj + 2 * Wo - 1:2, :])
    patches = jnp.stack(cols, axis=3)                  # (N, Ho, Wo, 9, C)
    return patches.reshape(N * Ho * Wo, 9 * C), Ho, Wo


def spectral_normalize(w_2d, key, n_iter=1, eps=1e-12):
    """W / sigma, sigma estimated by power iteration (PyTorch spectral_norm default: 1 iter)."""
    out_dim, _ = w_2d.shape
    u = jax.random.normal(key, (out_dim,), dtype=jnp.float32)
    u = u / (jnp.linalg.norm(u) + eps)
    v = None
    for _ in range(n_iter):
        v = w_2d.T @ u
        v = v / (jnp.linalg.norm(v) + eps)
        u = w_2d @ v
        u = u / (jnp.linalg.norm(u) + eps)
    sigma = u @ (w_2d @ v)
    return w_2d / sigma


def init_params(key, channels, img_size, n_classes):
    ds = img_size // (2 ** 4)
    s4 = ds * ds
    feat_dim = 128 * s4
    outp = max(128, -(-(1 + n_classes) // 128) * 128)   # lane-dense head output width
    k1 = 9 * channels
    k1p = -(-k1 // 32) * 32                              # pad block-1 im2col K (27 -> 32)

    cfg = [(channels, 16, False), (16, 32, True), (32, 64, True), (64, 128, True)]
    keys = jax.random.split(key, 16)
    kidx = 0
    blocks_kernel = []
    blocks_raw = []
    for bi, (cin, cout, bn) in enumerate(cfg):
        # weights_init_normal: Conv ~ N(0, 0.02); spectral norm on weight.view(cout, -1)
        w = 0.02 * jax.random.normal(keys[kidx], (cout, cin, 3, 3), dtype=jnp.float32); kidx += 1
        w2d = spectral_normalize(w.reshape(cout, -1), keys[kidx]); kidx += 1
        w_sn = w2d.reshape(cout, cin, 3, 3)
        bias = jnp.zeros((cout,), jnp.float32)           # conv bias (kept 0, synthetic init)
        if bn:
            # BN eval: running stats (0, 1), eps = 0.8, gamma ~ N(1, 0.02), beta = 0
            gamma = 1.0 + 0.02 * jax.random.normal(keys[kidx], (cout,), dtype=jnp.float32); kidx += 1
            scale = gamma / jnp.sqrt(1.0 + BN_EPS)
            shift = jnp.zeros((cout,), jnp.float32)
        else:
            kidx += 1
            scale = jnp.ones((cout,), jnp.float32)
            shift = jnp.zeros((cout,), jnp.float32)

        wt = jnp.transpose(w_sn, (2, 3, 1, 0))           # (kh, kw, cin, cout)
        if bi == 0:
            # block 1: flat im2col weight, K padded to k1p, Cout padded to 128
            wk = jnp.zeros((k1p, CP), jnp.float32)
            wk = wk.at[:k1, :cout].set(wt.reshape(9 * cin, cout)).astype(jnp.bfloat16)
        else:
            # blocks 2..4: per-tap weights concatenated along lanes: (CP, 9*CP)
            wk = jnp.zeros((CP, 9 * CP), jnp.float32)
            for kh in range(3):
                for kw in range(3):
                    t = kh * 3 + kw
                    wk = wk.at[:cin, t * CP:t * CP + cout].set(wt[kh, kw])
            wk = wk.astype(jnp.bfloat16)
        e = jnp.zeros((3, 1, CP), jnp.float32)           # [bias; scale; shift], padded lanes = 0
        e = e.at[0, 0, :cout].set(bias).at[1, 0, :cout].set(scale).at[2, 0, :cout].set(shift)
        blocks_kernel.append(dict(w=wk, e=e))
        blocks_raw.append(dict(w=w_sn, bias=bias, scale=scale, shift=shift))

    # SNLinear heads, fused into one lane-dense weight slab in (h, w, c)-major order.
    w_adv = 0.02 * jax.random.normal(keys[kidx], (1, feat_dim), dtype=jnp.float32); kidx += 1
    w_adv = spectral_normalize(w_adv, keys[kidx]); kidx += 1
    w_aux = 0.02 * jax.random.normal(keys[kidx], (n_classes, feat_dim), dtype=jnp.float32); kidx += 1
    w_aux = spectral_normalize(w_aux, keys[kidx]); kidx += 1
    wcomb = jnp.concatenate([w_adv, w_aux], axis=0)      # (1 + n_classes, feat_dim)
    whcat = jnp.zeros((CP, s4 * outp), jnp.float32)
    for s in range(s4):
        # whcat[c, s*outp + o] = wcomb[o, c*s4 + s]   (matches PyTorch NCHW .view(N, -1) order)
        whcat = whcat.at[:, s * outp:s * outp + 1 + n_classes].set(wcomb[:, s::s4].T)
    whcat = whcat.astype(jnp.bfloat16)
    bh = jnp.zeros((1, outp), jnp.float32)               # head biases (kept 0, synthetic init)

    return dict(
        blocks=blocks_kernel, whcat=whcat, bh=bh,
        k1=k1, k1p=k1p, outp=outp, n_classes=n_classes, img_size=img_size,
        raw=dict(blocks=blocks_raw, w_adv=w_adv, w_aux=w_aux),
    )


# ---------------------------------------------------------------------------
# Forward pass (single fused pallas_call)
# ---------------------------------------------------------------------------
def conditional_discriminator_forward(img_nchw, params):
    n = img_nchw.shape[0]
    outp = params["outp"]
    # NCHW (PyTorch) -> NHWC; block-1 im2col stays in XLA on purpose (raw image is tiny).
    x = jnp.transpose(img_nchw, (0, 2, 3, 1)).astype(jnp.float32)
    patches, _, _ = extract_patches_3x3_s2(x)                             # (N*Ho*Wo, 9*C)
    p0 = jnp.pad(patches, ((0, 0), (0, params["k1p"] - params["k1"]))).astype(jnp.bfloat16)

    a2, a3, a4, hsel = _conv_gather_constants(n, params["img_size"])
    blocks = params["blocks"]

    out = pl.pallas_call(
        fused_discriminator_kernel,
        out_shape=jax.ShapeDtypeStruct((n, outp), jnp.float32),
        in_specs=[_vmem_spec()] * 15,
        out_specs=_vmem_spec(),
    )(p0, blocks[0]["w"], blocks[0]["e"],
      a2, blocks[1]["w"], blocks[1]["e"],
      a3, blocks[2]["w"], blocks[2]["e"],
      a4, blocks[3]["w"], blocks[3]["e"],
      hsel, params["whcat"], params["bh"])

    validity = out[:, 0:1]
    label = out[:, 1:1 + params["n_classes"]]
    return validity, label


# ---------------------------------------------------------------------------
# Pure-XLA reference with the same bf16 weight/activation rounding as the kernel.
# ---------------------------------------------------------------------------
def reference_forward(img_nchw, params):
    f32 = jnp.float32
    bf = lambda a: a.astype(jnp.bfloat16).astype(f32)
    x = bf(img_nchw.astype(f32))
    for blk in params["raw"]["blocks"]:
        w = bf(blk["w"])
        x = jax.lax.conv_general_dilated(
            x, w, window_strides=(2, 2), padding=((1, 1), (1, 1)),
            dimension_numbers=("NCHW", "OIHW", "NCHW"))
        x = x + blk["bias"][None, :, None, None]
        x = jnp.maximum(x, LEAK * x)
        x = x * blk["scale"][None, :, None, None] + blk["shift"][None, :, None, None]
        x = bf(x)
    feat = x.reshape(x.shape[0], -1)
    validity = feat @ bf(params["raw"]["w_adv"]).T
    label = feat @ bf(params["raw"]["w_aux"]).T
    return validity, label


if __name__ == "__main__":
    channels, img_size, n_classes, batch = 3, 16, 10, 2

    key = jax.random.PRNGKey(0)
    k_params, k_img = jax.random.split(key)
    params = init_params(k_params, channels, img_size, n_classes)
    img = jax.random.normal(k_img, (batch, channels, img_size, img_size), dtype=jnp.float32)

    fwd = jax.jit(functools.partial(conditional_discriminator_forward, params=params))
    validity, label = fwd(img)
    jax.block_until_ready((validity, label))

    assert validity.shape == (batch, 1), validity.shape
    assert label.shape == (batch, n_classes), label.shape
    assert validity.dtype == jnp.float32 and label.dtype == jnp.float32
    assert bool(jnp.all(jnp.isfinite(validity))) and bool(jnp.all(jnp.isfinite(label)))

    v_ref, l_ref = reference_forward(img, params)
    np.testing.assert_allclose(np.asarray(validity), np.asarray(v_ref), rtol=5e-2, atol=1e-3)
    np.testing.assert_allclose(np.asarray(label), np.asarray(l_ref), rtol=5e-2, atol=1e-3)

    print("KERNEL_OK")
</pallas_src>

<mosaic_0001>
module attributes {stable_mosaic.version = 11 : i64} {
  func.func @fused_discriminator_kernel(%arg0: memref<128x32xbf16, #tpu.memory_space<vmem>>, %arg1: memref<32x128xbf16, #tpu.memory_space<vmem>>, %arg2: memref<3x1x128xf32, #tpu.memory_space<vmem>>, %arg3: memref<9x32x128xf32, #tpu.memory_space<vmem>>, %arg4: memref<128x1152xbf16, #tpu.memory_space<vmem>>, %arg5: memref<3x1x128xf32, #tpu.memory_space<vmem>>, %arg6: memref<9x8x32xf32, #tpu.memory_space<vmem>>, %arg7: memref<128x1152xbf16, #tpu.memory_space<vmem>>, %arg8: memref<3x1x128xf32, #tpu.memory_space<vmem>>, %arg9: memref<9x2x8xf32, #tpu.memory_space<vmem>>, %arg10: memref<128x1152xbf16, #tpu.memory_space<vmem>>, %arg11: memref<3x1x128xf32, #tpu.memory_space<vmem>>, %arg12: memref<1x2x2xf32, #tpu.memory_space<vmem>>, %arg13: memref<128x128xbf16, #tpu.memory_space<vmem>>, %arg14: memref<1x128xf32, #tpu.memory_space<vmem>>, %arg15: memref<2x128xf32, #tpu.memory_space<vmem>>) attributes {dimension_semantics = [], scalar_prefetch = 0 : i64, scratch_operands = 0 : i64, tpu.core_type = #tpu.core_type<tc>} {
    %c0 = arith.constant 0 : index
    %c0_0 = arith.constant 0 : index
    %0 = vector.load %arg0[%c0, %c0_0] : memref<128x32xbf16, #tpu.memory_space<vmem>>, vector<128x32xbf16>
    %c0_1 = arith.constant 0 : index
    %c0_2 = arith.constant 0 : index
    %1 = vector.load %arg1[%c0_1, %c0_2] : memref<32x128xbf16, #tpu.memory_space<vmem>>, vector<32x128xbf16>
    %cst = arith.constant dense<0.000000e+00> : vector<128x128xf32>
    %2 = tpu.matmul %0, %1, %cst {dimension_numbers = #tpu.dot_dimension_numbers<[1], [0], [0], [1], [0, 0, 1, 1], [], []>} : vector<128x32xbf16>, vector<32x128xbf16>, vector<128x128xf32> -> vector<128x128xf32>
    %c0_3 = arith.constant 0 : index
    %c0_4 = arith.constant 0 : index
    %c0_5 = arith.constant 0 : index
    %3 = vector.load %arg2[%c0_3, %c0_4, %c0_5] : memref<3x1x128xf32, #tpu.memory_space<vmem>>, vector<1x1x128xf32>
    %4 = vector.shape_cast %3 : vector<1x1x128xf32> to vector<1x128xf32>
    %5 = vector.broadcast %4 : vector<1x128xf32> to vector<128x128xf32>
    %6 = arith.addf %2, %5 : vector<128x128xf32>
    %cst_6 = arith.constant 2.000000e-01 : f32
    %7 = vector.broadcast %cst_6 : f32 to vector<128x128xf32>
    %8 = arith.mulf %7, %6 : vector<128x128xf32>
    %9 = arith.maximumf %6, %8 : vector<128x128xf32>
    %c1 = arith.constant 1 : index
    %c0_7 = arith.constant 0 : index
    %c0_8 = arith.constant 0 : index
    %10 = vector.load %arg2[%c1, %c0_7, %c0_8] : memref<3x1x128xf32, #tpu.memory_space<vmem>>, vector<1x1x128xf32>
    %11 = vector.shape_cast %10 : vector<1x1x128xf32> to vector<1x128xf32>
    %12 = vector.broadcast %11 : vector<1x128xf32> to vector<128x128xf32>
    %13 = arith.mulf %9, %12 : vector<128x128xf32>
    %c2 = arith.constant 2 : index
    %c0_9 = arith.constant 0 : index
    %c0_10 = arith.constant 0 : index
    %14 = vector.load %arg2[%c2, %c0_9, %c0_10] : memref<3x1x128xf32, #tpu.memory_space<vmem>>, vector<1x1x128xf32>
    %15 = vector.shape_cast %14 : vector<1x1x128xf32> to vector<1x128xf32>
    %16 = vector.broadcast %15 : vector<1x128xf32> to vector<128x128xf32>
    %17 = arith.addf %13, %16 : vector<128x128xf32>
    %18 = arith.truncf %17 : vector<128x128xf32> to vector<128x128xbf16>
    %c0_11 = arith.constant 0 : index
    %c0_12 = arith.constant 0 : index
    %19 = vector.load %arg4[%c0_11, %c0_12] : memref<128x1152xbf16, #tpu.memory_space<vmem>>, vector<128x1152xbf16>
    %cst_13 = arith.constant dense<0.000000e+00> : vector<128x1152xf32>
    %20 = tpu.matmul %18, %19, %cst_13 {dimension_numbers = #tpu.dot_dimension_numbers<[1], [0], [0], [1], [0, 0, 1, 1], [], []>} : vector<128x128xbf16>, vector<128x1152xbf16>, vector<128x1152xf32> -> vector<128x1152xf32>
    %cst_14 = arith.constant 0.000000e+00 : f32
    %21 = vector.broadcast %cst_14 : f32 to vector<32x128xf32>
    %c0_15 = arith.constant 0 : index
    %c0_16 = arith.constant 0 : index
    %c0_17 = arith.constant 0 : index
    %22 = vector.load %arg3[%c0_15, %c0_16, %c0_17] : memref<9x32x128xf32, #tpu.memory_space<vmem>>, vector<1x32x128xf32>
    %23 = vector.shape_cast %22 : vector<1x32x128xf32> to vector<32x128xf32>
    %24 = vector.extract_strided_slice %20 {offsets = [0, 0], sizes = [128, 128], strides = [1, 1]} : vector<128x1152xf32> to vector<128x128xf32>
    %cst_18 = arith.constant dense<0.000000e+00> : vector<32x128xf32>
    %25 = tpu.matmul %23, %24, %cst_18 {dimension_numbers = #tpu.dot_dimension_numbers<[1], [0], [0], [1], [0, 0, 1, 1], [], []>} : vector<32x128xf32>, vector<128x128xf32>, vector<32x128xf32> -> vector<32x128xf32>
    %26 = arith.addf %21, %25 : vector<32x128xf32>
    %c1_19 = arith.constant 1 : index
    %c0_20 = arith.constant 0 : index
    %c0_21 = arith.constant 0 : index
    %27 = vector.load %arg3[%c1_19, %c0_20, %c0_21] : memref<9x32x128xf32, #tpu.memory_space<vmem>>, vector<1x32x128xf32>
    %28 = vector.shape_cast %27 : vector<1x32x128xf32> to vector<32x128xf32>
    %29 = vector.extract_strided_slice %20 {offsets = [0, 128], sizes = [128, 128], strides = [1, 1]} : vector<128x1152xf32> to vector<128x128xf32>
    %cst_22 = arith.constant dense<0.000000e+00> : vector<32x128xf32>
    %30 = tpu.matmul %28, %29, %cst_22 {dimension_numbers = #tpu.dot_dimension_numbers<[1], [0], [0], [1], [0, 0, 1, 1], [], []>} : vector<32x128xf32>, vector<128x128xf32>, vector<32x128xf32> -> vector<32x128xf32>
    %31 = arith.addf %26, %30 : vector<32x128xf32>
    %c2_23 = arith.constant 2 : index
    %c0_24 = arith.constant 0 : index
    %c0_25 = arith.constant 0 : index
    %32 = vector.load %arg3[%c2_23, %c0_24, %c0_25] : memref<9x32x128xf32, #tpu.memory_space<vmem>>, vector<1x32x128xf32>
    %33 = vector.shape_cast %32 : vector<1x32x128xf32> to vector<32x128xf32>
    %34 = vector.extract_strided_slice %20 {offsets = [0, 256], sizes = [128, 128], strides = [1, 1]} : vector<128x1152xf32> to vector<128x128xf32>
    %cst_26 = arith.constant dense<0.000000e+00> : vector<32x128xf32>
    %35 = tpu.matmul %33, %34, %cst_26 {dimension_numbers = #tpu.dot_dimension_numbers<[1], [0], [0], [1], [0, 0, 1, 1], [], []>} : vector<32x128xf32>, vector<128x128xf32>, vector<32x128xf32> -> vector<32x128xf32>
    %36 = arith.addf %31, %35 : vector<32x128xf32>
    %c3 = arith.constant 3 : index
    %c0_27 = arith.constant 0 : index
    %c0_28 = arith.constant 0 : index
    %37 = vector.load %arg3[%c3, %c0_27, %c0_28] : memref<9x32x128xf32, #tpu.memory_space<vmem>>, vector<1x32x128xf32>
    %38 = vector.shape_cast %37 : vector<1x32x128xf32> to vector<32x128xf32>
    %39 = vector.extract_strided_slice %20 {offsets = [0, 384], sizes = [128, 128], strides = [1, 1]} : vector<128x1152xf32> to vector<128x128xf32>
    %cst_29 = arith.constant dense<0.000000e+00> : vector<32x128xf32>
    %40 = tpu.matmul %38, %39, %cst_29 {dimension_numbers = #tpu.dot_dimension_numbers<[1], [0], [0], [1], [0, 0, 1, 1], [], []>} : vector<32x128xf32>, vector<128x128xf32>, vector<32x128xf32> -> vector<32x128xf32>
    %41 = arith.addf %36, %40 : vector<32x128xf32>
    %c4 = arith.constant 4 : index
    %c0_30 = arith.constant 0 : index
    %c0_31 = arith.constant 0 : index
    %42 = vector.load %arg3[%c4, %c0_30, %c0_31] : memref<9x32x128xf32, #tpu.memory_space<vmem>>, vector<1x32x128xf32>
    %43 = vector.shape_cast %42 : vector<1x32x128xf32> to vector<32x128xf32>
    %44 = vector.extract_strided_slice %20 {offsets = [0, 512], sizes = [128, 128], strides = [1, 1]} : vector<128x1152xf32> to vector<128x128xf32>
    %cst_32 = arith.constant dense<0.000000e+00> : vector<32x128xf32>
    %45 = tpu.matmul %43, %44, %cst_32 {dimension_numbers = #tpu.dot_dimension_numbers<[1], [0], [0], [1], [0, 0, 1, 1], [], []>} : vector<32x128xf32>, vector<128x128xf32>, vector<32x128xf32> -> vector<32x128xf32>
    %46 = arith.addf %41, %45 : vector<32x128xf32>
    %c5 = arith.constant 5 : index
    %c0_33 = arith.constant 0 : index
    %c0_34 = arith.constant 0 : index
    %47 = vector.load %arg3[%c5, %c0_33, %c0_34] : memref<9x32x128xf32, #tpu.memory_space<vmem>>, vector<1x32x128xf32>
    %48 = vector.shape_cast %47 : vector<1x32x128xf32> to vector<32x128xf32>
    %49 = vector.extract_strided_slice %20 {offsets = [0, 640], sizes = [128, 128], strides = [1, 1]} : vector<128x1152xf32> to vector<128x128xf32>
    %cst_35 = arith.constant dense<0.000000e+00> : vector<32x128xf32>
    %50 = tpu.matmul %48, %49, %cst_35 {dimension_numbers = #tpu.dot_dimension_numbers<[1], [0], [0], [1], [0, 0, 1, 1], [], []>} : vector<32x128xf32>, vector<128x128xf32>, vector<32x128xf32> -> vector<32x128xf32>
    %51 = arith.addf %46, %50 : vector<32x128xf32>
    %c6 = arith.constant 6 : index
    %c0_36 = arith.constant 0 : index
    %c0_37 = arith.constant 0 : index
    %52 = vector.load %arg3[%c6, %c0_36, %c0_37] : memref<9x32x128xf32, #tpu.memory_space<vmem>>, vector<1x32x128xf32>
    %53 = vector.shape_cast %52 : vector<1x32x128xf32> to vector<32x128xf32>
    %54 = vector.extract_strided_slice %20 {offsets = [0, 768], sizes = [128, 128], strides = [1, 1]} : vector<128x1152xf32> to vector<128x128xf32>
    %cst_38 = arith.constant dense<0.000000e+00> : vector<32x128xf32>
    %55 = tpu.matmul %53, %54, %cst_38 {dimension_numbers = #tpu.dot_dimension_numbers<[1], [0], [0], [1], [0, 0, 1, 1], [], []>} : vector<32x128xf32>, vector<128x128xf32>, vector<32x128xf32> -> vector<32x128xf32>
    %56 = arith.addf %51, %55 : vector<32x128xf32>
    %c7 = arith.constant 7 : index
    %c0_39 = arith.constant 0 : index
    %c0_40 = arith.constant 0 : index
    %57 = vector.load %arg3[%c7, %c0_39, %c0_40] : memref<9x32x128xf32, #tpu.memory_space<vmem>>, vector<1x32x128xf32>
    %58 = vector.shape_cast %57 : vector<1x32x128xf32> to vector<32x128xf32>
    %59 = vector.extract_strided_slice %20 {offsets = [0, 896], sizes = [128, 128], strides = [1, 1]} : vector<128x1152xf32> to vector<128x128xf32>
    %cst_41 = arith.constant dense<0.000000e+00> : vector<32x128xf32>
    %60 = tpu.matmul %58, %59, %cst_41 {dimension_numbers = #tpu.dot_dimension_numbers<[1], [0], [0], [1], [0, 0, 1, 1], [], []>} : vector<32x128xf32>, vector<128x128xf32>, vector<32x128xf32> -> vector<32x128xf32>
    %61 = arith.addf %56, %60 : vector<32x128xf32>
    %c8 = arith.constant 8 : index
    %c0_42 = arith.constant 0 : index
    %c0_43 = arith.constant 0 : index
    %62 = vector.load %arg3[%c8, %c0_42, %c0_43] : memref<9x32x128xf32, #tpu.memory_space<vmem>>, vector<1x32x128xf32>
    %63 = vector.shape_cast %62 : vector<1x32x128xf32> to vector<32x128xf32>
    %64 = vector.extract_strided_slice %20 {offsets = [0, 1024], sizes = [128, 128], strides = [1, 1]} : vector<128x1152xf32> to vector<128x128xf32>
    %cst_44 = arith.constant dense<0.000000e+00> : vector<32x128xf32>
    %65 = tpu.matmul %63, %64, %cst_44 {dimension_numbers = #tpu.dot_dimension_numbers<[1], [0], [0], [1], [0, 0, 1, 1], [], []>} : vector<32x128xf32>, vector<128x128xf32>, vector<32x128xf32> -> vector<32x128xf32>
    %66 = arith.addf %61, %65 : vector<32x128xf32>
    %c0_45 = arith.constant 0 : index
    %c0_46 = arith.constant 0 : index
    %c0_47 = arith.constant 0 : index
    %67 = vector.load %arg5[%c0_45, %c0_46, %c0_47] : memref<3x1x128xf32, #tpu.memory_space<vmem>>, vector<1x1x128xf32>
    %68 = vector.shape_cast %67 : vector<1x1x128xf32> to vector<1x128xf32>
    %69 = vector.broadcast %68 : vector<1x128xf32> to vector<32x128xf32>
    %70 = arith.addf %66, %69 : vector<32x128xf32>
    %cst_48 = arith.constant 2.000000e-01 : f32
    %71 = vector.broadcast %cst_48 : f32 to vector<32x128xf32>
    %72 = arith.mulf %71, %70 : vector<32x128xf32>
    %73 = arith.maximumf %70, %72 : vector<32x128xf32>
    %c1_49 = arith.constant 1 : index
    %c0_50 = arith.constant 0 : index
    %c0_51 = arith.constant 0 : index
    %74 = vector.load %arg5[%c1_49, %c0_50, %c0_51] : memref<3x1x128xf32, #tpu.memory_space<vmem>>, vector<1x1x128xf32>
    %75 = vector.shape_cast %74 : vector<1x1x128xf32> to vector<1x128xf32>
    %76 = vector.broadcast %75 : vector<1x128xf32> to vector<32x128xf32>
    %77 = arith.mulf %73, %76 : vector<32x128xf32>
    %c2_52 = arith.constant 2 : index
    %c0_53 = arith.constant 0 : index
    %c0_54 = arith.constant 0 : index
    %78 = vector.load %arg5[%c2_52, %c0_53, %c0_54] : memref<3x1x128xf32, #tpu.memory_space<vmem>>, vector<1x1x128xf32>
    %79 = vector.shape_cast %78 : vector<1x1x128xf32> to vector<1x128xf32>
    %80 = vector.broadcast %79 : vector<1x128xf32> to vector<32x128xf32>
    %81 = arith.addf %77, %80 : vector<32x128xf32>
    %82 = arith.truncf %81 : vector<32x128xf32> to vector<32x128xbf16>
    %c0_55 = arith.constant 0 : index
    %c0_56 = arith.constant 0 : index
    %83 = vector.load %arg7[%c0_55, %c0_56] : memref<128x1152xbf16, #tpu.memory_space<vmem>>, vector<128x1152xbf16>
    %cst_57 = arith.constant dense<0.000000e+00> : vector<32x1152xf32>
    %84 = tpu.matmul %82, %83, %cst_57 {dimension_numbers = #tpu.dot_dimension_numbers<[1], [0], [0], [1], [0, 0, 1, 1], [], []>} : vector<32x128xbf16>, vector<128x1152xbf16>, vector<32x1152xf32> -> vector<32x1152xf32>
    %cst_58 = arith.constant 0.000000e+00 : f32
    %85 = vector.broadcast %cst_58 : f32 to vector<8x128xf32>
    %c0_59 = arith.constant 0 : index
    %c0_60 = arith.constant 0 : index
    %c0_61 = arith.constant 0 : index
    %86 = vector.load %arg6[%c0_59, %c0_60, %c0_61] : memref<9x8x32xf32, #tpu.memory_space<vmem>>, vector<1x8x32xf32>
    %87 = vector.shape_cast %86 : vector<1x8x32xf32> to vector<8x32xf32>
    %88 = vector.extract_strided_slice %84 {offsets = [0, 0], sizes = [32, 128], strides = [1, 1]} : vector<32x1152xf32> to vector<32x128xf32>
    %cst_62 = arith.constant dense<0.000000e+00> : vector<8x128xf32>
    %89 = tpu.matmul %87, %88, %cst_62 {dimension_numbers = #tpu.dot_dimension_numbers<[1], [0], [0], [1], [0, 0, 1, 1], [], []>} : vector<8x32xf32>, vector<32x128xf32>, vector<8x128xf32> -> vector<8x128xf32>
    %90 = arith.addf %85, %89 : vector<8x128xf32>
    %c1_63 = arith.constant 1 : index
    %c0_64 = arith.constant 0 : index
    %c0_65 = arith.constant 0 : index
    %91 = vector.load %arg6[%c1_63, %c0_64, %c0_65] : memref<9x8x32xf32, #tpu.memory_space<vmem>>, vector<1x8x32xf32>
    %92 = vector.shape_cast %91 : vector<1x8x32xf32> to vector<8x32xf32>
    %93 = vector.extract_strided_slice %84 {offsets = [0, 128], sizes = [32, 128], strides = [1, 1]} : vector<32x1152xf32> to vector<32x128xf32>
    %cst_66 = arith.constant dense<0.000000e+00> : vector<8x128xf32>
    %94 = tpu.matmul %92, %93, %cst_66 {dimension_numbers = #tpu.dot_dimension_numbers<[1], [0], [0], [1], [0, 0, 1, 1], [], []>} : vector<8x32xf32>, vector<32x128xf32>, vector<8x128xf32> -> vector<8x128xf32>
    %95 = arith.addf %90, %94 : vector<8x128xf32>
    %c2_67 = arith.constant 2 : index
    %c0_68 = arith.constant 0 : index
    %c0_69 = arith.constant 0 : index
    %96 = vector.load %arg6[%c2_67, %c0_68, %c0_69] : memref<9x8x32xf32, #tpu.memory_space<vmem>>, vector<1x8x32xf32>
    %97 = vector.shape_cast %96 : vector<1x8x32xf32> to vector<8x32xf32>
    %98 = vector.extract_strided_slice %84 {offsets = [0, 256], sizes = [32, 128], strides = [1, 1]} : vector<32x1152xf32> to vector<32x128xf32>
    %cst_70 = arith.constant dense<0.000000e+00> : vector<8x128xf32>
    %99 = tpu.matmul %97, %98, %cst_70 {dimension_numbers = #tpu.dot_dimension_numbers<[1], [0], [0], [1], [0, 0, 1, 1], [], []>} : vector<8x32xf32>, vector<32x128xf32>, vector<8x128xf32> -> vector<8x128xf32>
    %100 = arith.addf %95, %99 : vector<8x128xf32>
    %c3_71 = arith.constant 3 : index
    %c0_72 = arith.constant 0 : index
    %c0_73 = arith.constant 0 : index
    %101 = vector.load %arg6[%c3_71, %c0_72, %c0_73] : memref<9x8x32xf32, #tpu.memory_space<vmem>>, vector<1x8x32xf32>
    %102 = vector.shape_cast %101 : vector<1x8x32xf32> to vector<8x32xf32>
    %103 = vector.extract_strided_slice %84 {offsets = [0, 384], sizes = [32, 128], strides = [1, 1]} : vector<32x1152xf32> to vector<32x128xf32>
    %cst_74 = arith.constant dense<0.000000e+00> : vector<8x128xf32>
    %104 = tpu.matmul %102, %103, %cst_74 {dimension_numbers = #tpu.dot_dimension_numbers<[1], [0], [0], [1], [0, 0, 1, 1], [], []>} : vector<8x32xf32>, vector<32x128xf32>, vector<8x128xf32> -> vector<8x128xf32>
    %105 = arith.addf %100, %104 : vector<8x128xf32>
    %c4_75 = arith.constant 4 : index
    %c0_76 = arith.constant 0 : index
    %c0_77 = arith.constant 0 : index
    %106 = vector.load %arg6[%c4_75, %c0_76, %c0_77] : memref<9x8x32xf32, #tpu.memory_space<vmem>>, vector<1x8x32xf32>
    %107 = vector.shape_cast %106 : vector<1x8x32xf32> to vector<8x32xf32>
    %108 = vector.extract_strided_slice %84 {offsets = [0, 512], sizes = [32, 128], strides = [1, 1]} : vector<32x1152xf32> to vector<32x128xf32>
    %cst_78 = arith.constant dense<0.000000e+00> : vector<8x128xf32>
    %109 = tpu.matmul %107, %108, %cst_78 {dimension_numbers = #tpu.dot_dimension_numbers<[1], [0], [0], [1], [0, 0, 1, 1], [], []>} : vector<8x32xf32>, vector<32x128xf32>, vector<8x128xf32> -> vector<8x128xf32>
    %110 = arith.addf %105, %109 : vector<8x128xf32>
    %c5_79 = arith.constant 5 : index
    %c0_80 = arith.constant 0 : index
    %c0_81 = arith.constant 0 : index
    %111 = vector.load %arg6[%c5_79, %c0_80, %c0_81] : memref<9x8x32xf32, #tpu.memory_space<vmem>>, vector<1x8x32xf32>
    %112 = vector.shape_cast %111 : vector<1x8x32xf32> to vector<8x32xf32>
    %113 = vector.extract_strided_slice %84 {offsets = [0, 640], sizes = [32, 128], strides = [1, 1]} : vector<32x1152xf32> to vector<32x128xf32>
    %cst_82 = arith.constant dense<0.000000e+00> : vector<8x128xf32>
    %114 = tpu.matmul %112, %113, %cst_82 {dimension_numbers = #tpu.dot_dimension_numbers<[1], [0], [0], [1], [0, 0, 1, 1], [], []>} : vector<8x32xf32>, vector<32x128xf32>, vector<8x128xf32> -> vector<8x128xf32>
    %115 = arith.addf %110, %114 : vector<8x128xf32>
    %c6_83 = arith.constant 6 : index
    %c0_84 = arith.constant 0 : index
    %c0_85 = arith.constant 0 : index
    %116 = vector.load %arg6[%c6_83, %c0_84, %c0_85] : memref<9x8x32xf32, #tpu.memory_space<vmem>>, vector<1x8x32xf32>
    %117 = vector.shape_cast %116 : vector<1x8x32xf32> to vector<8x32xf32>
    %118 = vector.extract_strided_slice %84 {offsets = [0, 768], sizes = [32, 128], strides = [1, 1]} : vector<32x1152xf32> to vector<32x128xf32>
    %cst_86 = arith.constant dense<0.000000e+00> : vector<8x128xf32>
    %119 = tpu.matmul %117, %118, %cst_86 {dimension_numbers = #tpu.dot_dimension_numbers<[1], [0], [0], [1], [0, 0, 1, 1], [], []>} : vector<8x32xf32>, vector<32x128xf32>, vector<8x128xf32> -> vector<8x128xf32>
    %120 = arith.addf %115, %119 : vector<8x128xf32>
    %c7_87 = arith.constant 7 : index
    %c0_88 = arith.constant 0 : index
    %c0_89 = arith.constant 0 : index
    %121 = vector.load %arg6[%c7_87, %c0_88, %c0_89] : memref<9x8x32xf32, #tpu.memory_space<vmem>>, vector<1x8x32xf32>
    %122 = vector.shape_cast %121 : vector<1x8x32xf32> to vector<8x32xf32>
    %123 = vector.extract_strided_slice %84 {offsets = [0, 896], sizes = [32, 128], strides = [1, 1]} : vector<32x1152xf32> to vector<32x128xf32>
    %cst_90 = arith.constant dense<0.000000e+00> : vector<8x128xf32>
    %124 = tpu.matmul %122, %123, %cst_90 {dimension_numbers = #tpu.dot_dimension_numbers<[1], [0], [0], [1], [0, 0, 1, 1], [], []>} : vector<8x32xf32>, vector<32x128xf32>, vector<8x128xf32> -> vector<8x128xf32>
    %125 = arith.addf %120, %124 : vector<8x128xf32>
    %c8_91 = arith.constant 8 : index
    %c0_92 = arith.constant 0 : index
    %c0_93 = arith.constant 0 : index
    %126 = vector.load %arg6[%c8_91, %c0_92, %c0_93] : memref<9x8x32xf32, #tpu.memory_space<vmem>>, vector<1x8x32xf32>
    %127 = vector.shape_cast %126 : vector<1x8x32xf32> to vector<8x32xf32>
    %128 = vector.extract_strided_slice %84 {offsets = [0, 1024], sizes = [32, 128], strides = [1, 1]} : vector<32x1152xf32> to vector<32x128xf32>
    %cst_94 = arith.constant dense<0.000000e+00> : vector<8x128xf32>
    %129 = tpu.matmul %127, %128, %cst_94 {dimension_numbers = #tpu.dot_dimension_numbers<[1], [0], [0], [1], [0, 0, 1, 1], [], []>} : vector<8x32xf32>, vector<32x128xf32>, vector<8x128xf32> -> vector<8x128xf32>
    %130 = arith.addf %125, %129 : vector<8x128xf32>
    %c0_95 = arith.constant 0 : index
    %c0_96 = arith.constant 0 : index
    %c0_97 = arith.constant 0 : index
    %131 = vector.load %arg8[%c0_95, %c0_96, %c0_97] : memref<3x1x128xf32, #tpu.memory_space<vmem>>, vector<1x1x128xf32>
    %132 = vector.shape_cast %131 : vector<1x1x128xf32> to vector<1x128xf32>
    %133 = vector.broadcast %132 : vector<1x128xf32> to vector<8x128xf32>
    %134 = arith.addf %130, %133 : vector<8x128xf32>
    %cst_98 = arith.constant 2.000000e-01 : f32
    %135 = vector.broadcast %cst_98 : f32 to vector<8x128xf32>
    %136 = arith.mulf %135, %134 : vector<8x128xf32>
    %137 = arith.maximumf %134, %136 : vector<8x128xf32>
    %c1_99 = arith.constant 1 : index
    %c0_100 = arith.constant 0 : index
    %c0_101 = arith.constant 0 : index
    %138 = vector.load %arg8[%c1_99, %c0_100, %c0_101] : memref<3x1x128xf32, #tpu.memory_space<vmem>>, vector<1x1x128xf32>
    %139 = vector.shape_cast %138 : vector<1x1x128xf32> to vector<1x128xf32>
    %140 = vector.broadcast %139 : vector<1x128xf32> to vector<8x128xf32>
    %141 = arith.mulf %137, %140 : vector<8x128xf32>
    %c2_102 = arith.constant 2 : index
    %c0_103 = arith.constant 0 : index
    %c0_104 = arith.constant 0 : index
    %142 = vector.load %arg8[%c2_102, %c0_103, %c0_104] : memref<3x1x128xf32, #tpu.memory_space<vmem>>, vector<1x1x128xf32>
    %143 = vector.shape_cast %142 : vector<1x1x128xf32> to vector<1x128xf32>
    %144 = vector.broadcast %143 : vector<1x128xf32> to vector<8x128xf32>
    %145 = arith.addf %141, %144 : vector<8x128xf32>
    %146 = arith.truncf %145 : vector<8x128xf32> to vector<8x128xbf16>
    %c0_105 = arith.constant 0 : index
    %c0_106 = arith.constant 0 : index
    %147 = vector.load %arg10[%c0_105, %c0_106] : memref<128x1152xbf16, #tpu.memory_space<vmem>>, vector<128x1152xbf16>
    %cst_107 = arith.constant dense<0.000000e+00> : vector<8x1152xf32>
    %148 = tpu.matmul %146, %147, %cst_107 {dimension_numbers = #tpu.dot_dimension_numbers<[1], [0], [0], [1], [0, 0, 1, 1], [], []>} : vector<8x128xbf16>, vector<128x1152xbf16>, vector<8x1152xf32> -> vector<8x1152xf32>
    %cst_108 = arith.constant 0.000000e+00 : f32
    %149 = vector.broadcast %cst_108 : f32 to vector<2x128xf32>
    %c0_109 = arith.constant 0 : index
    %c0_110 = arith.constant 0 : index
    %c0_111 = arith.constant 0 : index
    %150 = vector.load %arg9[%c0_109, %c0_110, %c0_111] : memref<9x2x8xf32, #tpu.memory_space<vmem>>, vector<1x2x8xf32>
    %151 = vector.shape_cast %150 : vector<1x2x8xf32> to vector<2x8xf32>
    %152 = vector.extract_strided_slice %148 {offsets = [0, 0], sizes = [8, 128], strides = [1, 1]} : vector<8x1152xf32> to vector<8x128xf32>
    %cst_112 = arith.constant dense<0.000000e+00> : vector<2x128xf32>
    %153 = tpu.matmul %151, %152, %cst_112 {dimension_numbers = #tpu.dot_dimension_numbers<[1], [0], [0], [1], [0, 0, 1, 1], [], []>} : vector<2x8xf32>, vector<8x128xf32>, vector<2x128xf32> -> vector<2x128xf32>
    %154 = arith.addf %149, %153 : vector<2x128xf32>
    %c1_113 = arith.constant 1 : index
    %c0_114 = arith.constant 0 : index
    %c0_115 = arith.constant 0 : index
    %155 = vector.load %arg9[%c1_113, %c0_114, %c0_115] : memref<9x2x8xf32, #tpu.memory_space<vmem>>, vector<1x2x8xf32>
    %156 = vector.shape_cast %155 : vector<1x2x8xf32> to vector<2x8xf32>
    %157 = vector.extract_strided_slice %148 {offsets = [0, 128], sizes = [8, 128], strides = [1, 1]} : vector<8x1152xf32> to vector<8x128xf32>
    %cst_116 = arith.constant dense<0.000000e+00> : vector<2x128xf32>
    %158 = tpu.matmul %156, %157, %cst_116 {dimension_numbers = #tpu.dot_dimension_numbers<[1], [0], [0], [1], [0, 0, 1, 1], [], []>} : vector<2x8xf32>, vector<8x128xf32>, vector<2x128xf32> -> vector<2x128xf32>
    %159 = arith.addf %154, %158 : vector<2x128xf32>
    %c2_117 = arith.constant 2 : index
    %c0_118 = arith.constant 0 : index
    %c0_119 = arith.constant 0 : index
    %160 = vector.load %arg9[%c2_117, %c0_118, %c0_119] : memref<9x2x8xf32, #tpu.memory_space<vmem>>, vector<1x2x8xf32>
    %161 = vector.shape_cast %160 : vector<1x2x8xf32> to vector<2x8xf32>
    %162 = vector.extract_strided_slice %148 {offsets = [0, 256], sizes = [8, 128], strides = [1, 1]} : vector<8x1152xf32> to vector<8x128xf32>
    %cst_120 = arith.constant dense<0.000000e+00> : vector<2x128xf32>
    %163 = tpu.matmul %161, %162, %cst_120 {dimension_numbers = #tpu.dot_dimension_numbers<[1], [0], [0], [1], [0, 0, 1, 1], [], []>} : vector<2x8xf32>, vector<8x128xf32>, vector<2x128xf32> -> vector<2x128xf32>
    %164 = arith.addf %159, %163 : vector<2x128xf32>
    %c3_121 = arith.constant 3 : index
    %c0_122 = arith.constant 0 : index
    %c0_123 = arith.constant 0 : index
    %165 = vector.load %arg9[%c3_121, %c0_122, %c0_123] : memref<9x2x8xf32, #tpu.memory_space<vmem>>, vector<1x2x8xf32>
    %166 = vector.shape_cast %165 : vector<1x2x8xf32> to vector<2x8xf32>
    %167 = vector.extract_strided_slice %148 {offsets = [0, 384], sizes = [8, 128], strides = [1, 1]} : vector<8x1152xf32> to vector<8x128xf32>
    %cst_124 = arith.constant dense<0.000000e+00> : vector<2x128xf32>
    %168 = tpu.matmul %166, %167, %cst_124 {dimension_numbers = #tpu.dot_dimension_numbers<[1], [0], [0], [1], [0, 0, 1, 1], [], []>} : vector<2x8xf32>, vector<8x128xf32>, vector<2x128xf32> -> vector<2x128xf32>
    %169 = arith.addf %164, %168 : vector<2x128xf32>
    %c4_125 = arith.constant 4 : index
    %c0_126 = arith.constant 0 : index
    %c0_127 = arith.constant 0 : index
    %170 = vector.load %arg9[%c4_125, %c0_126, %c0_127] : memref<9x2x8xf32, #tpu.memory_space<vmem>>, vector<1x2x8xf32>
    %171 = vector.shape_cast %170 : vector<1x2x8xf32> to vector<2x8xf32>
    %172 = vector.extract_strided_slice %148 {offsets = [0, 512], sizes = [8, 128], strides = [1, 1]} : vector<8x1152xf32> to vector<8x128xf32>
    %cst_128 = arith.constant dense<0.000000e+00> : vector<2x128xf32>
    %173 = tpu.matmul %171, %172, %cst_128 {dimension_numbers = #tpu.dot_dimension_numbers<[1], [0], [0], [1], [0, 0, 1, 1], [], []>} : vector<2x8xf32>, vector<8x128xf32>, vector<2x128xf32> -> vector<2x128xf32>
    %174 = arith.addf %169, %173 : vector<2x128xf32>
    %c5_129 = arith.constant 5 : index
    %c0_130 = arith.constant 0 : index
    %c0_131 = arith.constant 0 : index
    %175 = vector.load %arg9[%c5_129, %c0_130, %c0_131] : memref<9x2x8xf32, #tpu.memory_space<vmem>>, vector<1x2x8xf32>
    %176 = vector.shape_cast %175 : vector<1x2x8xf32> to vector<2x8xf32>
    %177 = vector.extract_strided_slice %148 {offsets = [0, 640], sizes = [8, 128], strides = [1, 1]} : vector<8x1152xf32> to vector<8x128xf32>
    %cst_132 = arith.constant dense<0.000000e+00> : vector<2x128xf32>
    %178 = tpu.matmul %176, %177, %cst_132 {dimension_numbers = #tpu.dot_dimension_numbers<[1], [0], [0], [1], [0, 0, 1, 1], [], []>} : vector<2x8xf32>, vector<8x128xf32>, vector<2x128xf32> -> vector<2x128xf32>
    %179 = arith.addf %174, %178 : vector<2x128xf32>
    %c6_133 = arith.constant 6 : index
    %c0_134 = arith.constant 0 : index
    %c0_135 = arith.constant 0 : index
    %180 = vector.load %arg9[%c6_133, %c0_134, %c0_135] : memref<9x2x8xf32, #tpu.memory_space<vmem>>, vector<1x2x8xf32>
    %181 = vector.shape_cast %180 : vector<1x2x8xf32> to vector<2x8xf32>
    %182 = vector.extract_strided_slice %148 {offsets = [0, 768], sizes = [8, 128], strides = [1, 1]} : vector<8x1152xf32> to vector<8x128xf32>
    %cst_136 = arith.constant dense<0.000000e+00> : vector<2x128xf32>
    %183 = tpu.matmul %181, %182, %cst_136 {dimension_numbers = #tpu.dot_dimension_numbers<[1], [0], [0], [1], [0, 0, 1, 1], [], []>} : vector<2x8xf32>, vector<8x128xf32>, vector<2x128xf32> -> vector<2x128xf32>
    %184 = arith.addf %179, %183 : vector<2x128xf32>
    %c7_137 = arith.constant 7 : index
    %c0_138 = arith.constant 0 : index
    %c0_139 = arith.constant 0 : index
    %185 = vector.load %arg9[%c7_137, %c0_138, %c0_139] : memref<9x2x8xf32, #tpu.memory_space<vmem>>, vector<1x2x8xf32>
    %186 = vector.shape_cast %185 : vector<1x2x8xf32> to vector<2x8xf32>
    %187 = vector.extract_strided_slice %148 {offsets = [0, 896], sizes = [8, 128], strides = [1, 1]} : vector<8x1152xf32> to vector<8x128xf32>
    %cst_140 = arith.constant dense<0.000000e+00> : vector<2x128xf32>
    %188 = tpu.matmul %186, %187, %cst_140 {dimension_numbers = #tpu.dot_dimension_numbers<[1], [0], [0], [1], [0, 0, 1, 1], [], []>} : vector<2x8xf32>, vector<8x128xf32>, vector<2x128xf32> -> vector<2x128xf32>
    %189 = arith.addf %184, %188 : vector<2x128xf32>
    %c8_141 = arith.constant 8 : index
    %c0_142 = arith.constant 0 : index
    %c0_143 = arith.constant 0 : index
    %190 = vector.load %arg9[%c8_141, %c0_142, %c0_143] : memref<9x2x8xf32, #tpu.memory_space<vmem>>, vector<1x2x8xf32>
    %191 = vector.shape_cast %190 : vector<1x2x8xf32> to vector<2x8xf32>
    %192 = vector.extract_strided_slice %148 {offsets = [0, 1024], sizes = [8, 128], strides = [1, 1]} : vector<8x1152xf32> to vector<8x128xf32>
    %cst_144 = arith.constant dense<0.000000e+00> : vector<2x128xf32>
    %193 = tpu.matmul %191, %192, %cst_144 {dimension_numbers = #tpu.dot_dimension_numbers<[1], [0], [0], [1], [0, 0, 1, 1], [], []>} : vector<2x8xf32>, vector<8x128xf32>, vector<2x128xf32> -> vector<2x128xf32>
    %194 = arith.addf %189, %193 : vector<2x128xf32>
    %c0_145 = arith.constant 0 : index
    %c0_146 = arith.constant 0 : index
    %c0_147 = arith.constant 0 : index
    %195 = vector.load %arg11[%c0_145, %c0_146, %c0_147] : memref<3x1x128xf32, #tpu.memory_space<vmem>>, vector<1x1x128xf32>
    %196 = vector.shape_cast %195 : vector<1x1x128xf32> to vector<1x128xf32>
    %197 = vector.broadcast %196 : vector<1x128xf32> to vector<2x128xf32>
    %198 = arith.addf %194, %197 : vector<2x128xf32>
    %cst_148 = arith.constant 2.000000e-01 : f32
    %199 = vector.broadcast %cst_148 : f32 to vector<2x128xf32>
    %200 = arith.mulf %199, %198 : vector<2x128xf32>
    %201 = arith.maximumf %198, %200 : vector<2x128xf32>
    %c1_149 = arith.constant 1 : index
    %c0_150 = arith.constant 0 : index
    %c0_151 = arith.constant 0 : index
    %202 = vector.load %arg11[%c1_149, %c0_150, %c0_151] : memref<3x1x128xf32, #tpu.memory_space<vmem>>, vector<1x1x128xf32>
    %203 = vector.shape_cast %202 : vector<1x1x128xf32> to vector<1x128xf32>
    %204 = vector.broadcast %203 : vector<1x128xf32> to vector<2x128xf32>
    %205 = arith.mulf %201, %204 : vector<2x128xf32>
    %c2_152 = arith.constant 2 : index
    %c0_153 = arith.constant 0 : index
    %c0_154 = arith.constant 0 : index
    %206 = vector.load %arg11[%c2_152, %c0_153, %c0_154] : memref<3x1x128xf32, #tpu.memory_space<vmem>>, vector<1x1x128xf32>
    %207 = vector.shape_cast %206 : vector<1x1x128xf32> to vector<1x128xf32>
    %208 = vector.broadcast %207 : vector<1x128xf32> to vector<2x128xf32>
    %209 = arith.addf %205, %208 : vector<2x128xf32>
    %210 = arith.truncf %209 : vector<2x128xf32> to vector<2x128xbf16>
    %c0_155 = arith.constant 0 : index
    %c0_156 = arith.constant 0 : index
    %211 = vector.load %arg13[%c0_155, %c0_156] : memref<128x128xbf16, #tpu.memory_space<vmem>>, vector<128x128xbf16>
    %cst_157 = arith.constant dense<0.000000e+00> : vector<2x128xf32>
    %212 = tpu.matmul %210, %211, %cst_157 {dimension_numbers = #tpu.dot_dimension_numbers<[1], [0], [0], [1], [0, 0, 1, 1], [], []>} : vector<2x128xbf16>, vector<128x128xbf16>, vector<2x128xf32> -> vector<2x128xf32>
    %cst_158 = arith.constant 0.000000e+00 : f32
    %213 = vector.broadcast %cst_158 : f32 to vector<2x128xf32>
    %c0_159 = arith.constant 0 : index
    %c0_160 = arith.constant 0 : index
    %c0_161 = arith.constant 0 : index
    %214 = vector.load %arg12[%c0_159, %c0_160, %c0_161] : memref<1x2x2xf32, #tpu.memory_space<vmem>>, vector<1x2x2xf32>
    %215 = vector.shape_cast %214 : vector<1x2x2xf32> to vector<2x2xf32>
    %cst_162 = arith.constant dense<0.000000e+00> : vector<2x128xf32>
    %216 = tpu.matmul %215, %212, %cst_162 {dimension_numbers = #tpu.dot_dimension_numbers<[1], [0], [0], [1], [0, 0, 1, 1], [], []>} : vector<2x2xf32>, vector<2x128xf32>, vector<2x128xf32> -> vector<2x128xf32>
    %217 = arith.addf %213, %216 : vector<2x128xf32>
    %c0_163 = arith.constant 0 : index
    %c0_164 = arith.constant 0 : index
    %218 = vector.load %arg14[%c0_163, %c0_164] : memref<1x128xf32, #tpu.memory_space<vmem>>, vector<1x128xf32>
    %219 = vector.broadcast %218 : vector<1x128xf32> to vector<2x128xf32>
    %220 = arith.addf %217, %219 : vector<2x128xf32>
    %c0_165 = arith.constant 0 : index
    %c0_166 = arith.constant 0 : index
    %221 = vector.load %arg15[%c0_165, %c0_166] : memref<2x128xf32, #tpu.memory_space<vmem>>, vector<2x128xf32>
    tpu.vector_store %arg15[%c0_165, %c0_166], %220 {strides = array<i32>} : memref<2x128xf32, #tpu.memory_space<vmem>>, vector<2x128xf32>,
    return
  }
}

</mosaic_0001>

<llo_original>
// kernel: conditional_discriminator_forward.1
$region0: #{conditional_discriminator_forward.1}
  #allocation0 [shape = 'u32[]', space=smem, size = 0x4, offset = 0x4, fixed_abs, tag = 'smem constant byte address 0x4 - core index']
  #allocation1 [shape = 'u32[144,128]{1,0:T(1,128)}', space=vmem, size = 0x12000, scoped, tag = 'internal scratch']
  %s0 = inlined_call_operand.vmem [shape: bf16[128,32], index: 0, kind: input, shape index: {}]
  %s1 = inlined_call_operand.vmem [shape: bf16[32,128], index: 1, kind: input, shape index: {}]
  %s2 = inlined_call_operand.vmem [shape: f32[3,1,128], index: 2, kind: input, shape index: {}]
  %s3 = inlined_call_operand.hbm [shape: f32[9,32,128], index: 3, kind: input, shape index: {}]
  %s4 = inlined_call_operand.vmem [shape: bf16[128,1152], index: 4, kind: input, shape index: {}]
  %s5 = inlined_call_operand.vmem [shape: f32[3,1,128], index: 5, kind: input, shape index: {}]
  %s6 = inlined_call_operand.vmem [shape: f32[9,8,32], index: 6, kind: input, shape index: {}]
  %s7 = inlined_call_operand.vmem [shape: bf16[128,1152], index: 7, kind: input, shape index: {}]
  %s8 = inlined_call_operand.hbm [shape: f32[3,1,128], index: 8, kind: input, shape index: {}]
  %s9 = inlined_call_operand.vmem [shape: f32[9,2,8], index: 9, kind: input, shape index: {}]
  %s10 = inlined_call_operand.vmem [shape: bf16[128,1152], index: 10, kind: input, shape index: {}]
  %s11 = inlined_call_operand.hbm [shape: f32[3,1,128], index: 11, kind: input, shape index: {}]
  %s12 = inlined_call_operand.vmem [shape: f32[1,2,2], index: 12, kind: input, shape index: {}]
  %s13 = inlined_call_operand.vmem [shape: bf16[128,128], index: 13, kind: input, shape index: {}]
  %s14 = inlined_call_operand.vmem [shape: f32[1,128], index: 14, kind: input, shape index: {}]
  %s15 = inlined_call_operand.vmem [shape: f32[2,128], index: 15, kind: output, shape index: {}]
  %s16 = sld [smem:[#allocation0]]
  $region82: #{conditional_discriminator_forward.1} parent=0
    _
  %s18 = ssub.s32 1, %s16
  %s19 = scalar_select 0, %s18, %s16
  $region1: #{conditional_discriminator_forward.1} parent=0
    #allocation2 [shape = 'u8[147456]{0}', space=vmem, size = 0x24000, scoped, tag = 'input window, operand 3, single buffered']
    #allocation3 [shape = 's32[1]{0}', space=sflag, size = 0x4, scoped, tag = 'scoped memory for conditional_discriminator_forward.1']
    #allocation4 [shape = 'u8[1536]{0}', space=vmem, size = 0x800, scoped, tag = 'input window, operand 8, single buffered']
    #allocation5 [shape = 's32[1]{0}', space=sflag, size = 0x4, scoped, tag = 'scoped memory for conditional_discriminator_forward.1']
    #allocation6 [shape = 'u8[1536]{0}', space=vmem, size = 0x800, scoped, tag = 'input window, operand 11, single buffered']
    %20 = vsyncpa [#allocation3], 0
    %21 = vsyncpa [#allocation5], 0
    // Predicated region
    $region2: #{conditional_discriminator_forward.1} parent=1 // pred_check
      _
    $region3: #{conditional_discriminator_forward.1} parent=1 // pred_check_branch
      %23 = sbr.rel (0) target = $region5
    $region4: #{conditional_discriminator_forward.1} parent=1 // pred_region
      _
    $region5: #{conditional_discriminator_forward.1} parent=1 // pred_fallthru
      _
    // Predicated region
    $region6: #{conditional_discriminator_forward.1} parent=1 // pred_check
      _
    $region7: #{conditional_discriminator_forward.1} parent=1 // pred_check_branch
      %25 = sbr.rel (0) target = $region9
    $region8: #{conditional_discriminator_forward.1} parent=1 // pred_region
      _
    $region9: #{conditional_discriminator_forward.1} parent=1 // pred_fallthru
      _
    // Predicated region
    $region10: #{conditional_discriminator_forward.1} parent=1 // pred_check
      _
    $region11: #{conditional_discriminator_forward.1} parent=1 // pred_check_branch
      %27 = sbr.rel (0) target = $region13
    $region12: #{conditional_discriminator_forward.1} parent=1 // pred_region
      _
    $region13: #{conditional_discriminator_forward.1} parent=1 // pred_fallthru
      _
    // Predicated region
    $region14: #{conditional_discriminator_forward.1} parent=1 // pred_check
      _
    $region15: #{conditional_discriminator_forward.1} parent=1 // pred_check_branch
      %29 = sbr.rel (0) target = $region17
    $region16: #{conditional_discriminator_forward.1} parent=1 // pred_region
      %s31 = ssub.s32 4608, 4608
      %32 = vsyncadd [#allocation3], %s31
      %s33 = sshll.u32 [#allocation2], 4
      %s34 = int_to_ptr.vmem [resolvable:$true] %s33
      %39 = dma.hbm_to_vmem [thread:$0]  %s3, 4608, %s34, [#allocation3], 128, 128, 8
    $region17: #{conditional_discriminator_forward.1} parent=1 // pred_fallthru
      _
    // Predicated region
    $region18: #{conditional_discriminator_forward.1} parent=1 // pred_check
      _
    $region19: #{conditional_discriminator_forward.1} parent=1 // pred_check_branch
      %41 = sbr.rel (0) target = $region21
    $region20: #{conditional_discriminator_forward.1} parent=1 // pred_region
      _
    $region21: #{conditional_discriminator_forward.1} parent=1 // pred_fallthru
      _
    // Predicated region
    $region22: #{conditional_discriminator_forward.1} parent=1 // pred_check
      _
    $region23: #{conditional_discriminator_forward.1} parent=1 // pred_check_branch
      %43 = sbr.rel (0) target = $region25
    $region24: #{conditional_discriminator_forward.1} parent=1 // pred_region
      _
    $region25: #{conditional_discriminator_forward.1} parent=1 // pred_fallthru
      _
    // Predicated region
    $region26: #{conditional_discriminator_forward.1} parent=1 // pred_check
      _
    $region27: #{conditional_discriminator_forward.1} parent=1 // pred_check_branch
      %45 = sbr.rel (0) target = $region29
    $region28: #{conditional_discriminator_forward.1} parent=1 // pred_region
      _
    $region29: #{conditional_discriminator_forward.1} parent=1 // pred_fallthru
      _
    // Predicated region
    $region30: #{conditional_discriminator_forward.1} parent=1 // pred_check
      _
    $region31: #{conditional_discriminator_forward.1} parent=1 // pred_check_branch
      %47 = sbr.rel (0) target = $region33
    $region32: #{conditional_discriminator_forward.1} parent=1 // pred_region
      _
    $region33: #{conditional_discriminator_forward.1} parent=1 // pred_fallthru
      _
    // Predicated region
    $region34: #{conditional_discriminator_forward.1} parent=1 // pred_check
      _
    $region35: #{conditional_discriminator_forward.1} parent=1 // pred_check_branch
      %49 = sbr.rel (0) target = $region37
    $region36: #{conditional_discriminator_forward.1} parent=1 // pred_region
      %s51 = ssub.s32 48, 48
      %52 = vsyncadd [#allocation5], %s51
      %s53 = sshll.u32 [#allocation4], 4
      %s54 = int_to_ptr.vmem [resolvable:$true] %s53
      %59 = dma.hbm_to_vmem [thread:$0]  %s8, 48, %s54, [#allocation5], 16, 16, 1
    $region37: #{conditional_discriminator_forward.1} parent=1 // pred_fallthru
      _
    // Predicated region
    $region38: #{conditional_discriminator_forward.1} parent=1 // pred_check
      _
    $region39: #{conditional_discriminator_forward.1} parent=1 // pred_check_branch
      %61 = sbr.rel (0) target = $region41
    $region40: #{conditional_discriminator_forward.1} parent=1 // pred_region
      _
    $region41: #{conditional_discriminator_forward.1} parent=1 // pred_fallthru
      _
    // Predicated region
    $region42: #{conditional_discriminator_forward.1} parent=1 // pred_check
      _
    $region43: #{conditional_discriminator_forward.1} parent=1 // pred_check_branch
      %63 = sbr.rel (0) target = $region45
    $region44: #{conditional_discriminator_forward.1} parent=1 // pred_region
      _
    $region45: #{conditional_discriminator_forward.1} parent=1 // pred_fallthru
      _
    // Predicated region
    $region46: #{conditional_discriminator_forward.1} parent=1 // pred_check
      _
    $region47: #{conditional_discriminator_forward.1} parent=1 // pred_check_branch
      %65 = sbr.rel (0) target = $region49
    $region48: #{conditional_discriminator_forward.1} parent=1 // pred_region
      %s67 = ssub.s32 48, 48
      %68 = vsyncadd [#allocation5], %s67
      %s69 = sshll.u32 [#allocation6], 4
      %s70 = int_to_ptr.vmem [resolvable:$true] %s69
      %75 = dma.hbm_to_vmem [thread:$0]  %s11, 48, %s70, [#allocation5], 16, 16, 1
    $region49: #{conditional_discriminator_forward.1} parent=1 // pred_fallthru
      _
    // Predicated region
    $region50: #{conditional_discriminator_forward.1} parent=1 // pred_check
      _
    $region51: #{conditional_discriminator_forward.1} parent=1 // pred_check_branch
      %77 = sbr.rel (0) target = $region53
    $region52: #{conditional_discriminator_forward.1} parent=1 // pred_region
      _
    $region53: #{conditional_discriminator_forward.1} parent=1 // pred_fallthru
      _
    // Predicated region
    $region54: #{conditional_discriminator_forward.1} parent=1 // pred_check
      _
    $region55: #{conditional_discriminator_forward.1} parent=1 // pred_check_branch
      %79 = sbr.rel (0) target = $region57
    $region56: #{conditional_discriminator_forward.1} parent=1 // pred_region
      _
    $region57: #{conditional_discriminator_forward.1} parent=1 // pred_fallthru
      _
    // Predicated region
    $region58: #{conditional_discriminator_forward.1} parent=1 // pred_check
      _
    $region59: #{conditional_discriminator_forward.1} parent=1 // pred_check_branch
      %81 = sbr.rel (0) target = $region61
    $region60: #{conditional_discriminator_forward.1} parent=1 // pred_region
      _
    $region61: #{conditional_discriminator_forward.1} parent=1 // pred_fallthru
      _
    // Predicated region
    $region62: #{conditional_discriminator_forward.1} parent=1 // pred_check
      _
    $region63: #{conditional_discriminator_forward.1} parent=1 // pred_check_branch
      %83 = sbr.rel (0) target = $region65
    $region64: #{conditional_discriminator_forward.1} parent=1 // pred_region
      %84 = dma.done [#allocation3], 4608
    $region65: #{conditional_discriminator_forward.1} parent=1 // pred_fallthru
      _
    // Predicated region
    $region66: #{conditional_discriminator_forward.1} parent=1 // pred_check
      _
    $region67: #{conditional_discriminator_forward.1} parent=1 // pred_check_branch
      %86 = sbr.rel (0) target = $region69
    $region68: #{conditional_discriminator_forward.1} parent=1 // pred_region
      %87 = dma.done [#allocation5], 48
    $region69: #{conditional_discriminator_forward.1} parent=1 // pred_fallthru
      _
    // Predicated region
    $region70: #{conditional_discriminator_forward.1} parent=1 // pred_check
      _
    $region71: #{conditional_discriminator_forward.1} parent=1 // pred_check_branch
      %89 = sbr.rel (0) target = $region73
    $region72: #{conditional_discriminator_forward.1} parent=1 // pred_region
      %90 = dma.done [#allocation5], 48
    $region73: #{conditional_discriminator_forward.1} parent=1 // pred_fallthru
      _
    %v92 = vld [vmem:[%s0] sm:$0xf]
    %v93 = vld [vmem:[%s0 + $0x4] sm:$0xf]
    %v94 = vld [vmem:[%s0 + $0x8] sm:$0xf]
    %v95 = vld [vmem:[%s0 + $0xc] sm:$0xf]
    %v96 = vld [vmem:[%s0 + $0x10] sm:$0xf]
    %v97 = vld [vmem:[%s0 + $0x14] sm:$0xf]
    %v98 = vld [vmem:[%s0 + $0x18] sm:$0xf]
    %v99 = vld [vmem:[%s0 + $0x1c] sm:$0xf]
    %v100 = vld [vmem:[%s0 + $0x20] sm:$0xf]
    %v101 = vld [vmem:[%s0 + $0x24] sm:$0xf]
    %v102 = vld [vmem:[%s0 + $0x28] sm:$0xf]
    %v103 = vld [vmem:[%s0 + $0x2c] sm:$0xf]
    %v104 = vld [vmem:[%s0 + $0x30] sm:$0xf]
    %v105 = vld [vmem:[%s0 + $0x34] sm:$0xf]
    %v106 = vld [vmem:[%s0 + $0x38] sm:$0xf]
    %v107 = vld [vmem:[%s0 + $0x3c] sm:$0xf]
    %v108 = vld [vmem:[%s1] sm:$0xf]
    %v109 = vld [vmem:[%s1 + $0x4] sm:$0xf]
    %v110 = vld [vmem:[%s1 + $0x8] sm:$0xf]
    %v111 = vld [vmem:[%s1 + $0xc] sm:$0xf]
    %v112 = vld [vmem:[%s2] sm:$0x1]
    %v114 = vlaneseq
    %v115 = vshrl.u32 %v114, 7
    %v116 = vsub.s32 0, %v115
    %v117 = vrot.slane %v112, %v116
    %v135 = vunpack.c.l.b16 %v92
    %v136 = vunpack.c.l.b16 %v93
    %v137 = vunpack.c.l.b16 %v94
    %v138 = vunpack.c.l.b16 %v95
    %v139 = vunpack.c.l.b16 %v96
    %v140 = vunpack.c.l.b16 %v97
    %v141 = vunpack.c.l.b16 %v98
    %v142 = vunpack.c.l.b16 %v99
    %v143 = vunpack.c.l.b16 %v100
    %v144 = vunpack.c.l.b16 %v101
    %v145 = vunpack.c.l.b16 %v102
    %v146 = vunpack.c.l.b16 %v103
    %v147 = vunpack.c.l.b16 %v104
    %v148 = vunpack.c.l.b16 %v105
    %v149 = vunpack.c.l.b16 %v106
    %v150 = vunpack.c.l.b16 %v107
    %v151 = vpack.c.b16 %v136, %v135
    %v152 = vpack.c.b16 %v138, %v137
    %v153 = vpack.c.b16 %v140, %v139
    %v154 = vpack.c.b16 %v142, %v141
    %v155 = vpack.c.b16 %v144, %v143
    %v156 = vpack.c.b16 %v146, %v145
    %v157 = vpack.c.b16 %v148, %v147
    %v158 = vpack.c.b16 %v150, %v149
    %v163 = vunpack.c.l.b16 %v108
    %v164 = vunpack.c.l.b16 %v109
    %v165 = vunpack.c.l.b16 %v110
    %v166 = vunpack.c.l.b16 %v111
    %v167 = vpack.c.b16 %v164, %v163
    %v168 = vpack.c.b16 %v166, %v165
    %vm171 = vcmask 261120
    %v173 = vsel %vm171, %v151, 0
    %v176 = vsel %vm171, %v152, 0
    %v179 = vsel %vm171, %v153, 0
    %v182 = vsel %vm171, %v154, 0
    %v185 = vsel %vm171, %v155, 0
    %v188 = vsel %vm171, %v156, 0
    %v191 = vsel %vm171, %v157, 0
    %v194 = vsel %vm171, %v158, 0
    %196 = vmatprep.subr.bf16.mxu0 0
    %197 = vmatpush1.bf16.msra.mxu0 0
    %198 = vmatprep.subr.bf16.mxu0 0
    %199 = vmatpush1.bf16.msra.mxu0 0
    %200 = vmatprep.subr.bf16.mxu0 0
    %201 = vmatpush1.bf16.msra.mxu0 0
    %202 = vmatprep.subr.bf16.mxu0 0
    %203 = vmatpush1.bf16.msra.mxu0 0
    %204 = vmatprep.subr.bf16.mxu0 0
    %205 = vmatpush1.bf16.msra.mxu0 0
    %206 = vmatprep.subr.bf16.mxu0 0
    %207 = vmatpush1.bf16.msra.mxu0 0
    %208 = vmatprep.subr.bf16.mxu0 0
    %209 = vmatpush1.bf16.msra.mxu0 %v168
    %210 = vmatprep.subr.bf16.mxu0 0
    %211 = vmatpush1.bf16.msra.mxu0 %v167
    %212 = vmatprep.subr.bf16.mxu0 0
    %213 = vmatpush2.bf16.msra.mxu0 0
    %214 = vmatprep.subr.bf16.mxu0 0
    %215 = vmatpush2.bf16.msra.mxu0 0
    %216 = vmatprep.subr.bf16.mxu0 0
    %217 = vmatpush2.bf16.msra.mxu0 0
    %218 = vmatprep.subr.bf16.mxu0 0
    %219 = vmatpush2.bf16.msra.mxu0 0
    %220 = vmatprep.subr.bf16.mxu0 0
    %221 = vmatpush2.bf16.msra.mxu0 0
    %222 = vmatprep.subr.bf16.mxu0 0
    %223 = vmatpush2.bf16.msra.mxu0 0
    %224 = vmatprep.subr.bf16.mxu0 0
    %225 = vmatpush2.bf16.msra.mxu0 0
    %226 = vmatprep.subr.bf16.mxu0 0
    %227 = vmatpush2.bf16.msra.mxu0 0
    %228 = vmatprep.mubr.bf16.mxu0 0
    %229 = vmatmul.mubr.bf16.gmra.mxu0 %v173
    %v230 = vpop.f32.mrf.mxu0
    %v231 = vadd.f32 %v117, %v230
    %v232 = vpop.f32.mrf.mxu0
    %v233 = vpop.f32.mrf.mxu0
    %v234 = vadd.f32 %v117, %v233
    %v235 = vpop.f32.mrf.mxu0
    %236 = vmatprep.mubr.bf16.mxu0 0
    %237 = vmatmul.mubr.bf16.gmra.mxu0 %v176
    %v238 = vpop.f32.mrf.mxu0
    %v239 = vadd.f32 %v117, %v238
    %v240 = vpop.f32.mrf.mxu0
    %v241 = vpop.f32.mrf.mxu0
    %v242 = vadd.f32 %v117, %v241
    %v243 = vpop.f32.mrf.mxu0
    %244 = vmatprep.mubr.bf16.mxu0 0
    %245 = vmatmul.mubr.bf16.gmra.mxu0 %v179
    %v246 = vpop.f32.mrf.mxu0
    %v247 = vadd.f32 %v117, %v246
    %v248 = vpop.f32.mrf.mxu0
    %v249 = vpop.f32.mrf.mxu0
    %v250 = vadd.f32 %v117, %v249
    %v251 = vpop.f32.mrf.mxu0
    %252 = vmatprep.mubr.bf16.mxu0 0
    %253 = vmatmul.mubr.bf16.gmra.mxu0 %v182
    %v254 = vpop.f32.mrf.mxu0
    %v255 = vadd.f32 %v117, %v254
    %v256 = vpop.f32.mrf.mxu0
    %v257 = vpop.f32.mrf.mxu0
    %v258 = vadd.f32 %v117, %v257
    %v259 = vpop.f32.mrf.mxu0
    %260 = vmatprep.mubr.bf16.mxu0 0
    %261 = vmatmul.mubr.bf16.gmra.mxu0 %v185
    %v262 = vpop.f32.mrf.mxu0
    %v263 = vadd.f32 %v117, %v262
    %v264 = vpop.f32.mrf.mxu0
    %v265 = vpop.f32.mrf.mxu0
    %v266 = vadd.f32 %v117, %v265
    %v267 = vpop.f32.mrf.mxu0
    %268 = vmatprep.mubr.bf16.mxu0 0
    %269 = vmatmul.mubr.bf16.gmra.mxu0 %v188
    %v270 = vpop.f32.mrf.mxu0
    %v271 = vadd.f32 %v117, %v270
    %v272 = vpop.f32.mrf.mxu0
    %v273 = vpop.f32.mrf.mxu0
    %v274 = vadd.f32 %v117, %v273
    %v275 = vpop.f32.mrf.mxu0
    %276 = vmatprep.mubr.bf16.mxu0 0
    %277 = vmatmul.mubr.bf16.gmra.mxu0 %v191
    %v278 = vpop.f32.mrf.mxu0
    %v279 = vadd.f32 %v117, %v278
    %v280 = vpop.f32.mrf.mxu0
    %v281 = vpop.f32.mrf.mxu0
    %v282 = vadd.f32 %v117, %v281
    %v283 = vpop.f32.mrf.mxu0
    %284 = vmatprep.mubr.bf16.mxu0 0
    %285 = vmatmul.mubr.bf16.gmra.mxu0 %v194
    %v286 = vpop.f32.mrf.mxu0
    %v287 = vadd.f32 %v117, %v286
    %v288 = vpop.f32.mrf.mxu0
    %v289 = vpop.f32.mrf.mxu0
    %v290 = vadd.f32 %v117, %v289
    %v291 = vpop.f32.mrf.mxu0
    %292 = vdwg.mxu0
    %v293 = vmul.f32 %v231, 0.2
    %v294 = vmul.f32 %v234, 0.2
    %v295 = vmul.f32 %v239, 0.2
    %v296 = vmul.f32 %v242, 0.2
    %v297 = vmul.f32 %v247, 0.2
    %v298 = vmul.f32 %v250, 0.2
    %v299 = vmul.f32 %v255, 0.2
    %v300 = vmul.f32 %v258, 0.2
    %v301 = vmul.f32 %v263, 0.2
    %v302 = vmul.f32 %v266, 0.2
    %v303 = vmul.f32 %v271, 0.2
    %v304 = vmul.f32 %v274, 0.2
    %v305 = vmul.f32 %v279, 0.2
    %v306 = vmul.f32 %v282, 0.2
    %v307 = vmul.f32 %v287, 0.2
    %v308 = vmul.f32 %v290, 0.2
    %v309 = vmax.f32 %v231, %v293
    %v310 = vmax.f32 %v234, %v294
    %v311 = vmax.f32 %v239, %v295
    %v312 = vmax.f32 %v242, %v296
    %v313 = vmax.f32 %v247, %v297
    %v314 = vmax.f32 %v250, %v298
    %v315 = vmax.f32 %v255, %v299
    %v316 = vmax.f32 %v258, %v300
    %v317 = vmax.f32 %v263, %v301
    %v318 = vmax.f32 %v266, %v302
    %v319 = vmax.f32 %v271, %v303
    %v320 = vmax.f32 %v274, %v304
    %v321 = vmax.f32 %v279, %v305
    %v322 = vmax.f32 %v282, %v306
    %v323 = vmax.f32 %v287, %v307
    %v324 = vmax.f32 %v290, %v308
    %s325 = scalar_lea.vmem %s2, 1
    %v326 = vld [vmem:[%s325] sm:$0x1]
    %v328 = vlaneseq
    %v329 = vshrl.u32 %v328, 7
    %v330 = vsub.s32 0, %v329
    %v331 = vrot.slane %v326, %v330
    %v333 = vmul.f32 %v309, %v331
    %v334 = vmul.f32 %v310, %v331
    %v335 = vmul.f32 %v311, %v331
    %v336 = vmul.f32 %v312, %v331
    %v337 = vmul.f32 %v313, %v331
    %v338 = vmul.f32 %v314, %v331
    %v339 = vmul.f32 %v315, %v331
    %v340 = vmul.f32 %v316, %v331
    %v341 = vmul.f32 %v317, %v331
    %v342 = vmul.f32 %v318, %v331
    %v343 = vmul.f32 %v319, %v331
    %v344 = vmul.f32 %v320, %v331
    %v345 = vmul.f32 %v321, %v331
    %v346 = vmul.f32 %v322, %v331
    %v347 = vmul.f32 %v323, %v331
    %v348 = vmul.f32 %v324, %v331
    %s349 = scalar_lea.vmem %s2, 2
    %v350 = vld [vmem:[%s349] sm:$0x1]
    %v352 = vlaneseq
    %v353 = vshrl.u32 %v352, 7
    %v354 = vsub.s32 0, %v353
    %v355 = vrot.slane %v350, %v354
    %v357 = vadd.f32 %v333, %v355
    %v358 = vadd.f32 %v334, %v355
    %v359 = vadd.f32 %v335, %v355
    %v360 = vadd.f32 %v336, %v355
    %v361 = vadd.f32 %v337, %v355
    %v362 = vadd.f32 %v338, %v355
    %v363 = vadd.f32 %v339, %v355
    %v364 = vadd.f32 %v340, %v355
    %v365 = vadd.f32 %v341, %v355
    %v366 = vadd.f32 %v342, %v355
    %v367 = vadd.f32 %v343, %v355
    %v368 = vadd.f32 %v344, %v355
    %v369 = vadd.f32 %v345, %v355
    %v370 = vadd.f32 %v346, %v355
    %v371 = vadd.f32 %v347, %v355
    %v372 = vadd.f32 %v348, %v355
    %v373 = vpack.c.bf16 %v358, %v357
    %v374 = vpack.c.bf16 %v360, %v359
    %v375 = vpack.c.bf16 %v362, %v361
    %v376 = vpack.c.bf16 %v364, %v363
    %v377 = vpack.c.bf16 %v366, %v365
    %v378 = vpack.c.bf16 %v368, %v367
    %v379 = vpack.c.bf16 %v370, %v369
    %v380 = vpack.c.bf16 %v372, %v371
    %v381 = vld [vmem:[%s4] sm:$0xff]
    %v382 = vld [vmem:[%s4 + $0x8] sm:$0xff]
    %v383 = vld [vmem:[%s4 + $0x10] sm:$0xff]
    %v384 = vld [vmem:[%s4 + $0x18] sm:$0xff]
    %v385 = vld [vmem:[%s4 + $0x20] sm:$0xf]
    %v386 = vld [vmem:[%s4 + $0x24] sm:$0xff]
    %v387 = vld [vmem:[%s4 + $0x2c] sm:$0xff]
    %v388 = vld [vmem:[%s4 + $0x34] sm:$0xff]
    %v389 = vld [vmem:[%s4 + $0x3c] sm:$0xff]
    %v390 = vld [vmem:[%s4 + $0x44] sm:$0xf]
    %v391 = vld [vmem:[%s4 + $0x48] sm:$0xff]
    %v392 = vld [vmem:[%s4 + $0x50] sm:$0xff]
    %v393 = vld [vmem:[%s4 + $0x58] sm:$0xff]
    %v394 = vld [vmem:[%s4 + $0x60] sm:$0xff]
    %v395 = vld [vmem:[%s4 + $0x68] sm:$0xf]
    %v396 = vld [vmem:[%s4 + $0x6c] sm:$0xff]
    %v397 = vld [vmem:[%s4 + $0x74] sm:$0xff]
    %v398 = vld [vmem:[%s4 + $0x7c] sm:$0xff]
    %v399 = vld [vmem:[%s4 + $0x84] sm:$0xff]
    %v400 = vld [vmem:[%s4 + $0x8c] sm:$0xf]
    %v401 = vld [vmem:[%s4 + $0x90] sm:$0xff]
    %v402 = vld [vmem:[%s4 + $0x98] sm:$0xff]
    %v403 = vld [vmem:[%s4 + $0xa0] sm:$0xff]
    %v404 = vld [vmem:[%s4 + $0xa8] sm:$0xff]
    %v405 = vld [vmem:[%s4 + $0xb0] sm:$0xf]
    %v406 = vld [vmem:[%s4 + $0xb4] sm:$0xff]
    %v407 = vld [vmem:[%s4 + $0xbc] sm:$0xff]
    %v408 = vld [vmem:[%s4 + $0xc4] sm:$0xff]
    %v409 = vld [vmem:[%s4 + $0xcc] sm:$0xff]
    %v410 = vld [vmem:[%s4 + $0xd4] sm:$0xf]
    %v411 = vld [vmem:[%s4 + $0xd8] sm:$0xff]
    %v412 = vld [vmem:[%s4 + $0xe0] sm:$0xff]
    %v413 = vld [vmem:[%s4 + $0xe8] sm:$0xff]
    %v414 = vld [vmem:[%s4 + $0xf0] sm:$0xff]
    %v415 = vld [vmem:[%s4 + $0xf8] sm:$0xf]
    %v416 = vld [vmem:[%s4 + $0xfc] sm:$0xff]
    %v417 = vld [vmem:[%s4 + $0x104] sm:$0xff]
    %v418 = vld [vmem:[%s4 + $0x10c] sm:$0xff]
    %v419 = vld [vmem:[%s4 + $0x114] sm:$0xff]
    %v420 = vld [vmem:[%s4 + $0x11c] sm:$0xf]
    %v421 = vld [vmem:[%s4 + $0x120] sm:$0xff]
    %v422 = vld [vmem:[%s4 + $0x128] sm:$0xff]
    %v423 = vld [vmem:[%s4 + $0x130] sm:$0xff]
    %v424 = vld [vmem:[%s4 + $0x138] sm:$0xff]
    %v425 = vld [vmem:[%s4 + $0x140] sm:$0xf]
    %v426 = vld [vmem:[%s4 + $0x144] sm:$0xff]
    %v427 = vld [vmem:[%s4 + $0x14c] sm:$0xff]
    %v428 = vld [vmem:[%s4 + $0x154] sm:$0xff]
    %v429 = vld [vmem:[%s4 + $0x15c] sm:$0xff]
    %v430 = vld [vmem:[%s4 + $0x164] sm:$0xf]
    %v431 = vld [vmem:[%s4 + $0x168] sm:$0xff]
    %v432 = vld [vmem:[%s4 + $0x170] sm:$0xff]
    %v433 = vld [vmem:[%s4 + $0x178] sm:$0xff]
    %v434 = vld [vmem:[%s4 + $0x180] sm:$0xff]
    %v435 = vld [vmem:[%s4 + $0x188] sm:$0xf]
    %v436 = vld [vmem:[%s4 + $0x18c] sm:$0xff]
    %v437 = vld [vmem:[%s4 + $0x194] sm:$0xff]
    %v438 = vld [vmem:[%s4 + $0x19c] sm:$0xff]
    %v439 = vld [vmem:[%s4 + $0x1a4] sm:$0xff]
    %v440 = vld [vmem:[%s4 + $0x1ac] sm:$0xf]
    %v441 = vld [vmem:[%s4 + $0x1b0] sm:$0xff]
    %v442 = vld [vmem:[%s4 + $0x1b8] sm:$0xff]
    %v443 = vld [vmem:[%s4 + $0x1c0] sm:$0xff]
    %v444 = vld [vmem:[%s4 + $0x1c8] sm:$0xff]
    %v445 = vld [vmem:[%s4 + $0x1d0] sm:$0xf]
    %v446 = vld [vmem:[%s4 + $0x1d4] sm:$0xff]
    %v447 = vld [vmem:[%s4 + $0x1dc] sm:$0xff]
    %v448 = vld [vmem:[%s4 + $0x1e4] sm:$0xff]
    %v449 = vld [vmem:[%s4 + $0x1ec] sm:$0xff]
    %v450 = vld [vmem:[%s4 + $0x1f4] sm:$0xf]
    %v451 = vld [vmem:[%s4 + $0x1f8] sm:$0xff]
    %v452 = vld [vmem:[%s4 + $0x200] sm:$0xff]
    %v453 = vld [vmem:[%s4 + $0x208] sm:$0xff]
    %v454 = vld [vmem:[%s4 + $0x210] sm:$0xff]
    %v455 = vld [vmem:[%s4 + $0x218] sm:$0xf]
    %v456 = vld [vmem:[%s4 + $0x21c] sm:$0xff]
    %v457 = vld [vmem:[%s4 + $0x224] sm:$0xff]
    %v458 = vld [vmem:[%s4 + $0x22c] sm:$0xff]
    %v459 = vld [vmem:[%s4 + $0x234] sm:$0xff]
    %v460 = vld [vmem:[%s4 + $0x23c] sm:$0xf]
    %v541 = vunpack.c.l.b16 %v381
    %v542 = vunpack.c.h.b16 %v381
    %v543 = vunpack.c.l.b16 %v382
    %v544 = vunpack.c.h.b16 %v382
    %v545 = vunpack.c.l.b16 %v383
    %v546 = vunpack.c.h.b16 %v383
    %v547 = vunpack.c.l.b16 %v384
    %v548 = vunpack.c.h.b16 %v384
    %v549 = vunpack.c.l.b16 %v385
    %v550 = vunpack.c.l.b16 %v386
    %v551 = vunpack.c.h.b16 %v386
    %v552 = vunpack.c.l.b16 %v387
    %v553 = vunpack.c.h.b16 %v387
    %v554 = vunpack.c.l.b16 %v388
    %v555 = vunpack.c.h.b16 %v388
    %v556 = vunpack.c.l.b16 %v389
    %v557 = vunpack.c.h.b16 %v389
    %v558 = vunpack.c.l.b16 %v390
    %v559 = vunpack.c.l.b16 %v391
    %v560 = vunpack.c.h.b16 %v391
    %v561 = vunpack.c.l.b16 %v392
    %v562 = vunpack.c.h.b16 %v392
    %v563 = vunpack.c.l.b16 %v393
    %v564 = vunpack.c.h.b16 %v393
    %v565 = vunpack.c.l.b16 %v394
    %v566 = vunpack.c.h.b16 %v394
    %v567 = vunpack.c.l.b16 %v395
    %v568 = vunpack.c.l.b16 %v396
    %v569 = vunpack.c.h.b16 %v396
    %v570 = vunpack.c.l.b16 %v397
    %v571 = vunpack.c.h.b16 %v397
    %v572 = vunpack.c.l.b16 %v398
    %v573 = vunpack.c.h.b16 %v398
    %v574 = vunpack.c.l.b16 %v399
    %v575 = vunpack.c.h.b16 %v399
    %v576 = vunpack.c.l.b16 %v400
    %v577 = vunpack.c.l.b16 %v401
    %v578 = vunpack.c.h.b16 %v401
    %v579 = vunpack.c.l.b16 %v402
    %v580 = vunpack.c.h.b16 %v402
    %v581 = vunpack.c.l.b16 %v403
    %v582 = vunpack.c.h.b16 %v403
    %v583 = vunpack.c.l.b16 %v404
    %v584 = vunpack.c.h.b16 %v404
    %v585 = vunpack.c.l.b16 %v405
    %v586 = vunpack.c.l.b16 %v406
    %v587 = vunpack.c.h.b16 %v406
    %v588 = vunpack.c.l.b16 %v407
    %v589 = vunpack.c.h.b16 %v407
    %v590 = vunpack.c.l.b16 %v408
    %v591 = vunpack.c.h.b16 %v408
    %v592 = vunpack.c.l.b16 %v409
    %v593 = vunpack.c.h.b16 %v409
    %v594 = vunpack.c.l.b16 %v410
    %v595 = vunpack.c.l.b16 %v411
    %v596 = vunpack.c.h.b16 %v411
    %v597 = vunpack.c.l.b16 %v412
    %v598 = vunpack.c.h.b16 %v412
    %v599 = vunpack.c.l.b16 %v413
    %v600 = vunpack.c.h.b16 %v413
    %v601 = vunpack.c.l.b16 %v414
    %v602 = vunpack.c.h.b16 %v414
    %v603 = vunpack.c.l.b16 %v415
    %v604 = vunpack.c.l.b16 %v416
    %v605 = vunpack.c.h.b16 %v416
    %v606 = vunpack.c.l.b16 %v417
    %v607 = vunpack.c.h.b16 %v417
    %v608 = vunpack.c.l.b16 %v418
    %v609 = vunpack.c.h.b16 %v418
    %v610 = vunpack.c.l.b16 %v419
    %v611 = vunpack.c.h.b16 %v419
    %v612 = vunpack.c.l.b16 %v420
    %v613 = vunpack.c.l.b16 %v421
    %v614 = vunpack.c.h.b16 %v421
    %v615 = vunpack.c.l.b16 %v422
    %v616 = vunpack.c.h.b16 %v422
    %v617 = vunpack.c.l.b16 %v423
    %v618 = vunpack.c.h.b16 %v423
    %v619 = vunpack.c.l.b16 %v424
    %v620 = vunpack.c.h.b16 %v424
    %v621 = vunpack.c.l.b16 %v425
    %v622 = vunpack.c.l.b16 %v426
    %v623 = vunpack.c.h.b16 %v426
    %v624 = vunpack.c.l.b16 %v427
    %v625 = vunpack.c.h.b16 %v427
    %v626 = vunpack.c.l.b16 %v428
    %v627 = vunpack.c.h.b16 %v428
    %v628 = vunpack.c.l.b16 %v429
    %v629 = vunpack.c.h.b16 %v429
    %v630 = vunpack.c.l.b16 %v430
    %v631 = vunpack.c.l.b16 %v431
    %v632 = vunpack.c.h.b16 %v431
    %v633 = vunpack.c.l.b16 %v432
    %v634 = vunpack.c.h.b16 %v432
    %v635 = vunpack.c.l.b16 %v433
    %v636 = vunpack.c.h.b16 %v433
    %v637 = vunpack.c.l.b16 %v434
    %v638 = vunpack.c.h.b16 %v434
    %v639 = vunpack.c.l.b16 %v435
    %v640 = vunpack.c.l.b16 %v436
    %v641 = vunpack.c.h.b16 %v436
    %v642 = vunpack.c.l.b16 %v437
    %v643 = vunpack.c.h.b16 %v437
    %v644 = vunpack.c.l.b16 %v438
    %v645 = vunpack.c.h.b16 %v438
    %v646 = vunpack.c.l.b16 %v439
    %v647 = vunpack.c.h.b16 %v439
    %v648 = vunpack.c.l.b16 %v440
    %v649 = vunpack.c.l.b16 %v441
    %v650 = vunpack.c.h.b16 %v441
    %v651 = vunpack.c.l.b16 %v442
    %v652 = vunpack.c.h.b16 %v442
    %v653 = vunpack.c.l.b16 %v443
    %v654 = vunpack.c.h.b16 %v443
    %v655 = vunpack.c.l.b16 %v444
    %v656 = vunpack.c.h.b16 %v444
    %v657 = vunpack.c.l.b16 %v445
    %v658 = vunpack.c.l.b16 %v446
    %v659 = vunpack.c.h.b16 %v446
    %v660 = vunpack.c.l.b16 %v447
    %v661 = vunpack.c.h.b16 %v447
    %v662 = vunpack.c.l.b16 %v448
    %v663 = vunpack.c.h.b16 %v448
    %v664 = vunpack.c.l.b16 %v449
    %v665 = vunpack.c.h.b16 %v449
    %v666 = vunpack.c.l.b16 %v450
    %v667 = vunpack.c.l.b16 %v451
    %v668 = vunpack.c.h.b16 %v451
    %v669 = vunpack.c.l.b16 %v452
    %v670 = vunpack.c.h.b16 %v452
    %v671 = vunpack.c.l.b16 %v453
    %v672 = vunpack.c.h.b16 %v453
    %v673 = vunpack.c.l.b16 %v454
    %v674 = vunpack.c.h.b16 %v454
    %v675 = vunpack.c.l.b16 %v455
    %v676 = vunpack.c.l.b16 %v456
    %v677 = vunpack.c.h.b16 %v456
    %v678 = vunpack.c.l.b16 %v457
    %v679 = vunpack.c.h.b16 %v457
    %v680 = vunpack.c.l.b16 %v458
    %v681 = vunpack.c.h.b16 %v458
    %v682 = vunpack.c.l.b16 %v459
    %v683 = vunpack.c.h.b16 %v459
    %v684 = vunpack.c.l.b16 %v460
    %v685 = vpack.c.b16 %v550, %v541
    %v686 = vpack.c.b16 %v551, %v542
    %v687 = vpack.c.b16 %v552, %v543
    %v688 = vpack.c.b16 %v553, %v544
    %v689 = vpack.c.b16 %v554, %v545
    %v690 = vpack.c.b16 %v555, %v546
    %v691 = vpack.c.b16 %v556, %v547
    %v692 = vpack.c.b16 %v557, %v548
    %v693 = vpack.c.b16 %v558, %v549
    %v694 = vpack.c.b16 %v568, %v559
    %v695 = vpack.c.b16 %v569, %v560
    %v696 = vpack.c.b16 %v570, %v561
    %v697 = vpack.c.b16 %v571, %v562
    %v698 = vpack.c.b16 %v572, %v563
    %v699 = vpack.c.b16 %v573, %v564
    %v700 = vpack.c.b16 %v574, %v565
    %v701 = vpack.c.b16 %v575, %v566
    %v702 = vpack.c.b16 %v576, %v567
    %v703 = vpack.c.b16 %v586, %v577
    %v704 = vpack.c.b16 %v587, %v578
    %v705 = vpack.c.b16 %v588, %v579
    %v706 = vpack.c.b16 %v589, %v580
    %v707 = vpack.c.b16 %v590, %v581
    %v708 = vpack.c.b16 %v591, %v582
    %v709 = vpack.c.b16 %v592, %v583
    %v710 = vpack.c.b16 %v593, %v584
    %v711 = vpack.c.b16 %v594, %v585
    %v712 = vpack.c.b16 %v604, %v595
    %v713 = vpack.c.b16 %v605, %v596
    %v714 = vpack.c.b16 %v606, %v597
    %v715 = vpack.c.b16 %v607, %v598
    %v716 = vpack.c.b16 %v608, %v599
    %v717 = vpack.c.b16 %v609, %v600
    %v718 = vpack.c.b16 %v610, %v601
    %v719 = vpack.c.b16 %v611, %v602
    %v720 = vpack.c.b16 %v612, %v603
    %v721 = vpack.c.b16 %v622, %v613
    %v722 = vpack.c.b16 %v623, %v614
    %v723 = vpack.c.b16 %v624, %v615
    %v724 = vpack.c.b16 %v625, %v616
    %v725 = vpack.c.b16 %v626, %v617
    %v726 = vpack.c.b16 %v627, %v618
    %v727 = vpack.c.b16 %v628, %v619
    %v728 = vpack.c.b16 %v629, %v620
    %v729 = vpack.c.b16 %v630, %v621
    %v730 = vpack.c.b16 %v640, %v631
    %v731 = vpack.c.b16 %v641, %v632
    %v732 = vpack.c.b16 %v642, %v633
    %v733 = vpack.c.b16 %v643, %v634
    %v734 = vpack.c.b16 %v644, %v635
    %v735 = vpack.c.b16 %v645, %v636
    %v736 = vpack.c.b16 %v646, %v637
    %v737 = vpack.c.b16 %v647, %v638
    %v738 = vpack.c.b16 %v648, %v639
    %v739 = vpack.c.b16 %v658, %v649
    %v740 = vpack.c.b16 %v659, %v650
    %v741 = vpack.c.b16 %v660, %v651
    %v742 = vpack.c.b16 %v661, %v652
    %v743 = vpack.c.b16 %v662, %v653
    %v744 = vpack.c.b16 %v663, %v654
    %v745 = vpack.c.b16 %v664, %v655
    %v746 = vpack.c.b16 %v665, %v656
    %v747 = vpack.c.b16 %v666, %v657
    %v748 = vpack.c.b16 %v676, %v667
    %v749 = vpack.c.b16 %v677, %v668
    %v750 = vpack.c.b16 %v678, %v669
    %v751 = vpack.c.b16 %v679, %v670
    %v752 = vpack.c.b16 %v680, %v671
    %v753 = vpack.c.b16 %v681, %v672
    %v754 = vpack.c.b16 %v682, %v673
    %v755 = vpack.c.b16 %v683, %v674
    %v756 = vpack.c.b16 %v684, %v675
    %829 = vmatprep.subr.bf16.mxu0 %v749
    %830 = vmatpush1.bf16.msra.mxu0 %v748
    %831 = vmatprep.subr.bf16.mxu0 %v740
    %832 = vmatpush1.bf16.msra.mxu0 %v739
    %833 = vmatprep.subr.bf16.mxu0 %v731
    %834 = vmatpush1.bf16.msra.mxu0 %v730
    %835 = vmatprep.subr.bf16.mxu0 %v722
    %836 = vmatpush1.bf16.msra.mxu0 %v721
    %837 = vmatprep.subr.bf16.mxu0 %v713
    %838 = vmatpush1.bf16.msra.mxu0 %v712
    %839 = vmatprep.subr.bf16.mxu0 %v704
    %840 = vmatpush1.bf16.msra.mxu0 %v703
    %841 = vmatprep.subr.bf16.mxu0 %v695
    %842 = vmatpush1.bf16.msra.mxu0 %v694
    %843 = vmatprep.subr.bf16.mxu0 %v686
    %844 = vmatpush1.bf16.msra.mxu0 %v685
    %845 = vmatprep.subr.bf16.mxu0 0
    %846 = vmatpush2.bf16.msra.mxu0 0
    %847 = vmatprep.subr.bf16.mxu0 0
    %848 = vmatpush2.bf16.msra.mxu0 0
    %849 = vmatprep.subr.bf16.mxu0 0
    %850 = vmatpush2.bf16.msra.mxu0 0
    %851 = vmatprep.subr.bf16.mxu0 0
    %852 = vmatpush2.bf16.msra.mxu0 0
    %853 = vmatprep.subr.bf16.mxu0 0
    %854 = vmatpush2.bf16.msra.mxu0 0
    %855 = vmatprep.subr.bf16.mxu0 0
    %856 = vmatpush2.bf16.msra.mxu0 0
    %857 = vmatprep.subr.bf16.mxu0 0
    %858 = vmatpush2.bf16.msra.mxu0 0
    %859 = vmatprep.subr.bf16.mxu0 0
    %860 = vmatpush2.bf16.msra.mxu0 0
    %861 = vmatprep.mubr.bf16.mxu0 0
    %862 = vmatmul.mubr.bf16.gmra.mxu0 %v373
    %v863 = vpop.f32.mrf.mxu0
    %v864 = vadd.f32 0.0, %v863
    %v865 = vpop.f32.mrf.mxu0
    %v866 = vadd.f32 0.0, %v865
    %v867 = vpop.f32.mrf.mxu0
    %v868 = vadd.f32 0.0, %v867
    %v869 = vpop.f32.mrf.mxu0
    %v870 = vadd.f32 0.0, %v869
    %871 = vmatprep.mubr.bf16.mxu0 0
    %872 = vmatmul.mubr.bf16.gmra.mxu0 %v374
    %v873 = vpop.f32.mrf.mxu0
    %v874 = vadd.f32 0.0, %v873
    %v875 = vpop.f32.mrf.mxu0
    %v876 = vadd.f32 0.0, %v875
    %v877 = vpop.f32.mrf.mxu0
    %v878 = vadd.f32 0.0, %v877
    %v879 = vpop.f32.mrf.mxu0
    %v880 = vadd.f32 0.0, %v879
    %881 = vmatprep.mubr.bf16.mxu0 0
    %882 = vmatmul.mubr.bf16.gmra.mxu0 %v375
    %v883 = vpop.f32.mrf.mxu0
    %v884 = vadd.f32 0.0, %v883
    %v885 = vpop.f32.mrf.mxu0
    %v886 = vadd.f32 0.0, %v885
    %v887 = vpop.f32.mrf.mxu0
    %v888 = vadd.f32 0.0, %v887
    %v889 = vpop.f32.mrf.mxu0
    %v890 = vadd.f32 0.0, %v889
    %891 = vmatprep.mubr.bf16.mxu0 0
    %892 = vmatmul.mubr.bf16.gmra.mxu0 %v376
    %v893 = vpop.f32.mrf.mxu0
    %v894 = vadd.f32 0.0, %v893
    %v895 = vpop.f32.mrf.mxu0
    %v896 = vadd.f32 0.0, %v895
    %v897 = vpop.f32.mrf.mxu0
    %v898 = vadd.f32 0.0, %v897
    %v899 = vpop.f32.mrf.mxu0
    %v900 = vadd.f32 0.0, %v899
    %901 = vmatprep.mubr.bf16.mxu0 0
    %902 = vmatmul.mubr.bf16.gmra.mxu0 %v377
    %v903 = vpop.f32.mrf.mxu0
    %v904 = vadd.f32 0.0, %v903
    %v905 = vpop.f32.mrf.mxu0
    %v906 = vadd.f32 0.0, %v905
    %v907 = vpop.f32.mrf.mxu0
    %v908 = vadd.f32 0.0, %v907
    %v909 = vpop.f32.mrf.mxu0
    %v910 = vadd.f32 0.0, %v909
    %911 = vmatprep.mubr.bf16.mxu0 0
    %912 = vmatmul.mubr.bf16.gmra.mxu0 %v378
    %v913 = vpop.f32.mrf.mxu0
    %v914 = vadd.f32 0.0, %v913
    %v915 = vpop.f32.mrf.mxu0
    %v916 = vadd.f32 0.0, %v915
    %v917 = vpop.f32.mrf.mxu0
    %v918 = vadd.f32 0.0, %v917
    %v919 = vpop.f32.mrf.mxu0
    %v920 = vadd.f32 0.0, %v919
    %921 = vmatprep.mubr.bf16.mxu0 0
    %922 = vmatmul.mubr.bf16.gmra.mxu0 %v379
    %v923 = vpop.f32.mrf.mxu0
    %v924 = vadd.f32 0.0, %v923
    %v925 = vpop.f32.mrf.mxu0
    %v926 = vadd.f32 0.0, %v925
    %v927 = vpop.f32.mrf.mxu0
    %v928 = vadd.f32 0.0, %v927
    %v929 = vpop.f32.mrf.mxu0
    %v930 = vadd.f32 0.0, %v929
    %931 = vmatprep.mubr.bf16.mxu0 0
    %932 = vmatmul.mubr.bf16.gmra.mxu0 %v380
    %v933 = vpop.f32.mrf.mxu0
    %v934 = vadd.f32 0.0, %v933
    %v935 = vpop.f32.mrf.mxu0
    %v936 = vadd.f32 0.0, %v935
    %v937 = vpop.f32.mrf.mxu0
    %v938 = vadd.f32 0.0, %v937
    %v939 = vpop.f32.mrf.mxu0
    %v940 = vadd.f32 0.0, %v939
    %941 = vdwg.mxu0
    %942 = vmatprep.subr.bf16.mxu0 %v751
    %943 = vmatpush1.bf16.msra.mxu0 %v750
    %944 = vmatprep.subr.bf16.mxu0 %v742
    %945 = vmatpush1.bf16.msra.mxu0 %v741
    %946 = vmatprep.subr.bf16.mxu0 %v733
    %947 = vmatpush1.bf16.msra.mxu0 %v732
    %948 = vmatprep.subr.bf16.mxu0 %v724
    %949 = vmatpush1.bf16.msra.mxu0 %v723
    %950 = vmatprep.subr.bf16.mxu0 %v715
    %951 = vmatpush1.bf16.msra.mxu0 %v714
    %952 = vmatprep.subr.bf16.mxu0 %v706
    %953 = vmatpush1.bf16.msra.mxu0 %v705
    %954 = vmatprep.subr.bf16.mxu0 %v697
    %955 = vmatpush1.bf16.msra.mxu0 %v696
    %956 = vmatprep.subr.bf16.mxu0 %v688
    %957 = vmatpush1.bf16.msra.mxu0 %v687
    %958 = vmatprep.subr.bf16.mxu0 0
    %959 = vmatpush2.bf16.msra.mxu0 0
    %960 = vmatprep.subr.bf16.mxu0 0
    %961 = vmatpush2.bf16.msra.mxu0 0
    %962 = vmatprep.subr.bf16.mxu0 0
    %963 = vmatpush2.bf16.msra.mxu0 0
    %964 = vmatprep.subr.bf16.mxu0 0
    %965 = vmatpush2.bf16.msra.mxu0 0
    %966 = vmatprep.subr.bf16.mxu0 0
    %967 = vmatpush2.bf16.msra.mxu0 0
    %968 = vmatprep.subr.bf16.mxu0 0
    %969 = vmatpush2.bf16.msra.mxu0 0
    %970 = vmatprep.subr.bf16.mxu0 0
    %971 = vmatpush2.bf16.msra.mxu0 0
    %972 = vmatprep.subr.bf16.mxu0 0
    %973 = vmatpush2.bf16.msra.mxu0 0
    %974 = vmatprep.mubr.bf16.mxu0 0
    %975 = vmatmul.mubr.bf16.gmra.mxu0 %v373
    %v976 = vpop.f32.mrf.mxu0
    %v977 = vadd.f32 0.0, %v976
    %v978 = vpop.f32.mrf.mxu0
    %v979 = vadd.f32 0.0, %v978
    %v980 = vpop.f32.mrf.mxu0
    %v981 = vadd.f32 0.0, %v980
    %v982 = vpop.f32.mrf.mxu0
    %v983 = vadd.f32 0.0, %v982
    %984 = vmatprep.mubr.bf16.mxu0 0
    %985 = vmatmul.mubr.bf16.gmra.mxu0 %v374
    %v986 = vpop.f32.mrf.mxu0
    %v987 = vadd.f32 0.0, %v986
    %v988 = vpop.f32.mrf.mxu0
    %v989 = vadd.f32 0.0, %v988
    %v990 = vpop.f32.mrf.mxu0
    %v991 = vadd.f32 0.0, %v990
    %v992 = vpop.f32.mrf.mxu0
    %v993 = vadd.f32 0.0, %v992
    %994 = vmatprep.mubr.bf16.mxu0 0
    %995 = vmatmul.mubr.bf16.gmra.mxu0 %v375
    %v996 = vpop.f32.mrf.mxu0
    %v997 = vadd.f32 0.0, %v996
    %v998 = vpop.f32.mrf.mxu0
    %v999 = vadd.f32 0.0, %v998
    %v1000 = vpop.f32.mrf.mxu0
    %v1001 = vadd.f32 0.0, %v1000
    %v1002 = vpop.f32.mrf.mxu0
    %v1003 = vadd.f32 0.0, %v1002
    %1004 = vmatprep.mubr.bf16.mxu0 0
    %1005 = vmatmul.mubr.bf16.gmra.mxu0 %v376
    %v1006 = vpop.f32.mrf.mxu0
    %v1007 = vadd.f32 0.0, %v1006
    %v1008 = vpop.f32.mrf.mxu0
    %v1009 = vadd.f32 0.0, %v1008
    %v1010 = vpop.f32.mrf.mxu0
    %v1011 = vadd.f32 0.0, %v1010
    %v1012 = vpop.f32.mrf.mxu0
    %v1013 = vadd.f32 0.0, %v1012
    %1014 = vmatprep.mubr.bf16.mxu0 0
    %1015 = vmatmul.mubr.bf16.gmra.mxu0 %v377
    %v1016 = vpop.f32.mrf.mxu0
    %v1017 = vadd.f32 0.0, %v1016
    %v1018 = vpop.f32.mrf.mxu0
    %v1019 = vadd.f32 0.0, %v1018
    %v1020 = vpop.f32.mrf.mxu0
    %v1021 = vadd.f32 0.0, %v1020
    %v1022 = vpop.f32.mrf.mxu0
    %v1023 = vadd.f32 0.0, %v1022
    %1024 = vmatprep.mubr.bf16.mxu0 0
    %1025 = vmatmul.mubr.bf16.gmra.mxu0 %v378
    %v1026 = vpop.f32.mrf.mxu0
    %v1027 = vadd.f32 0.0, %v1026
    %v1028 = vpop.f32.mrf.mxu0
    %v1029 = vadd.f32 0.0, %v1028
    %v1030 = vpop.f32.mrf.mxu0
    %v1031 = vadd.f32 0.0, %v1030
    %v1032 = vpop.f32.mrf.mxu0
    %v1033 = vadd.f32 0.0, %v1032
    %1034 = vmatprep.mubr.bf16.mxu0 0
    %1035 = vmatmul.mubr.bf16.gmra.mxu0 %v379
    %v1036 = vpop.f32.mrf.mxu0
    %v1037 = vadd.f32 0.0, %v1036
    %v1038 = vpop.f32.mrf.mxu0
    %v1039 = vadd.f32 0.0, %v1038
    %v1040 = vpop.f32.mrf.mxu0
    %v1041 = vadd.f32 0.0, %v1040
    %v1042 = vpop.f32.mrf.mxu0
    %v1043 = vadd.f32 0.0, %v1042
    %1044 = vmatprep.mubr.bf16.mxu0 0
    %1045 = vmatmul.mubr.bf16.gmra.mxu0 %v380
    %v1046 = vpop.f32.mrf.mxu0
    %v1047 = vadd.f32 0.0, %v1046
    %v1048 = vpop.f32.mrf.mxu0
    %v1049 = vadd.f32 0.0, %v1048
    %v1050 = vpop.f32.mrf.mxu0
    %v1051 = vadd.f32 0.0, %v1050
    %v1052 = vpop.f32.mrf.mxu0
    %v1053 = vadd.f32 0.0, %v1052
    %1054 = vdwg.mxu0
    %1055 = vmatprep.subr.bf16.mxu0 %v753
    %1056 = vmatpush1.bf16.msra.mxu0 %v752
    %1057 = vmatprep.subr.bf16.mxu0 %v744
    %1058 = vmatpush1.bf16.msra.mxu0 %v743
    %1059 = vmatprep.subr.bf16.mxu0 %v735
    %1060 = vmatpush1.bf16.msra.mxu0 %v734
    %1061 = vmatprep.subr.bf16.mxu0 %v726
    %1062 = vmatpush1.bf16.msra.mxu0 %v725
    %1063 = vmatprep.subr.bf16.mxu0 %v717
    %1064 = vmatpush1.bf16.msra.mxu0 %v716
    %1065 = vmatprep.subr.bf16.mxu0 %v708
    %1066 = vmatpush1.bf16.msra.mxu0 %v707
    %1067 = vmatprep.subr.bf16.mxu0 %v699
    %1068 = vmatpush1.bf16.msra.mxu0 %v698
    %1069 = vmatprep.subr.bf16.mxu0 %v690
    %1070 = vmatpush1.bf16.msra.mxu0 %v689
    %1071 = vmatprep.subr.bf16.mxu0 0
    %1072 = vmatpush2.bf16.msra.mxu0 0
    %1073 = vmatprep.subr.bf16.mxu0 0
    %1074 = vmatpush2.bf16.msra.mxu0 0
    %1075 = vmatprep.subr.bf16.mxu0 0
    %1076 = vmatpush2.bf16.msra.mxu0 0
    %1077 = vmatprep.subr.bf16.mxu0 0
    %1078 = vmatpush2.bf16.msra.mxu0 0
    %1079 = vmatprep.subr.bf16.mxu0 0
    %1080 = vmatpush2.bf16.msra.mxu0 0
    %1081 = vmatprep.subr.bf16.mxu0 0
    %1082 = vmatpush2.bf16.msra.mxu0 0
    %1083 = vmatprep.subr.bf16.mxu0 0
    %1084 = vmatpush2.bf16.msra.mxu0 0
    %1085 = vmatprep.subr.bf16.mxu0 0
    %1086 = vmatpush2.bf16.msra.mxu0 0
    %1087 = vmatprep.mubr.bf16.mxu0 0
    %1088 = vmatmul.mubr.bf16.gmra.mxu0 %v373
    %v1089 = vpop.f32.mrf.mxu0
    %v1090 = vadd.f32 0.0, %v1089
    %v1091 = vpop.f32.mrf.mxu0
    %v1092 = vadd.f32 0.0, %v1091
    %v1093 = vpop.f32.mrf.mxu0
    %v1094 = vadd.f32 0.0, %v1093
    %v1095 = vpop.f32.mrf.mxu0
    %v1096 = vadd.f32 0.0, %v1095
    %1097 = vmatprep.mubr.bf16.mxu0 0
    %1098 = vmatmul.mubr.bf16.gmra.mxu0 %v374
    %v1099 = vpop.f32.mrf.mxu0
    %v1100 = vadd.f32 0.0, %v1099
    %v1101 = vpop.f32.mrf.mxu0
    %v1102 = vadd.f32 0.0, %v1101
    %v1103 = vpop.f32.mrf.mxu0
    %v1104 = vadd.f32 0.0, %v1103
    %v1105 = vpop.f32.mrf.mxu0
    %v1106 = vadd.f32 0.0, %v1105
    %1107 = vmatprep.mubr.bf16.mxu0 0
    %1108 = vmatmul.mubr.bf16.gmra.mxu0 %v375
    %v1109 = vpop.f32.mrf.mxu0
    %v1110 = vadd.f32 0.0, %v1109
    %v1111 = vpop.f32.mrf.mxu0
    %v1112 = vadd.f32 0.0, %v1111
    %v1113 = vpop.f32.mrf.mxu0
    %v1114 = vadd.f32 0.0, %v1113
    %v1115 = vpop.f32.mrf.mxu0
    %v1116 = vadd.f32 0.0, %v1115
    %1117 = vmatprep.mubr.bf16.mxu0 0
    %1118 = vmatmul.mubr.bf16.gmra.mxu0 %v376
    %v1119 = vpop.f32.mrf.mxu0
    %v1120 = vadd.f32 0.0, %v1119
    %v1121 = vpop.f32.mrf.mxu0
    %v1122 = vadd.f32 0.0, %v1121
    %v1123 = vpop.f32.mrf.mxu0
    %v1124 = vadd.f32 0.0, %v1123
    %v1125 = vpop.f32.mrf.mxu0
    %v1126 = vadd.f32 0.0, %v1125
    %1127 = vmatprep.mubr.bf16.mxu0 0
    %1128 = vmatmul.mubr.bf16.gmra.mxu0 %v377
    %v1129 = vpop.f32.mrf.mxu0
    %v1130 = vadd.f32 0.0, %v1129
    %v1131 = vpop.f32.mrf.mxu0
    %v1132 = vadd.f32 0.0, %v1131
    %v1133 = vpop.f32.mrf.mxu0
    %v1134 = vadd.f32 0.0, %v1133
    %v1135 = vpop.f32.mrf.mxu0
    %v1136 = vadd.f32 0.0, %v1135
    %1137 = vmatprep.mubr.bf16.mxu0 0
    %1138 = vmatmul.mubr.bf16.gmra.mxu0 %v378
    %v1139 = vpop.f32.mrf.mxu0
    %v1140 = vadd.f32 0.0, %v1139
    %v1141 = vpop.f32.mrf.mxu0
    %v1142 = vadd.f32 0.0, %v1141
    %v1143 = vpop.f32.mrf.mxu0
    %v1144 = vadd.f32 0.0, %v1143
    %v1145 = vpop.f32.mrf.mxu0
    %v1146 = vadd.f32 0.0, %v1145
    %1147 = vmatprep.mubr.bf16.mxu0 0
    %1148 = vmatmul.mubr.bf16.gmra.mxu0 %v379
    %v1149 = vpop.f32.mrf.mxu0
    %v1150 = vadd.f32 0.0, %v1149
    %v1151 = vpop.f32.mrf.mxu0
    %v1152 = vadd.f32 0.0, %v1151
    %v1153 = vpop.f32.mrf.mxu0
    %v1154 = vadd.f32 0.0, %v1153
    %v1155 = vpop.f32.mrf.mxu0
    %v1156 = vadd.f32 0.0, %v1155
    %1157 = vmatprep.mubr.bf16.mxu0 0
    %1158 = vmatmul.mubr.bf16.gmra.mxu0 %v380
    %v1159 = vpop.f32.mrf.mxu0
    %v1160 = vadd.f32 0.0, %v1159
    %v1161 = vpop.f32.mrf.mxu0
    %v1162 = vadd.f32 0.0, %v1161
    %v1163 = vpop.f32.mrf.mxu0
    %v1164 = vadd.f32 0.0, %v1163
    %v1165 = vpop.f32.mrf.mxu0
    %v1166 = vadd.f32 0.0, %v1165
    %1167 = vdwg.mxu0
    %1168 = vmatprep.subr.bf16.mxu0 %v755
    %1169 = vmatpush1.bf16.msra.mxu0 %v754
    %1170 = vmatprep.subr.bf16.mxu0 %v746
    %1171 = vmatpush1.bf16.msra.mxu0 %v745
    %1172 = vmatprep.subr.bf16.mxu0 %v737
    %1173 = vmatpush1.bf16.msra.mxu0 %v736
    %1174 = vmatprep.subr.bf16.mxu0 %v728
    %1175 = vmatpush1.bf16.msra.mxu0 %v727
    %1176 = vmatprep.subr.bf16.mxu0 %v719
    %1177 = vmatpush1.bf16.msra.mxu0 %v718
    %1178 = vmatprep.subr.bf16.mxu0 %v710
    %1179 = vmatpush1.bf16.msra.mxu0 %v709
    %1180 = vmatprep.subr.bf16.mxu0 %v701
    %1181 = vmatpush1.bf16.msra.mxu0 %v700
    %1182 = vmatprep.subr.bf16.mxu0 %v692
    %1183 = vmatpush1.bf16.msra.mxu0 %v691
    %1184 = vmatprep.subr.bf16.mxu0 0
    %1185 = vmatpush2.bf16.msra.mxu0 0
    %1186 = vmatprep.subr.bf16.mxu0 0
    %1187 = vmatpush2.bf16.msra.mxu0 0
    %1188 = vmatprep.subr.bf16.mxu0 0
    %1189 = vmatpush2.bf16.msra.mxu0 0
    %1190 = vmatprep.subr.bf16.mxu0 0
    %1191 = vmatpush2.bf16.msra.mxu0 0
    %1192 = vmatprep.subr.bf16.mxu0 0
    %1193 = vmatpush2.bf16.msra.mxu0 0
    %1194 = vmatprep.subr.bf16.mxu0 0
    %1195 = vmatpush2.bf16.msra.mxu0 0
    %1196 = vmatprep.subr.bf16.mxu0 0
    %1197 = vmatpush2.bf16.msra.mxu0 0
    %1198 = vmatprep.subr.bf16.mxu0 0
    %1199 = vmatpush2.bf16.msra.mxu0 0
    %1200 = vmatprep.mubr.bf16.mxu0 0
    %1201 = vmatmul.mubr.bf16.gmra.mxu0 %v373
    %v1202 = vpop.f32.mrf.mxu0
    %v1203 = vadd.f32 0.0, %v1202
    %v1204 = vpop.f32.mrf.mxu0
    %v1205 = vadd.f32 0.0, %v1204
    %v1206 = vpop.f32.mrf.mxu0
    %v1207 = vadd.f32 0.0, %v1206
    %v1208 = vpop.f32.mrf.mxu0
    %v1209 = vadd.f32 0.0, %v1208
    %1210 = vmatprep.mubr.bf16.mxu0 0
    %1211 = vmatmul.mubr.bf16.gmra.mxu0 %v374
    %v1212 = vpop.f32.mrf.mxu0
    %v1213 = vadd.f32 0.0, %v1212
    %v1214 = vpop.f32.mrf.mxu0
    %v1215 = vadd.f32 0.0, %v1214
    %v1216 = vpop.f32.mrf.mxu0
    %v1217 = vadd.f32 0.0, %v1216
    %v1218 = vpop.f32.mrf.mxu0
    %v1219 = vadd.f32 0.0, %v1218
    %1220 = vmatprep.mubr.bf16.mxu0 0
    %1221 = vmatmul.mubr.bf16.gmra.mxu0 %v375
    %v1222 = vpop.f32.mrf.mxu0
    %v1223 = vadd.f32 0.0, %v1222
    %v1224 = vpop.f32.mrf.mxu0
    %v1225 = vadd.f32 0.0, %v1224
    %v1226 = vpop.f32.mrf.mxu0
    %v1227 = vadd.f32 0.0, %v1226
    %v1228 = vpop.f32.mrf.mxu0
    %v1229 = vadd.f32 0.0, %v1228
    %1230 = vmatprep.mubr.bf16.mxu0 0
    %1231 = vmatmul.mubr.bf16.gmra.mxu0 %v376
    %v1232 = vpop.f32.mrf.mxu0
    %v1233 = vadd.f32 0.0, %v1232
    %v1234 = vpop.f32.mrf.mxu0
    %v1235 = vadd.f32 0.0, %v1234
    %v1236 = vpop.f32.mrf.mxu0
    %v1237 = vadd.f32 0.0, %v1236
    %v1238 = vpop.f32.mrf.mxu0
    %v1239 = vadd.f32 0.0, %v1238
    %1240 = vmatprep.mubr.bf16.mxu0 0
    %1241 = vmatmul.mubr.bf16.gmra.mxu0 %v377
    %v1242 = vpop.f32.mrf.mxu0
    %v1243 = vadd.f32 0.0, %v1242
    %v1244 = vpop.f32.mrf.mxu0
    %v1245 = vadd.f32 0.0, %v1244
    %v1246 = vpop.f32.mrf.mxu0
    %v1247 = vadd.f32 0.0, %v1246
    %v1248 = vpop.f32.mrf.mxu0
    %v1249 = vadd.f32 0.0, %v1248
    %1250 = vmatprep.mubr.bf16.mxu0 0
    %1251 = vmatmul.mubr.bf16.gmra.mxu0 %v378
    %v1252 = vpop.f32.mrf.mxu0
    %v1253 = vadd.f32 0.0, %v1252
    %v1254 = vpop.f32.mrf.mxu0
    %v1255 = vadd.f32 0.0, %v1254
    %v1256 = vpop.f32.mrf.mxu0
    %v1257 = vadd.f32 0.0, %v1256
    %v1258 = vpop.f32.mrf.mxu0
    %v1259 = vadd.f32 0.0, %v1258
    %1260 = vmatprep.mubr.bf16.mxu0 0
    %1261 = vmatmul.mubr.bf16.gmra.mxu0 %v379
    %v1262 = vpop.f32.mrf.mxu0
    %v1263 = vadd.f32 0.0, %v1262
    %v1264 = vpop.f32.mrf.mxu0
    %v1265 = vadd.f32 0.0, %v1264
    %v1266 = vpop.f32.mrf.mxu0
    %v1267 = vadd.f32 0.0, %v1266
    %v1268 = vpop.f32.mrf.mxu0
    %v1269 = vadd.f32 0.0, %v1268
    %1270 = vmatprep.mubr.bf16.mxu0 0
    %1271 = vmatmul.mubr.bf16.gmra.mxu0 %v380
    %v1272 = vpop.f32.mrf.mxu0
    %v1273 = vadd.f32 0.0, %v1272
    %v1274 = vpop.f32.mrf.mxu0
    %v1275 = vadd.f32 0.0, %v1274
    %v1276 = vpop.f32.mrf.mxu0
    %v1277 = vadd.f32 0.0, %v1276
    %v1278 = vpop.f32.mrf.mxu0
    %v1279 = vadd.f32 0.0, %v1278
    %1280 = vdwg.mxu0
    %1281 = vmatprep.subr.bf16.mxu0 0
    %1282 = vmatpush1.bf16.msra.mxu0 %v756
    %1283 = vmatprep.subr.bf16.mxu0 0
    %1284 = vmatpush1.bf16.msra.mxu0 %v747
    %1285 = vmatprep.subr.bf16.mxu0 0
    %1286 = vmatpush1.bf16.msra.mxu0 %v738
    %1287 = vmatprep.subr.bf16.mxu0 0
    %1288 = vmatpush1.bf16.msra.mxu0 %v729
    %1289 = vmatprep.subr.bf16.mxu0 0
    %1290 = vmatpush1.bf16.msra.mxu0 %v720
    %1291 = vmatprep.subr.bf16.mxu0 0
    %1292 = vmatpush1.bf16.msra.mxu0 %v711
    %1293 = vmatprep.subr.bf16.mxu0 0
    %1294 = vmatpush1.bf16.msra.mxu0 %v702
    %1295 = vmatprep.subr.bf16.mxu0 0
    %1296 = vmatpush1.bf16.msra.mxu0 %v693
    %1297 = vmatprep.subr.bf16.mxu0 0
    %1298 = vmatpush2.bf16.msra.mxu0 0
    %1299 = vmatprep.subr.bf16.mxu0 0
    %1300 = vmatpush2.bf16.msra.mxu0 0
    %1301 = vmatprep.subr.bf16.mxu0 0
    %1302 = vmatpush2.bf16.msra.mxu0 0
    %1303 = vmatprep.subr.bf16.mxu0 0
    %1304 = vmatpush2.bf16.msra.mxu0 0
    %1305 = vmatprep.subr.bf16.mxu0 0
    %1306 = vmatpush2.bf16.msra.mxu0 0
    %1307 = vmatprep.subr.bf16.mxu0 0
    %1308 = vmatpush2.bf16.msra.mxu0 0
    %1309 = vmatprep.subr.bf16.mxu0 0
    %1310 = vmatpush2.bf16.msra.mxu0 0
    %1311 = vmatprep.subr.bf16.mxu0 0
    %1312 = vmatpush2.bf16.msra.mxu0 0
    %1313 = vmatprep.mubr.bf16.mxu0 0
    %1314 = vmatmul.mubr.bf16.gmra.mxu0 %v373
    %v1315 = vpop.f32.mrf.mxu0
    %v1316 = vadd.f32 0.0, %v1315
    %v1317 = vpop.f32.mrf.mxu0
    %v1318 = vpop.f32.mrf.mxu0
    %v1319 = vadd.f32 0.0, %v1318
    %v1320 = vpop.f32.mrf.mxu0
    %1321 = vmatprep.mubr.bf16.mxu0 0
    %1322 = vmatmul.mubr.bf16.gmra.mxu0 %v374
    %v1323 = vpop.f32.mrf.mxu0
    %v1324 = vadd.f32 0.0, %v1323
    %v1325 = vpop.f32.mrf.mxu0
    %v1326 = vpop.f32.mrf.mxu0
    %v1327 = vadd.f32 0.0, %v1326
    %v1328 = vpop.f32.mrf.mxu0
    %1329 = vmatprep.mubr.bf16.mxu0 0
    %1330 = vmatmul.mubr.bf16.gmra.mxu0 %v375
    %v1331 = vpop.f32.mrf.mxu0
    %v1332 = vadd.f32 0.0, %v1331
    %v1333 = vpop.f32.mrf.mxu0
    %v1334 = vpop.f32.mrf.mxu0
    %v1335 = vadd.f32 0.0, %v1334
    %v1336 = vpop.f32.mrf.mxu0
    %1337 = vmatprep.mubr.bf16.mxu0 0
    %1338 = vmatmul.mubr.bf16.gmra.mxu0 %v376
    %v1339 = vpop.f32.mrf.mxu0
    %v1340 = vadd.f32 0.0, %v1339
    %v1341 = vpop.f32.mrf.mxu0
    %v1342 = vpop.f32.mrf.mxu0
    %v1343 = vadd.f32 0.0, %v1342
    %v1344 = vpop.f32.mrf.mxu0
    %1345 = vmatprep.mubr.bf16.mxu0 0
    %1346 = vmatmul.mubr.bf16.gmra.mxu0 %v377
    %v1347 = vpop.f32.mrf.mxu0
    %v1348 = vadd.f32 0.0, %v1347
    %v1349 = vpop.f32.mrf.mxu0
    %v1350 = vpop.f32.mrf.mxu0
    %v1351 = vadd.f32 0.0, %v1350
    %v1352 = vpop.f32.mrf.mxu0
    %1353 = vmatprep.mubr.bf16.mxu0 0
    %1354 = vmatmul.mubr.bf16.gmra.mxu0 %v378
    %v1355 = vpop.f32.mrf.mxu0
    %v1356 = vadd.f32 0.0, %v1355
    %v1357 = vpop.f32.mrf.mxu0
    %v1358 = vpop.f32.mrf.mxu0
    %v1359 = vadd.f32 0.0, %v1358
    %v1360 = vpop.f32.mrf.mxu0
    %1361 = vmatprep.mubr.bf16.mxu0 0
    %1362 = vmatmul.mubr.bf16.gmra.mxu0 %v379
    %v1363 = vpop.f32.mrf.mxu0
    %v1364 = vadd.f32 0.0, %v1363
    %v1365 = vpop.f32.mrf.mxu0
    %v1366 = vpop.f32.mrf.mxu0
    %v1367 = vadd.f32 0.0, %v1366
    %v1368 = vpop.f32.mrf.mxu0
    %1369 = vmatprep.mubr.bf16.mxu0 0
    %1370 = vmatmul.mubr.bf16.gmra.mxu0 %v380
    %v1371 = vpop.f32.mrf.mxu0
    %v1372 = vadd.f32 0.0, %v1371
    %v1373 = vpop.f32.mrf.mxu0
    %v1374 = vpop.f32.mrf.mxu0
    %v1375 = vadd.f32 0.0, %v1374
    %v1376 = vpop.f32.mrf.mxu0
    %1377 = vdwg.mxu0
    %v1378 = vld [vmem:[#allocation2] sm:$0xff]
    %v1379 = vld [vmem:[#allocation2 + $0x8] sm:$0xff]
    %v1380 = vld [vmem:[#allocation2 + $0x10] sm:$0xff]
    %v1381 = vld [vmem:[#allocation2 + $0x18] sm:$0xff]
    %s1382 = scalar_lea.vmem [#allocation2], 32
    %v1383 = vld [vmem:[%s1382] sm:$0xff]
    %v1384 = vld [vmem:[%s1382 + $0x8] sm:$0xff]
    %v1385 = vld [vmem:[%s1382 + $0x10] sm:$0xff]
    %v1386 = vld [vmem:[%s1382 + $0x18] sm:$0xff]
    %1387 = vmatprep.subr.mxu0 0.0
    %1388 = vmatpush1.msra.mxu0 %v940
    %1389 = vmatprep.subr.mxu0 0.0
    %1390 = vmatpush1.msra.mxu0 %v936
    %1391 = vmatprep.subr.mxu0 0.0
    %1392 = vmatpush1.msra.mxu0 %v930
    %1393 = vmatprep.subr.mxu0 0.0
    %1394 = vmatpush1.msra.mxu0 %v926
    %1395 = vmatprep.subr.mxu0 0.0
    %1396 = vmatpush1.msra.mxu0 %v920
    %1397 = vmatprep.subr.mxu0 0.0
    %1398 = vmatpush1.msra.mxu0 %v916
    %1399 = vmatprep.subr.mxu0 0.0
    %1400 = vmatpush1.msra.mxu0 %v910
    %1401 = vmatprep.subr.mxu0 0.0
    %1402 = vmatpush1.msra.mxu0 %v906
    %1403 = vmatprep.subr.mxu0 0.0
    %1404 = vmatpush1.msra.mxu0 %v900
    %1405 = vmatprep.subr.mxu0 0.0
    %1406 = vmatpush1.msra.mxu0 %v896
    %1407 = vmatprep.subr.mxu0 0.0
    %1408 = vmatpush1.msra.mxu0 %v890
    %1409 = vmatprep.subr.mxu0 0.0
    %1410 = vmatpush1.msra.mxu0 %v886
    %1411 = vmatprep.subr.mxu0 0.0
    %1412 = vmatpush1.msra.mxu0 %v880
    %1413 = vmatprep.subr.mxu0 0.0
    %1414 = vmatpush1.msra.mxu0 %v876
    %1415 = vmatprep.subr.mxu0 0.0
    %1416 = vmatpush1.msra.mxu0 %v870
    %1417 = vmatprep.subr.mxu0 0.0
    %1418 = vmatpush1.msra.mxu0 %v866
    %1419 = vmatprep.subr.mxu0 0.0
    %1420 = vmatpush2.msra.mxu0 0.0
    %1421 = vmatprep.subr.mxu0 0.0
    %1422 = vmatpush2.msra.mxu0 0.0
    %1423 = vmatprep.subr.mxu0 0.0
    %1424 = vmatpush2.msra.mxu0 0.0
    %1425 = vmatprep.subr.mxu0 0.0
    %1426 = vmatpush2.msra.mxu0 0.0
    %1427 = vmatprep.subr.mxu0 0.0
    %1428 = vmatpush2.msra.mxu0 0.0
    %1429 = vmatprep.subr.mxu0 0.0
    %1430 = vmatpush2.msra.mxu0 0.0
    %1431 = vmatprep.subr.mxu0 0.0
    %1432 = vmatpush2.msra.mxu0 0.0
    %1433 = vmatprep.subr.mxu0 0.0
    %1434 = vmatpush2.msra.mxu0 0.0
    %1435 = vmatprep.subr.mxu0 0.0
    %1436 = vmatpush2.msra.mxu0 0.0
    %1437 = vmatprep.subr.mxu0 0.0
    %1438 = vmatpush2.msra.mxu0 0.0
    %1439 = vmatprep.subr.mxu0 0.0
    %1440 = vmatpush2.msra.mxu0 0.0
    %1441 = vmatprep.subr.mxu0 0.0
    %1442 = vmatpush2.msra.mxu0 0.0
    %1443 = vmatprep.subr.mxu0 0.0
    %1444 = vmatpush2.msra.mxu0 0.0
    %1445 = vmatprep.subr.mxu0 0.0
    %1446 = vmatpush2.msra.mxu0 0.0
    %1447 = vmatprep.subr.mxu0 0.0
    %1448 = vmatpush2.msra.mxu0 0.0
    %1449 = vmatprep.subr.mxu0 0.0
    %1450 = vmatpush2.msra.mxu0 0.0
    %1451 = vmatprep.mubr.f32.mxu0 0.0
    %1452 = vmatmul.mubr.f32.gmra.mxu0 %v1383
    %v1453 = vpop.f32.mrf.mxu0
    %v1454 = vadd.f32 0.0, %v1453
    %v1455 = vpop.f32.mrf.mxu0
    %1456 = vmatprep.mubr.f32.mxu0 0.0
    %1457 = vmatmul.mubr.f32.gmra.mxu0 %v1384
    %v1458 = vpop.f32.mrf.mxu0
    %v1459 = vadd.f32 0.0, %v1458
    %v1460 = vpop.f32.mrf.mxu0
    %1461 = vmatprep.mubr.f32.mxu0 0.0
    %1462 = vmatmul.mubr.f32.gmra.mxu0 %v1385
    %v1463 = vpop.f32.mrf.mxu0
    %v1464 = vadd.f32 0.0, %v1463
    %v1465 = vpop.f32.mrf.mxu0
    %1466 = vmatprep.mubr.f32.mxu0 0.0
    %1467 = vmatmul.mubr.f32.gmra.mxu0 %v1386
    %v1468 = vpop.f32.mrf.mxu0
    %v1469 = vadd.f32 0.0, %v1468
    %v1470 = vpop.f32.mrf.mxu0
    %1471 = vdwg.mxu0
    %1472 = vmatprep.subr.mxu0 0.0
    %1473 = vmatpush1.msra.mxu0 %v938
    %1474 = vmatprep.subr.mxu0 0.0
    %1475 = vmatpush1.msra.mxu0 %v934
    %1476 = vmatprep.subr.mxu0 0.0
    %1477 = vmatpush1.msra.mxu0 %v928
    %1478 = vmatprep.subr.mxu0 0.0
    %1479 = vmatpush1.msra.mxu0 %v924
    %1480 = vmatprep.subr.mxu0 0.0
    %1481 = vmatpush1.msra.mxu0 %v918
    %1482 = vmatprep.subr.mxu0 0.0
    %1483 = vmatpush1.msra.mxu0 %v914
    %1484 = vmatprep.subr.mxu0 0.0
    %1485 = vmatpush1.msra.mxu0 %v908
    %1486 = vmatprep.subr.mxu0 0.0
    %1487 = vmatpush1.msra.mxu0 %v904
    %1488 = vmatprep.subr.mxu0 0.0
    %1489 = vmatpush1.msra.mxu0 %v898
    %1490 = vmatprep.subr.mxu0 0.0
    %1491 = vmatpush1.msra.mxu0 %v894
    %1492 = vmatprep.subr.mxu0 0.0
    %1493 = vmatpush1.msra.mxu0 %v888
    %1494 = vmatprep.subr.mxu0 0.0
    %1495 = vmatpush1.msra.mxu0 %v884
    %1496 = vmatprep.subr.mxu0 0.0
    %1497 = vmatpush1.msra.mxu0 %v878
    %1498 = vmatprep.subr.mxu0 0.0
    %1499 = vmatpush1.msra.mxu0 %v874
    %1500 = vmatprep.subr.mxu0 0.0
    %1501 = vmatpush1.msra.mxu0 %v868
    %1502 = vmatprep.subr.mxu0 0.0
    %1503 = vmatpush1.msra.mxu0 %v864
    %1504 = vmatprep.subr.mxu0 0.0
    %1505 = vmatpush2.msra.mxu0 0.0
    %1506 = vmatprep.subr.mxu0 0.0
    %1507 = vmatpush2.msra.mxu0 0.0
    %1508 = vmatprep.subr.mxu0 0.0
    %1509 = vmatpush2.msra.mxu0 0.0
    %1510 = vmatprep.subr.mxu0 0.0
    %1511 = vmatpush2.msra.mxu0 0.0
    %1512 = vmatprep.subr.mxu0 0.0
    %1513 = vmatpush2.msra.mxu0 0.0
    %1514 = vmatprep.subr.mxu0 0.0
    %1515 = vmatpush2.msra.mxu0 0.0
    %1516 = vmatprep.subr.mxu0 0.0
    %1517 = vmatpush2.msra.mxu0 0.0
    %1518 = vmatprep.subr.mxu0 0.0
    %1519 = vmatpush2.msra.mxu0 0.0
    %1520 = vmatprep.subr.mxu0 0.0
    %1521 = vmatpush2.msra.mxu0 0.0
    %1522 = vmatprep.subr.mxu0 0.0
    %1523 = vmatpush2.msra.mxu0 0.0
    %1524 = vmatprep.subr.mxu0 0.0
    %1525 = vmatpush2.msra.mxu0 0.0
    %1526 = vmatprep.subr.mxu0 0.0
    %1527 = vmatpush2.msra.mxu0 0.0
    %1528 = vmatprep.subr.mxu0 0.0
    %1529 = vmatpush2.msra.mxu0 0.0
    %1530 = vmatprep.subr.mxu0 0.0
    %1531 = vmatpush2.msra.mxu0 0.0
    %1532 = vmatprep.subr.mxu0 0.0
    %1533 = vmatpush2.msra.mxu0 0.0
    %1534 = vmatprep.subr.mxu0 0.0
    %1535 = vmatpush2.msra.mxu0 0.0
    %1536 = vmatprep.mubr.f32.mxu0 0.0
    %1537 = vmatmul.mubr.f32.gmra.mxu0 %v1378
    %v1538 = vpop.f32.mrf.mxu0
    %v1539 = vadd.f32 %v1454, %v1538
    %v1540 = vpop.f32.mrf.mxu0
    %1541 = vmatprep.mubr.f32.mxu0 0.0
    %1542 = vmatmul.mubr.f32.gmra.mxu0 %v1379
    %v1543 = vpop.f32.mrf.mxu0
    %v1544 = vadd.f32 %v1459, %v1543
    %v1545 = vpop.f32.mrf.mxu0
    %1546 = vmatprep.mubr.f32.mxu0 0.0
    %1547 = vmatmul.mubr.f32.gmra.mxu0 %v1380
    %v1548 = vpop.f32.mrf.mxu0
    %v1549 = vadd.f32 %v1464, %v1548
    %v1550 = vpop.f32.mrf.mxu0
    %1551 = vmatprep.mubr.f32.mxu0 0.0
    %1552 = vmatmul.mubr.f32.gmra.mxu0 %v1381
    %v1553 = vpop.f32.mrf.mxu0
    %v1554 = vadd.f32 %v1469, %v1553
    %v1555 = vpop.f32.mrf.mxu0
    %1556 = vdwg.mxu0
    %s1557 = scalar_lea.vmem [#allocation2], 64
    %v1558 = vld [vmem:[%s1557] sm:$0xff]
    %v1559 = vld [vmem:[%s1557 + $0x8] sm:$0xff]
    %v1560 = vld [vmem:[%s1557 + $0x10] sm:$0xff]
    %v1561 = vld [vmem:[%s1557 + $0x18] sm:$0xff]
    %1562 = vmatprep.subr.mxu0 0.0
    %1563 = vmatpush1.msra.mxu0 %v1051
    %1564 = vmatprep.subr.mxu0 0.0
    %1565 = vmatpush1.msra.mxu0 %v1047
    %1566 = vmatprep.subr.mxu0 0.0
    %1567 = vmatpush1.msra.mxu0 %v1041
    %1568 = vmatprep.subr.mxu0 0.0
    %1569 = vmatpush1.msra.mxu0 %v1037
    %1570 = vmatprep.subr.mxu0 0.0
    %1571 = vmatpush1.msra.mxu0 %v1031
    %1572 = vmatprep.subr.mxu0 0.0
    %1573 = vmatpush1.msra.mxu0 %v1027
    %1574 = vmatprep.subr.mxu0 0.0
    %1575 = vmatpush1.msra.mxu0 %v1021
    %1576 = vmatprep.subr.mxu0 0.0
    %1577 = vmatpush1.msra.mxu0 %v1017
    %1578 = vmatprep.subr.mxu0 0.0
    %1579 = vmatpush1.msra.mxu0 %v1011
    %1580 = vmatprep.subr.mxu0 0.0
    %1581 = vmatpush1.msra.mxu0 %v1007
    %1582 = vmatprep.subr.mxu0 0.0
    %1583 = vmatpush1.msra.mxu0 %v1001
    %1584 = vmatprep.subr.mxu0 0.0
    %1585 = vmatpush1.msra.mxu0 %v997
    %1586 = vmatprep.subr.mxu0 0.0
    %1587 = vmatpush1.msra.mxu0 %v991
    %1588 = vmatprep.subr.mxu0 0.0
    %1589 = vmatpush1.msra.mxu0 %v987
    %1590 = vmatprep.subr.mxu0 0.0
    %1591 = vmatpush1.msra.mxu0 %v981
    %1592 = vmatprep.subr.mxu0 0.0
    %1593 = vmatpush1.msra.mxu0 %v977
    %1594 = vmatprep.subr.mxu0 0.0
    %1595 = vmatpush2.msra.mxu0 0.0
    %1596 = vmatprep.subr.mxu0 0.0
    %1597 = vmatpush2.msra.mxu0 0.0
    %1598 = vmatprep.subr.mxu0 0.0
    %1599 = vmatpush2.msra.mxu0 0.0
    %1600 = vmatprep.subr.mxu0 0.0
    %1601 = vmatpush2.msra.mxu0 0.0
    %1602 = vmatprep.subr.mxu0 0.0
    %1603 = vmatpush2.msra.mxu0 0.0
    %1604 = vmatprep.subr.mxu0 0.0
    %1605 = vmatpush2.msra.mxu0 0.0
    %1606 = vmatprep.subr.mxu0 0.0
    %1607 = vmatpush2.msra.mxu0 0.0
    %1608 = vmatprep.subr.mxu0 0.0
    %1609 = vmatpush2.msra.mxu0 0.0
    %1610 = vmatprep.subr.mxu0 0.0
    %1611 = vmatpush2.msra.mxu0 0.0
    %1612 = vmatprep.subr.mxu0 0.0
    %1613 = vmatpush2.msra.mxu0 0.0
    %1614 = vmatprep.subr.mxu0 0.0
    %1615 = vmatpush2.msra.mxu0 0.0
    %1616 = vmatprep.subr.mxu0 0.0
    %1617 = vmatpush2.msra.mxu0 0.0
    %1618 = vmatprep.subr.mxu0 0.0
    %1619 = vmatpush2.msra.mxu0 0.0
    %1620 = vmatprep.subr.mxu0 0.0
    %1621 = vmatpush2.msra.mxu0 0.0
    %1622 = vmatprep.subr.mxu0 0.0
    %1623 = vmatpush2.msra.mxu0 0.0
    %1624 = vmatprep.subr.mxu0 0.0
    %1625 = vmatpush2.msra.mxu0 0.0
    %1626 = vmatprep.mubr.f32.mxu0 0.0
    %1627 = vmatmul.mubr.f32.gmra.mxu0 %v1558
    %v1628 = vpop.f32.mrf.mxu0
    %v1629 = vadd.f32 0.0, %v1628
    %v1630 = vpop.f32.mrf.mxu0
    %1631 = vmatprep.mubr.f32.mxu0 0.0
    %1632 = vmatmul.mubr.f32.gmra.mxu0 %v1559
    %v1633 = vpop.f32.mrf.mxu0
    %v1634 = vadd.f32 0.0, %v1633
    %v1635 = vpop.f32.mrf.mxu0
    %1636 = vmatprep.mubr.f32.mxu0 0.0
    %1637 = vmatmul.mubr.f32.gmra.mxu0 %v1560
    %v1638 = vpop.f32.mrf.mxu0
    %v1639 = vadd.f32 0.0, %v1638
    %v1640 = vpop.f32.mrf.mxu0
    %1641 = vmatprep.mubr.f32.mxu0 0.0
    %1642 = vmatmul.mubr.f32.gmra.mxu0 %v1561
    %v1643 = vpop.f32.mrf.mxu0
    %v1644 = vadd.f32 0.0, %v1643
    %v1645 = vpop.f32.mrf.mxu0
    %1646 = vdwg.mxu0
    %v1647 = vadd.f32 %v1539, %v1629
    %v1648 = vadd.f32 %v1544, %v1634
    %v1649 = vadd.f32 %v1549, %v1639
    %v1650 = vadd.f32 %v1554, %v1644
    %s1651 = scalar_lea.vmem [#allocation2], 96
    %v1652 = vld [vmem:[%s1651] sm:$0xff]
    %v1653 = vld [vmem:[%s1651 + $0x8] sm:$0xff]
    %v1654 = vld [vmem:[%s1651 + $0x10] sm:$0xff]
    %v1655 = vld [vmem:[%s1651 + $0x18] sm:$0xff]
    %1656 = vmatprep.subr.mxu0 0.0
    %1657 = vmatpush1.msra.mxu0 %v1053
    %1658 = vmatprep.subr.mxu0 0.0
    %1659 = vmatpush1.msra.mxu0 %v1049
    %1660 = vmatprep.subr.mxu0 0.0
    %1661 = vmatpush1.msra.mxu0 %v1043
    %1662 = vmatprep.subr.mxu0 0.0
    %1663 = vmatpush1.msra.mxu0 %v1039
    %1664 = vmatprep.subr.mxu0 0.0
    %1665 = vmatpush1.msra.mxu0 %v1033
    %1666 = vmatprep.subr.mxu0 0.0
    %1667 = vmatpush1.msra.mxu0 %v1029
    %1668 = vmatprep.subr.mxu0 0.0
    %1669 = vmatpush1.msra.mxu0 %v1023
    %1670 = vmatprep.subr.mxu0 0.0
    %1671 = vmatpush1.msra.mxu0 %v1019
    %1672 = vmatprep.subr.mxu0 0.0
    %1673 = vmatpush1.msra.mxu0 %v1013
    %1674 = vmatprep.subr.mxu0 0.0
    %1675 = vmatpush1.msra.mxu0 %v1009
    %1676 = vmatprep.subr.mxu0 0.0
    %1677 = vmatpush1.msra.mxu0 %v1003
    %1678 = vmatprep.subr.mxu0 0.0
    %1679 = vmatpush1.msra.mxu0 %v999
    %1680 = vmatprep.subr.mxu0 0.0
    %1681 = vmatpush1.msra.mxu0 %v993
    %1682 = vmatprep.subr.mxu0 0.0
    %1683 = vmatpush1.msra.mxu0 %v989
    %1684 = vmatprep.subr.mxu0 0.0
    %1685 = vmatpush1.msra.mxu0 %v983
    %1686 = vmatprep.subr.mxu0 0.0
    %1687 = vmatpush1.msra.mxu0 %v979
    %1688 = vmatprep.subr.mxu0 0.0
    %1689 = vmatpush2.msra.mxu0 0.0
    %1690 = vmatprep.subr.mxu0 0.0
    %1691 = vmatpush2.msra.mxu0 0.0
    %1692 = vmatprep.subr.mxu0 0.0
    %1693 = vmatpush2.msra.mxu0 0.0
    %1694 = vmatprep.subr.mxu0 0.0
    %1695 = vmatpush2.msra.mxu0 0.0
    %1696 = vmatprep.subr.mxu0 0.0
    %1697 = vmatpush2.msra.mxu0 0.0
    %1698 = vmatprep.subr.mxu0 0.0
    %1699 = vmatpush2.msra.mxu0 0.0
    %1700 = vmatprep.subr.mxu0 0.0
    %1701 = vmatpush2.msra.mxu0 0.0
    %1702 = vmatprep.subr.mxu0 0.0
    %1703 = vmatpush2.msra.mxu0 0.0
    %1704 = vmatprep.subr.mxu0 0.0
    %1705 = vmatpush2.msra.mxu0 0.0
    %1706 = vmatprep.subr.mxu0 0.0
    %1707 = vmatpush2.msra.mxu0 0.0
    %1708 = vmatprep.subr.mxu0 0.0
    %1709 = vmatpush2.msra.mxu0 0.0
    %1710 = vmatprep.subr.mxu0 0.0
    %1711 = vmatpush2.msra.mxu0 0.0
    %1712 = vmatprep.subr.mxu0 0.0
    %1713 = vmatpush2.msra.mxu0 0.0
    %1714 = vmatprep.subr.mxu0 0.0
    %1715 = vmatpush2.msra.mxu0 0.0
    %1716 = vmatprep.subr.mxu0 0.0
    %1717 = vmatpush2.msra.mxu0 0.0
    %1718 = vmatprep.subr.mxu0 0.0
    %1719 = vmatpush2.msra.mxu0 0.0
    %1720 = vmatprep.mubr.f32.mxu0 0.0
    %1721 = vmatmul.mubr.f32.gmra.mxu0 %v1652
    %v1722 = vpop.f32.mrf.mxu0
    %v1723 = vadd.f32 0.0, %v1722
    %v1724 = vpop.f32.mrf.mxu0
    %1725 = vmatprep.mubr.f32.mxu0 0.0
    %1726 = vmatmul.mubr.f32.gmra.mxu0 %v1653
    %v1727 = vpop.f32.mrf.mxu0
    %v1728 = vadd.f32 0.0, %v1727
    %v1729 = vpop.f32.mrf.mxu0
    %1730 = vmatprep.mubr.f32.mxu0 0.0
    %1731 = vmatmul.mubr.f32.gmra.mxu0 %v1654
    %v1732 = vpop.f32.mrf.mxu0
    %v1733 = vadd.f32 0.0, %v1732
    %v1734 = vpop.f32.mrf.mxu0
    %1735 = vmatprep.mubr.f32.mxu0 0.0
    %1736 = vmatmul.mubr.f32.gmra.mxu0 %v1655
    %v1737 = vpop.f32.mrf.mxu0
    %v1738 = vadd.f32 0.0, %v1737
    %v1739 = vpop.f32.mrf.mxu0
    %1740 = vdwg.mxu0
    %v1741 = vadd.f32 %v1647, %v1723
    %v1742 = vadd.f32 %v1648, %v1728
    %v1743 = vadd.f32 %v1649, %v1733
    %v1744 = vadd.f32 %v1650, %v1738
    %s1745 = scalar_lea.vmem [#allocation2], 128
    %v1746 = vld [vmem:[%s1745] sm:$0xff]
    %v1747 = vld [vmem:[%s1745 + $0x8] sm:$0xff]
    %v1748 = vld [vmem:[%s1745 + $0x10] sm:$0xff]
    %v1749 = vld [vmem:[%s1745 + $0x18] sm:$0xff]
    %1750 = vmatprep.subr.mxu0 0.0
    %1751 = vmatpush1.msra.mxu0 %v1164
    %1752 = vmatprep.subr.mxu0 0.0
    %1753 = vmatpush1.msra.mxu0 %v1160
    %1754 = vmatprep.subr.mxu0 0.0
    %1755 = vmatpush1.msra.mxu0 %v1154
    %1756 = vmatprep.subr.mxu0 0.0
    %1757 = vmatpush1.msra.mxu0 %v1150
    %1758 = vmatprep.subr.mxu0 0.0
    %1759 = vmatpush1.msra.mxu0 %v1144
    %1760 = vmatprep.subr.mxu0 0.0
    %1761 = vmatpush1.msra.mxu0 %v1140
    %1762 = vmatprep.subr.mxu0 0.0
    %1763 = vmatpush1.msra.mxu0 %v1134
    %1764 = vmatprep.subr.mxu0 0.0
    %1765 = vmatpush1.msra.mxu0 %v1130
    %1766 = vmatprep.subr.mxu0 0.0
    %1767 = vmatpush1.msra.mxu0 %v1124
    %1768 = vmatprep.subr.mxu0 0.0
    %1769 = vmatpush1.msra.mxu0 %v1120
    %1770 = vmatprep.subr.mxu0 0.0
    %1771 = vmatpush1.msra.mxu0 %v1114
    %1772 = vmatprep.subr.mxu0 0.0
    %1773 = vmatpush1.msra.mxu0 %v1110
    %1774 = vmatprep.subr.mxu0 0.0
    %1775 = vmatpush1.msra.mxu0 %v1104
    %1776 = vmatprep.subr.mxu0 0.0
    %1777 = vmatpush1.msra.mxu0 %v1100
    %1778 = vmatprep.subr.mxu0 0.0
    %1779 = vmatpush1.msra.mxu0 %v1094
    %1780 = vmatprep.subr.mxu0 0.0
    %1781 = vmatpush1.msra.mxu0 %v1090
    %1782 = vmatprep.subr.mxu0 0.0
    %1783 = vmatpush2.msra.mxu0 0.0
    %1784 = vmatprep.subr.mxu0 0.0
    %1785 = vmatpush2.msra.mxu0 0.0
    %1786 = vmatprep.subr.mxu0 0.0
    %1787 = vmatpush2.msra.mxu0 0.0
    %1788 = vmatprep.subr.mxu0 0.0
    %1789 = vmatpush2.msra.mxu0 0.0
    %1790 = vmatprep.subr.mxu0 0.0
    %1791 = vmatpush2.msra.mxu0 0.0
    %1792 = vmatprep.subr.mxu0 0.0
    %1793 = vmatpush2.msra.mxu0 0.0
    %1794 = vmatprep.subr.mxu0 0.0
    %1795 = vmatpush2.msra.mxu0 0.0
    %1796 = vmatprep.subr.mxu0 0.0
    %1797 = vmatpush2.msra.mxu0 0.0
    %1798 = vmatprep.subr.mxu0 0.0
    %1799 = vmatpush2.msra.mxu0 0.0
    %1800 = vmatprep.subr.mxu0 0.0
    %1801 = vmatpush2.msra.mxu0 0.0
    %1802 = vmatprep.subr.mxu0 0.0
    %1803 = vmatpush2.msra.mxu0 0.0
    %1804 = vmatprep.subr.mxu0 0.0
    %1805 = vmatpush2.msra.mxu0 0.0
    %1806 = vmatprep.subr.mxu0 0.0
    %1807 = vmatpush2.msra.mxu0 0.0
    %1808 = vmatprep.subr.mxu0 0.0
    %1809 = vmatpush2.msra.mxu0 0.0
    %1810 = vmatprep.subr.mxu0 0.0
    %1811 = vmatpush2.msra.mxu0 0.0
    %1812 = vmatprep.subr.mxu0 0.0
    %1813 = vmatpush2.msra.mxu0 0.0
    %1814 = vmatprep.mubr.f32.mxu0 0.0
    %1815 = vmatmul.mubr.f32.gmra.mxu0 %v1746
    %v1816 = vpop.f32.mrf.mxu0
    %v1817 = vadd.f32 0.0, %v1816
    %v1818 = vpop.f32.mrf.mxu0
    %1819 = vmatprep.mubr.f32.mxu0 0.0
    %1820 = vmatmul.mubr.f32.gmra.mxu0 %v1747
    %v1821 = vpop.f32.mrf.mxu0
    %v1822 = vadd.f32 0.0, %v1821
    %v1823 = vpop.f32.mrf.mxu0
    %1824 = vmatprep.mubr.f32.mxu0 0.0
    %1825 = vmatmul.mubr.f32.gmra.mxu0 %v1748
    %v1826 = vpop.f32.mrf.mxu0
    %v1827 = vadd.f32 0.0, %v1826
    %v1828 = vpop.f32.mrf.mxu0
    %1829 = vmatprep.mubr.f32.mxu0 0.0
    %1830 = vmatmul.mubr.f32.gmra.mxu0 %v1749
    %v1831 = vpop.f32.mrf.mxu0
    %v1832 = vadd.f32 0.0, %v1831
    %v1833 = vpop.f32.mrf.mxu0
    %1834 = vdwg.mxu0
    %v1835 = vadd.f32 %v1741, %v1817
    %v1836 = vadd.f32 %v1742, %v1822
    %v1837 = vadd.f32 %v1743, %v1827
    %v1838 = vadd.f32 %v1744, %v1832
    %s1839 = scalar_lea.vmem [#allocation2], 160
    %v1840 = vld [vmem:[%s1839] sm:$0xff]
    %v1841 = vld [vmem:[%s1839 + $0x8] sm:$0xff]
    %v1842 = vld [vmem:[%s1839 + $0x10] sm:$0xff]
    %v1843 = vld [vmem:[%s1839 + $0x18] sm:$0xff]
    %1844 = vmatprep.subr.mxu0 0.0
    %1845 = vmatpush1.msra.mxu0 %v1166
    %1846 = vmatprep.subr.mxu0 0.0
    %1847 = vmatpush1.msra.mxu0 %v1162
    %1848 = vmatprep.subr.mxu0 0.0
    %1849 = vmatpush1.msra.mxu0 %v1156
    %1850 = vmatprep.subr.mxu0 0.0
    %1851 = vmatpush1.msra.mxu0 %v1152
    %1852 = vmatprep.subr.mxu0 0.0
    %1853 = vmatpush1.msra.mxu0 %v1146
    %1854 = vmatprep.subr.mxu0 0.0
    %1855 = vmatpush1.msra.mxu0 %v1142
    %1856 = vmatprep.subr.mxu0 0.0
    %1857 = vmatpush1.msra.mxu0 %v1136
    %1858 = vmatprep.subr.mxu0 0.0
    %1859 = vmatpush1.msra.mxu0 %v1132
    %1860 = vmatprep.subr.mxu0 0.0
    %1861 = vmatpush1.msra.mxu0 %v1126
    %1862 = vmatprep.subr.mxu0 0.0
    %1863 = vmatpush1.msra.mxu0 %v1122
    %1864 = vmatprep.subr.mxu0 0.0
    %1865 = vmatpush1.msra.mxu0 %v1116
    %1866 = vmatprep.subr.mxu0 0.0
    %1867 = vmatpush1.msra.mxu0 %v1112
    %1868 = vmatprep.subr.mxu0 0.0
    %1869 = vmatpush1.msra.mxu0 %v1106
    %1870 = vmatprep.subr.mxu0 0.0
    %1871 = vmatpush1.msra.mxu0 %v1102
    %1872 = vmatprep.subr.mxu0 0.0
    %1873 = vmatpush1.msra.mxu0 %v1096
    %1874 = vmatprep.subr.mxu0 0.0
    %1875 = vmatpush1.msra.mxu0 %v1092
    %1876 = vmatprep.subr.mxu0 0.0
    %1877 = vmatpush2.msra.mxu0 0.0
    %1878 = vmatprep.subr.mxu0 0.0
    %1879 = vmatpush2.msra.mxu0 0.0
    %1880 = vmatprep.subr.mxu0 0.0
    %1881 = vmatpush2.msra.mxu0 0.0
    %1882 = vmatprep.subr.mxu0 0.0
    %1883 = vmatpush2.msra.mxu0 0.0
    %1884 = vmatprep.subr.mxu0 0.0
    %1885 = vmatpush2.msra.mxu0 0.0
    %1886 = vmatprep.subr.mxu0 0.0
    %1887 = vmatpush2.msra.mxu0 0.0
    %1888 = vmatprep.subr.mxu0 0.0
    %1889 = vmatpush2.msra.mxu0 0.0
    %1890 = vmatprep.subr.mxu0 0.0
    %1891 = vmatpush2.msra.mxu0 0.0
    %1892 = vmatprep.subr.mxu0 0.0
    %1893 = vmatpush2.msra.mxu0 0.0
    %1894 = vmatprep.subr.mxu0 0.0
    %1895 = vmatpush2.msra.mxu0 0.0
    %1896 = vmatprep.subr.mxu0 0.0
    %1897 = vmatpush2.msra.mxu0 0.0
    %1898 = vmatprep.subr.mxu0 0.0
    %1899 = vmatpush2.msra.mxu0 0.0
    %1900 = vmatprep.subr.mxu0 0.0
    %1901 = vmatpush2.msra.mxu0 0.0
    %1902 = vmatprep.subr.mxu0 0.0
    %1903 = vmatpush2.msra.mxu0 0.0
    %1904 = vmatprep.subr.mxu0 0.0
    %1905 = vmatpush2.msra.mxu0 0.0
    %1906 = vmatprep.subr.mxu0 0.0
    %1907 = vmatpush2.msra.mxu0 0.0
    %1908 = vmatprep.mubr.f32.mxu0 0.0
    %1909 = vmatmul.mubr.f32.gmra.mxu0 %v1840
    %v1910 = vpop.f32.mrf.mxu0
    %v1911 = vadd.f32 0.0, %v1910
    %v1912 = vpop.f32.mrf.mxu0
    %1913 = vmatprep.mubr.f32.mxu0 0.0
    %1914 = vmatmul.mubr.f32.gmra.mxu0 %v1841
    %v1915 = vpop.f32.mrf.mxu0
    %v1916 = vadd.f32 0.0, %v1915
    %v1917 = vpop.f32.mrf.mxu0
    %1918 = vmatprep.mubr.f32.mxu0 0.0
    %1919 = vmatmul.mubr.f32.gmra.mxu0 %v1842
    %v1920 = vpop.f32.mrf.mxu0
    %v1921 = vadd.f32 0.0, %v1920
    %v1922 = vpop.f32.mrf.mxu0
    %1923 = vmatprep.mubr.f32.mxu0 0.0
    %1924 = vmatmul.mubr.f32.gmra.mxu0 %v1843
    %v1925 = vpop.f32.mrf.mxu0
    %v1926 = vadd.f32 0.0, %v1925
    %v1927 = vpop.f32.mrf.mxu0
    %1928 = vdwg.mxu0
    %v1929 = vadd.f32 %v1835, %v1911
    %v1930 = vadd.f32 %v1836, %v1916
    %v1931 = vadd.f32 %v1837, %v1921
    %v1932 = vadd.f32 %v1838, %v1926
    %s1933 = scalar_lea.vmem [#allocation2], 192
    %v1934 = vld [vmem:[%s1933] sm:$0xff]
    %v1935 = vld [vmem:[%s1933 + $0x8] sm:$0xff]
    %v1936 = vld [vmem:[%s1933 + $0x10] sm:$0xff]
    %v1937 = vld [vmem:[%s1933 + $0x18] sm:$0xff]
    %1938 = vmatprep.subr.mxu0 0.0
    %1939 = vmatpush1.msra.mxu0 %v1277
    %1940 = vmatprep.subr.mxu0 0.0
    %1941 = vmatpush1.msra.mxu0 %v1273
    %1942 = vmatprep.subr.mxu0 0.0
    %1943 = vmatpush1.msra.mxu0 %v1267
    %1944 = vmatprep.subr.mxu0 0.0
    %1945 = vmatpush1.msra.mxu0 %v1263
    %1946 = vmatprep.subr.mxu0 0.0
    %1947 = vmatpush1.msra.mxu0 %v1257
    %1948 = vmatprep.subr.mxu0 0.0
    %1949 = vmatpush1.msra.mxu0 %v1253
    %1950 = vmatprep.subr.mxu0 0.0
    %1951 = vmatpush1.msra.mxu0 %v1247
    %1952 = vmatprep.subr.mxu0 0.0
    %1953 = vmatpush1.msra.mxu0 %v1243
    %1954 = vmatprep.subr.mxu0 0.0
    %1955 = vmatpush1.msra.mxu0 %v1237
    %1956 = vmatprep.subr.mxu0 0.0
    %1957 = vmatpush1.msra.mxu0 %v1233
    %1958 = vmatprep.subr.mxu0 0.0
    %1959 = vmatpush1.msra.mxu0 %v1227
    %1960 = vmatprep.subr.mxu0 0.0
    %1961 = vmatpush1.msra.mxu0 %v1223
    %1962 = vmatprep.subr.mxu0 0.0
    %1963 = vmatpush1.msra.mxu0 %v1217
    %1964 = vmatprep.subr.mxu0 0.0
    %1965 = vmatpush1.msra.mxu0 %v1213
    %1966 = vmatprep.subr.mxu0 0.0
    %1967 = vmatpush1.msra.mxu0 %v1207
    %1968 = vmatprep.subr.mxu0 0.0
    %1969 = vmatpush1.msra.mxu0 %v1203
    %1970 = vmatprep.subr.mxu0 0.0
    %1971 = vmatpush2.msra.mxu0 0.0
    %1972 = vmatprep.subr.mxu0 0.0
    %1973 = vmatpush2.msra.mxu0 0.0
    %1974 = vmatprep.subr.mxu0 0.0
    %1975 = vmatpush2.msra.mxu0 0.0
    %1976 = vmatprep.subr.mxu0 0.0
    %1977 = vmatpush2.msra.mxu0 0.0
    %1978 = vmatprep.subr.mxu0 0.0
    %1979 = vmatpush2.msra.mxu0 0.0
    %1980 = vmatprep.subr.mxu0 0.0
    %1981 = vmatpush2.msra.mxu0 0.0
    %1982 = vmatprep.subr.mxu0 0.0
    %1983 = vmatpush2.msra.mxu0 0.0
    %1984 = vmatprep.subr.mxu0 0.0
    %1985 = vmatpush2.msra.mxu0 0.0
    %1986 = vmatprep.subr.mxu0 0.0
    %1987 = vmatpush2.msra.mxu0 0.0
    %1988 = vmatprep.subr.mxu0 0.0
    %1989 = vmatpush2.msra.mxu0 0.0
    %1990 = vmatprep.subr.mxu0 0.0
    %1991 = vmatpush2.msra.mxu0 0.0
    %1992 = vmatprep.subr.mxu0 0.0
    %1993 = vmatpush2.msra.mxu0 0.0
    %1994 = vmatprep.subr.mxu0 0.0
    %1995 = vmatpush2.msra.mxu0 0.0
    %1996 = vmatprep.subr.mxu0 0.0
    %1997 = vmatpush2.msra.mxu0 0.0
    %1998 = vmatprep.subr.mxu0 0.0
    %1999 = vmatpush2.msra.mxu0 0.0
    %2000 = vmatprep.subr.mxu0 0.0
    %2001 = vmatpush2.msra.mxu0 0.0
    %2002 = vmatprep.mubr.f32.mxu0 0.0
    %2003 = vmatmul.mubr.f32.gmra.mxu0 %v1934
    %v2004 = vpop.f32.mrf.mxu0
    %v2005 = vadd.f32 0.0, %v2004
    %v2006 = vpop.f32.mrf.mxu0
    %2007 = vmatprep.mubr.f32.mxu0 0.0
    %2008 = vmatmul.mubr.f32.gmra.mxu0 %v1935
    %v2009 = vpop.f32.mrf.mxu0
    %v2010 = vadd.f32 0.0, %v2009
    %v2011 = vpop.f32.mrf.mxu0
    %2012 = vmatprep.mubr.f32.mxu0 0.0
    %2013 = vmatmul.mubr.f32.gmra.mxu0 %v1936
    %v2014 = vpop.f32.mrf.mxu0
    %v2015 = vadd.f32 0.0, %v2014
    %v2016 = vpop.f32.mrf.mxu0
    %2017 = vmatprep.mubr.f32.mxu0 0.0
    %2018 = vmatmul.mubr.f32.gmra.mxu0 %v1937
    %v2019 = vpop.f32.mrf.mxu0
    %v2020 = vadd.f32 0.0, %v2019
    %v2021 = vpop.f32.mrf.mxu0
    %2022 = vdwg.mxu0
    %v2023 = vadd.f32 %v1929, %v2005
    %v2024 = vadd.f32 %v1930, %v2010
    %v2025 = vadd.f32 %v1931, %v2015
    %v2026 = vadd.f32 %v1932, %v2020
    %s2027 = scalar_lea.vmem [#allocation2], 224
    %v2028 = vld [vmem:[%s2027] sm:$0xff]
    %v2029 = vld [vmem:[%s2027 + $0x8] sm:$0xff]
    %v2030 = vld [vmem:[%s2027 + $0x10] sm:$0xff]
    %v2031 = vld [vmem:[%s2027 + $0x18] sm:$0xff]
    %2032 = vmatprep.subr.mxu0 0.0
    %2033 = vmatpush1.msra.mxu0 %v1279
    %2034 = vmatprep.subr.mxu0 0.0
    %2035 = vmatpush1.msra.mxu0 %v1275
    %2036 = vmatprep.subr.mxu0 0.0
    %2037 = vmatpush1.msra.mxu0 %v1269
    %2038 = vmatprep.subr.mxu0 0.0
    %2039 = vmatpush1.msra.mxu0 %v1265
    %2040 = vmatprep.subr.mxu0 0.0
    %2041 = vmatpush1.msra.mxu0 %v1259
    %2042 = vmatprep.subr.mxu0 0.0
    %2043 = vmatpush1.msra.mxu0 %v1255
    %2044 = vmatprep.subr.mxu0 0.0
    %2045 = vmatpush1.msra.mxu0 %v1249
    %2046 = vmatprep.subr.mxu0 0.0
    %2047 = vmatpush1.msra.mxu0 %v1245
    %2048 = vmatprep.subr.mxu0 0.0
    %2049 = vmatpush1.msra.mxu0 %v1239
    %2050 = vmatprep.subr.mxu0 0.0
    %2051 = vmatpush1.msra.mxu0 %v1235
    %2052 = vmatprep.subr.mxu0 0.0
    %2053 = vmatpush1.msra.mxu0 %v1229
    %2054 = vmatprep.subr.mxu0 0.0
    %2055 = vmatpush1.msra.mxu0 %v1225
    %2056 = vmatprep.subr.mxu0 0.0
    %2057 = vmatpush1.msra.mxu0 %v1219
    %2058 = vmatprep.subr.mxu0 0.0
    %2059 = vmatpush1.msra.mxu0 %v1215
    %2060 = vmatprep.subr.mxu0 0.0
    %2061 = vmatpush1.msra.mxu0 %v1209
    %2062 = vmatprep.subr.mxu0 0.0
    %2063 = vmatpush1.msra.mxu0 %v1205
    %2064 = vmatprep.subr.mxu0 0.0
    %2065 = vmatpush2.msra.mxu0 0.0
    %2066 = vmatprep.subr.mxu0 0.0
    %2067 = vmatpush2.msra.mxu0 0.0
    %2068 = vmatprep.subr.mxu0 0.0
    %2069 = vmatpush2.msra.mxu0 0.0
    %2070 = vmatprep.subr.mxu0 0.0
    %2071 = vmatpush2.msra.mxu0 0.0
    %2072 = vmatprep.subr.mxu0 0.0
    %2073 = vmatpush2.msra.mxu0 0.0
    %2074 = vmatprep.subr.mxu0 0.0
    %2075 = vmatpush2.msra.mxu0 0.0
    %2076 = vmatprep.subr.mxu0 0.0
    %2077 = vmatpush2.msra.mxu0 0.0
    %2078 = vmatprep.subr.mxu0 0.0
    %2079 = vmatpush2.msra.mxu0 0.0
    %2080 = vmatprep.subr.mxu0 0.0
    %2081 = vmatpush2.msra.mxu0 0.0
    %2082 = vmatprep.subr.mxu0 0.0
    %2083 = vmatpush2.msra.mxu0 0.0
    %2084 = vmatprep.subr.mxu0 0.0
    %2085 = vmatpush2.msra.mxu0 0.0
    %2086 = vmatprep.subr.mxu0 0.0
    %2087 = vmatpush2.msra.mxu0 0.0
    %2088 = vmatprep.subr.mxu0 0.0
    %2089 = vmatpush2.msra.mxu0 0.0
    %2090 = vmatprep.subr.mxu0 0.0
    %2091 = vmatpush2.msra.mxu0 0.0
    %2092 = vmatprep.subr.mxu0 0.0
    %2093 = vmatpush2.msra.mxu0 0.0
    %2094 = vmatprep.subr.mxu0 0.0
    %2095 = vmatpush2.msra.mxu0 0.0
    %2096 = vmatprep.mubr.f32.mxu0 0.0
    %2097 = vmatmul.mubr.f32.gmra.mxu0 %v2028
    %v2098 = vpop.f32.mrf.mxu0
    %v2099 = vadd.f32 0.0, %v2098
    %v2100 = vpop.f32.mrf.mxu0
    %2101 = vmatprep.mubr.f32.mxu0 0.0
    %2102 = vmatmul.mubr.f32.gmra.mxu0 %v2029
    %v2103 = vpop.f32.mrf.mxu0
    %v2104 = vadd.f32 0.0, %v2103
    %v2105 = vpop.f32.mrf.mxu0
    %2106 = vmatprep.mubr.f32.mxu0 0.0
    %2107 = vmatmul.mubr.f32.gmra.mxu0 %v2030
    %v2108 = vpop.f32.mrf.mxu0
    %v2109 = vadd.f32 0.0, %v2108
    %v2110 = vpop.f32.mrf.mxu0
    %2111 = vmatprep.mubr.f32.mxu0 0.0
    %2112 = vmatmul.mubr.f32.gmra.mxu0 %v2031
    %v2113 = vpop.f32.mrf.mxu0
    %v2114 = vadd.f32 0.0, %v2113
    %v2115 = vpop.f32.mrf.mxu0
    %2116 = vdwg.mxu0
    %v2117 = vadd.f32 %v2023, %v2099
    %v2118 = vadd.f32 %v2024, %v2104
    %v2119 = vadd.f32 %v2025, %v2109
    %v2120 = vadd.f32 %v2026, %v2114
    %s2121 = scalar_lea.vmem [#allocation2], 256
    %v2122 = vld [vmem:[%s2121] sm:$0xff]
    %v2123 = vld [vmem:[%s2121 + $0x8] sm:$0xff]
    %v2124 = vld [vmem:[%s2121 + $0x10] sm:$0xff]
    %v2125 = vld [vmem:[%s2121 + $0x18] sm:$0xff]
    %2126 = vmatprep.subr.mxu0 0.0
    %2127 = vmatpush1.msra.mxu0 %v1375
    %2128 = vmatprep.subr.mxu0 0.0
    %2129 = vmatpush1.msra.mxu0 %v1372
    %2130 = vmatprep.subr.mxu0 0.0
    %2131 = vmatpush1.msra.mxu0 %v1367
    %2132 = vmatprep.subr.mxu0 0.0
    %2133 = vmatpush1.msra.mxu0 %v1364
    %2134 = vmatprep.subr.mxu0 0.0
    %2135 = vmatpush1.msra.mxu0 %v1359
    %2136 = vmatprep.subr.mxu0 0.0
    %2137 = vmatpush1.msra.mxu0 %v1356
    %2138 = vmatprep.subr.mxu0 0.0
    %2139 = vmatpush1.msra.mxu0 %v1351
    %2140 = vmatprep.subr.mxu0 0.0
    %2141 = vmatpush1.msra.mxu0 %v1348
    %2142 = vmatprep.subr.mxu0 0.0
    %2143 = vmatpush1.msra.mxu0 %v1343
    %2144 = vmatprep.subr.mxu0 0.0
    %2145 = vmatpush1.msra.mxu0 %v1340
    %2146 = vmatprep.subr.mxu0 0.0
    %2147 = vmatpush1.msra.mxu0 %v1335
    %2148 = vmatprep.subr.mxu0 0.0
    %2149 = vmatpush1.msra.mxu0 %v1332
    %2150 = vmatprep.subr.mxu0 0.0
    %2151 = vmatpush1.msra.mxu0 %v1327
    %2152 = vmatprep.subr.mxu0 0.0
    %2153 = vmatpush1.msra.mxu0 %v1324
    %2154 = vmatprep.subr.mxu0 0.0
    %2155 = vmatpush1.msra.mxu0 %v1319
    %2156 = vmatprep.subr.mxu0 0.0
    %2157 = vmatpush1.msra.mxu0 %v1316
    %2158 = vmatprep.subr.mxu0 0.0
    %2159 = vmatpush2.msra.mxu0 0.0
    %2160 = vmatprep.subr.mxu0 0.0
    %2161 = vmatpush2.msra.mxu0 0.0
    %2162 = vmatprep.subr.mxu0 0.0
    %2163 = vmatpush2.msra.mxu0 0.0
    %2164 = vmatprep.subr.mxu0 0.0
    %2165 = vmatpush2.msra.mxu0 0.0
    %2166 = vmatprep.subr.mxu0 0.0
    %2167 = vmatpush2.msra.mxu0 0.0
    %2168 = vmatprep.subr.mxu0 0.0
    %2169 = vmatpush2.msra.mxu0 0.0
    %2170 = vmatprep.subr.mxu0 0.0
    %2171 = vmatpush2.msra.mxu0 0.0
    %2172 = vmatprep.subr.mxu0 0.0
    %2173 = vmatpush2.msra.mxu0 0.0
    %2174 = vmatprep.subr.mxu0 0.0
    %2175 = vmatpush2.msra.mxu0 0.0
    %2176 = vmatprep.subr.mxu0 0.0
    %2177 = vmatpush2.msra.mxu0 0.0
    %2178 = vmatprep.subr.mxu0 0.0
    %2179 = vmatpush2.msra.mxu0 0.0
    %2180 = vmatprep.subr.mxu0 0.0
    %2181 = vmatpush2.msra.mxu0 0.0
    %2182 = vmatprep.subr.mxu0 0.0
    %2183 = vmatpush2.msra.mxu0 0.0
    %2184 = vmatprep.subr.mxu0 0.0
    %2185 = vmatpush2.msra.mxu0 0.0
    %2186 = vmatprep.subr.mxu0 0.0
    %2187 = vmatpush2.msra.mxu0 0.0
    %2188 = vmatprep.subr.mxu0 0.0
    %2189 = vmatpush2.msra.mxu0 0.0
    %2190 = vmatprep.mubr.f32.mxu0 0.0
    %2191 = vmatmul.mubr.f32.gmra.mxu0 %v2122
    %v2192 = vpop.f32.mrf.mxu0
    %v2193 = vadd.f32 0.0, %v2192
    %v2194 = vpop.f32.mrf.mxu0
    %2195 = vmatprep.mubr.f32.mxu0 0.0
    %2196 = vmatmul.mubr.f32.gmra.mxu0 %v2123
    %v2197 = vpop.f32.mrf.mxu0
    %v2198 = vadd.f32 0.0, %v2197
    %v2199 = vpop.f32.mrf.mxu0
    %2200 = vmatprep.mubr.f32.mxu0 0.0
    %2201 = vmatmul.mubr.f32.gmra.mxu0 %v2124
    %v2202 = vpop.f32.mrf.mxu0
    %v2203 = vadd.f32 0.0, %v2202
    %v2204 = vpop.f32.mrf.mxu0
    %2205 = vmatprep.mubr.f32.mxu0 0.0
    %2206 = vmatmul.mubr.f32.gmra.mxu0 %v2125
    %v2207 = vpop.f32.mrf.mxu0
    %v2208 = vadd.f32 0.0, %v2207
    %v2209 = vpop.f32.mrf.mxu0
    %2210 = vdwg.mxu0
    %v2211 = vadd.f32 %v2117, %v2193
    %v2212 = vadd.f32 %v2118, %v2198
    %v2213 = vadd.f32 %v2119, %v2203
    %v2214 = vadd.f32 %v2120, %v2208
    %v2215 = vld [vmem:[%s5] sm:$0x1]
    %v2217 = vlaneseq
    %v2218 = vshrl.u32 %v2217, 7
    %v2219 = vsub.s32 0, %v2218
    %v2220 = vrot.slane %v2215, %v2219
    %v2222 = vadd.f32 %v2211, %v2220
    %v2223 = vadd.f32 %v2212, %v2220
    %v2224 = vadd.f32 %v2213, %v2220
    %v2225 = vadd.f32 %v2214, %v2220
    %v2226 = vmul.f32 %v2222, 0.2
    %v2227 = vmul.f32 %v2223, 0.2
    %v2228 = vmul.f32 %v2224, 0.2
    %v2229 = vmul.f32 %v2225, 0.2
    %v2230 = vmax.f32 %v2222, %v2226
    %v2231 = vmax.f32 %v2223, %v2227
    %v2232 = vmax.f32 %v2224, %v2228
    %v2233 = vmax.f32 %v2225, %v2229
    %s2234 = scalar_lea.vmem %s5, 1
    %v2235 = vld [vmem:[%s2234] sm:$0x1]
    %v2237 = vlaneseq
    %v2238 = vshrl.u32 %v2237, 7
    %v2239 = vsub.s32 0, %v2238
    %v2240 = vrot.slane %v2235, %v2239
    %v2242 = vmul.f32 %v2230, %v2240
    %v2243 = vmul.f32 %v2231, %v2240
    %v2244 = vmul.f32 %v2232, %v2240
    %v2245 = vmul.f32 %v2233, %v2240
    %s2246 = scalar_lea.vmem %s5, 2
    %v2247 = vld [vmem:[%s2246] sm:$0x1]
    %v2249 = vlaneseq
    %v2250 = vshrl.u32 %v2249, 7
    %v2251 = vsub.s32 0, %v2250
    %v2252 = vrot.slane %v2247, %v2251
    %v2254 = vadd.f32 %v2242, %v2252
    %v2255 = vadd.f32 %v2243, %v2252
    %v2256 = vadd.f32 %v2244, %v2252
    %v2257 = vadd.f32 %v2245, %v2252
    %v2258 = vpack.c.bf16 %v2255, %v2254
    %v2259 = vpack.c.bf16 %v2257, %v2256
    %v2260 = vld [vmem:[%s7] sm:$0xff]
    %v2261 = vld [vmem:[%s7 + $0x8] sm:$0xff]
    %v2262 = vld [vmem:[%s7 + $0x10] sm:$0xff]
    %v2263 = vld [vmem:[%s7 + $0x18] sm:$0xff]
    %v2264 = vld [vmem:[%s7 + $0x20] sm:$0xf]
    %v2265 = vld [vmem:[%s7 + $0x24] sm:$0xff]
    %v2266 = vld [vmem:[%s7 + $0x2c] sm:$0xff]
    %v2267 = vld [vmem:[%s7 + $0x34] sm:$0xff]
    %v2268 = vld [vmem:[%s7 + $0x3c] sm:$0xff]
    %v2269 = vld [vmem:[%s7 + $0x44] sm:$0xf]
    %v2270 = vld [vmem:[%s7 + $0x48] sm:$0xff]
    %v2271 = vld [vmem:[%s7 + $0x50] sm:$0xff]
    %v2272 = vld [vmem:[%s7 + $0x58] sm:$0xff]
    %v2273 = vld [vmem:[%s7 + $0x60] sm:$0xff]
    %v2274 = vld [vmem:[%s7 + $0x68] sm:$0xf]
    %v2275 = vld [vmem:[%s7 + $0x6c] sm:$0xff]
    %v2276 = vld [vmem:[%s7 + $0x74] sm:$0xff]
    %v2277 = vld [vmem:[%s7 + $0x7c] sm:$0xff]
    %v2278 = vld [vmem:[%s7 + $0x84] sm:$0xff]
    %v2279 = vld [vmem:[%s7 + $0x8c] sm:$0xf]
    %v2280 = vld [vmem:[%s7 + $0x90] sm:$0xff]
    %v2281 = vld [vmem:[%s7 + $0x98] sm:$0xff]
    %v2282 = vld [vmem:[%s7 + $0xa0] sm:$0xff]
    %v2283 = vld [vmem:[%s7 + $0xa8] sm:$0xff]
    %v2284 = vld [vmem:[%s7 + $0xb0] sm:$0xf]
    %v2285 = vld [vmem:[%s7 + $0xb4] sm:$0xff]
    %v2286 = vld [vmem:[%s7 + $0xbc] sm:$0xff]
    %v2287 = vld [vmem:[%s7 + $0xc4] sm:$0xff]
    %v2288 = vld [vmem:[%s7 + $0xcc] sm:$0xff]
    %v2289 = vld [vmem:[%s7 + $0xd4] sm:$0xf]
    %v2290 = vld [vmem:[%s7 + $0xd8] sm:$0xff]
    %v2291 = vld [vmem:[%s7 + $0xe0] sm:$0xff]
    %v2292 = vld [vmem:[%s7 + $0xe8] sm:$0xff]
    %v2293 = vld [vmem:[%s7 + $0xf0] sm:$0xff]
    %v2294 = vld [vmem:[%s7 + $0xf8] sm:$0xf]
    %v2295 = vld [vmem:[%s7 + $0xfc] sm:$0xff]
    %v2296 = vld [vmem:[%s7 + $0x104] sm:$0xff]
    %v2297 = vld [vmem:[%s7 + $0x10c] sm:$0xff]
    %v2298 = vld [vmem:[%s7 + $0x114] sm:$0xff]
    %v2299 = vld [vmem:[%s7 + $0x11c] sm:$0xf]
    %v2300 = vld [vmem:[%s7 + $0x120] sm:$0xff]
    %v2301 = vld [vmem:[%s7 + $0x128] sm:$0xff]
    %v2302 = vld [vmem:[%s7 + $0x130] sm:$0xff]
    %v2303 = vld [vmem:[%s7 + $0x138] sm:$0xff]
    %v2304 = vld [vmem:[%s7 + $0x140] sm:$0xf]
    %v2305 = vld [vmem:[%s7 + $0x144] sm:$0xff]
    %v2306 = vld [vmem:[%s7 + $0x14c] sm:$0xff]
    %v2307 = vld [vmem:[%s7 + $0x154] sm:$0xff]
    %v2308 = vld [vmem:[%s7 + $0x15c] sm:$0xff]
    %v2309 = vld [vmem:[%s7 + $0x164] sm:$0xf]
    %v2310 = vld [vmem:[%s7 + $0x168] sm:$0xff]
    %v2311 = vld [vmem:[%s7 + $0x170] sm:$0xff]
    %v2312 = vld [vmem:[%s7 + $0x178] sm:$0xff]
    %v2313 = vld [vmem:[%s7 + $0x180] sm:$0xff]
    %v2314 = vld [vmem:[%s7 + $0x188] sm:$0xf]
    %v2315 = vld [vmem:[%s7 + $0x18c] sm:$0xff]
    %v2316 = vld [vmem:[%s7 + $0x194] sm:$0xff]
    %v2317 = vld [vmem:[%s7 + $0x19c] sm:$0xff]
    %v2318 = vld [vmem:[%s7 + $0x1a4] sm:$0xff]
    %v2319 = vld [vmem:[%s7 + $0x1ac] sm:$0xf]
    %v2320 = vld [vmem:[%s7 + $0x1b0] sm:$0xff]
    %v2321 = vld [vmem:[%s7 + $0x1b8] sm:$0xff]
    %v2322 = vld [vmem:[%s7 + $0x1c0] sm:$0xff]
    %v2323 = vld [vmem:[%s7 + $0x1c8] sm:$0xff]
    %v2324 = vld [vmem:[%s7 + $0x1d0] sm:$0xf]
    %v2325 = vld [vmem:[%s7 + $0x1d4] sm:$0xff]
    %v2326 = vld [vmem:[%s7 + $0x1dc] sm:$0xff]
    %v2327 = vld [vmem:[%s7 + $0x1e4] sm:$0xff]
    %v2328 = vld [vmem:[%s7 + $0x1ec] sm:$0xff]
    %v2329 = vld [vmem:[%s7 + $0x1f4] sm:$0xf]
    %v2330 = vld [vmem:[%s7 + $0x1f8] sm:$0xff]
    %v2331 = vld [vmem:[%s7 + $0x200] sm:$0xff]
    %v2332 = vld [vmem:[%s7 + $0x208] sm:$0xff]
    %v2333 = vld [vmem:[%s7 + $0x210] sm:$0xff]
    %v2334 = vld [vmem:[%s7 + $0x218] sm:$0xf]
    %v2335 = vld [vmem:[%s7 + $0x21c] sm:$0xff]
    %v2336 = vld [vmem:[%s7 + $0x224] sm:$0xff]
    %v2337 = vld [vmem:[%s7 + $0x22c] sm:$0xff]
    %v2338 = vld [vmem:[%s7 + $0x234] sm:$0xff]
    %v2339 = vld [vmem:[%s7 + $0x23c] sm:$0xf]
    %v2420 = vunpack.c.l.b16 %v2260
    %v2421 = vunpack.c.h.b16 %v2260
    %v2422 = vunpack.c.l.b16 %v2261
    %v2423 = vunpack.c.h.b16 %v2261
    %v2424 = vunpack.c.l.b16 %v2262
    %v2425 = vunpack.c.h.b16 %v2262
    %v2426 = vunpack.c.l.b16 %v2263
    %v2427 = vunpack.c.h.b16 %v2263
    %v2428 = vunpack.c.l.b16 %v2264
    %v2429 = vunpack.c.l.b16 %v2265
    %v2430 = vunpack.c.h.b16 %v2265
    %v2431 = vunpack.c.l.b16 %v2266
    %v2432 = vunpack.c.h.b16 %v2266
    %v2433 = vunpack.c.l.b16 %v2267
    %v2434 = vunpack.c.h.b16 %v2267
    %v2435 = vunpack.c.l.b16 %v2268
    %v2436 = vunpack.c.h.b16 %v2268
    %v2437 = vunpack.c.l.b16 %v2269
    %v2438 = vunpack.c.l.b16 %v2270
    %v2439 = vunpack.c.h.b16 %v2270
    %v2440 = vunpack.c.l.b16 %v2271
    %v2441 = vunpack.c.h.b16 %v2271
    %v2442 = vunpack.c.l.b16 %v2272
    %v2443 = vunpack.c.h.b16 %v2272
    %v2444 = vunpack.c.l.b16 %v2273
    %v2445 = vunpack.c.h.b16 %v2273
    %v2446 = vunpack.c.l.b16 %v2274
    %v2447 = vunpack.c.l.b16 %v2275
    %v2448 = vunpack.c.h.b16 %v2275
    %v2449 = vunpack.c.l.b16 %v2276
    %v2450 = vunpack.c.h.b16 %v2276
    %v2451 = vunpack.c.l.b16 %v2277
    %v2452 = vunpack.c.h.b16 %v2277
    %v2453 = vunpack.c.l.b16 %v2278
    %v2454 = vunpack.c.h.b16 %v2278
    %v2455 = vunpack.c.l.b16 %v2279
    %v2456 = vunpack.c.l.b16 %v2280
    %v2457 = vunpack.c.h.b16 %v2280
    %v2458 = vunpack.c.l.b16 %v2281
    %v2459 = vunpack.c.h.b16 %v2281
    %v2460 = vunpack.c.l.b16 %v2282
    %v2461 = vunpack.c.h.b16 %v2282
    %v2462 = vunpack.c.l.b16 %v2283
    %v2463 = vunpack.c.h.b16 %v2283
    %v2464 = vunpack.c.l.b16 %v2284
    %v2465 = vunpack.c.l.b16 %v2285
    %v2466 = vunpack.c.h.b16 %v2285
    %v2467 = vunpack.c.l.b16 %v2286
    %v2468 = vunpack.c.h.b16 %v2286
    %v2469 = vunpack.c.l.b16 %v2287
    %v2470 = vunpack.c.h.b16 %v2287
    %v2471 = vunpack.c.l.b16 %v2288
    %v2472 = vunpack.c.h.b16 %v2288
    %v2473 = vunpack.c.l.b16 %v2289
    %v2474 = vunpack.c.l.b16 %v2290
    %v2475 = vunpack.c.h.b16 %v2290
    %v2476 = vunpack.c.l.b16 %v2291
    %v2477 = vunpack.c.h.b16 %v2291
    %v2478 = vunpack.c.l.b16 %v2292
    %v2479 = vunpack.c.h.b16 %v2292
    %v2480 = vunpack.c.l.b16 %v2293
    %v2481 = vunpack.c.h.b16 %v2293
    %v2482 = vunpack.c.l.b16 %v2294
    %v2483 = vunpack.c.l.b16 %v2295
    %v2484 = vunpack.c.h.b16 %v2295
    %v2485 = vunpack.c.l.b16 %v2296
    %v2486 = vunpack.c.h.b16 %v2296
    %v2487 = vunpack.c.l.b16 %v2297
    %v2488 = vunpack.c.h.b16 %v2297
    %v2489 = vunpack.c.l.b16 %v2298
    %v2490 = vunpack.c.h.b16 %v2298
    %v2491 = vunpack.c.l.b16 %v2299
    %v2492 = vunpack.c.l.b16 %v2300
    %v2493 = vunpack.c.h.b16 %v2300
    %v2494 = vunpack.c.l.b16 %v2301
    %v2495 = vunpack.c.h.b16 %v2301
    %v2496 = vunpack.c.l.b16 %v2302
    %v2497 = vunpack.c.h.b16 %v2302
    %v2498 = vunpack.c.l.b16 %v2303
    %v2499 = vunpack.c.h.b16 %v2303
    %v2500 = vunpack.c.l.b16 %v2304
    %v2501 = vunpack.c.l.b16 %v2305
    %v2502 = vunpack.c.h.b16 %v2305
    %v2503 = vunpack.c.l.b16 %v2306
    %v2504 = vunpack.c.h.b16 %v2306
    %v2505 = vunpack.c.l.b16 %v2307
    %v2506 = vunpack.c.h.b16 %v2307
    %v2507 = vunpack.c.l.b16 %v2308
    %v2508 = vunpack.c.h.b16 %v2308
    %v2509 = vunpack.c.l.b16 %v2309
    %v2510 = vunpack.c.l.b16 %v2310
    %v2511 = vunpack.c.h.b16 %v2310
    %v2512 = vunpack.c.l.b16 %v2311
    %v2513 = vunpack.c.h.b16 %v2311
    %v2514 = vunpack.c.l.b16 %v2312
    %v2515 = vunpack.c.h.b16 %v2312
    %v2516 = vunpack.c.l.b16 %v2313
    %v2517 = vunpack.c.h.b16 %v2313
    %v2518 = vunpack.c.l.b16 %v2314
    %v2519 = vunpack.c.l.b16 %v2315
    %v2520 = vunpack.c.h.b16 %v2315
    %v2521 = vunpack.c.l.b16 %v2316
    %v2522 = vunpack.c.h.b16 %v2316
    %v2523 = vunpack.c.l.b16 %v2317
    %v2524 = vunpack.c.h.b16 %v2317
    %v2525 = vunpack.c.l.b16 %v2318
    %v2526 = vunpack.c.h.b16 %v2318
    %v2527 = vunpack.c.l.b16 %v2319
    %v2528 = vunpack.c.l.b16 %v2320
    %v2529 = vunpack.c.h.b16 %v2320
    %v2530 = vunpack.c.l.b16 %v2321
    %v2531 = vunpack.c.h.b16 %v2321
    %v2532 = vunpack.c.l.b16 %v2322
    %v2533 = vunpack.c.h.b16 %v2322
    %v2534 = vunpack.c.l.b16 %v2323
    %v2535 = vunpack.c.h.b16 %v2323
    %v2536 = vunpack.c.l.b16 %v2324
    %v2537 = vunpack.c.l.b16 %v2325
    %v2538 = vunpack.c.h.b16 %v2325
    %v2539 = vunpack.c.l.b16 %v2326
    %v2540 = vunpack.c.h.b16 %v2326
    %v2541 = vunpack.c.l.b16 %v2327
    %v2542 = vunpack.c.h.b16 %v2327
    %v2543 = vunpack.c.l.b16 %v2328
    %v2544 = vunpack.c.h.b16 %v2328
    %v2545 = vunpack.c.l.b16 %v2329
    %v2546 = vunpack.c.l.b16 %v2330
    %v2547 = vunpack.c.h.b16 %v2330
    %v2548 = vunpack.c.l.b16 %v2331
    %v2549 = vunpack.c.h.b16 %v2331
    %v2550 = vunpack.c.l.b16 %v2332
    %v2551 = vunpack.c.h.b16 %v2332
    %v2552 = vunpack.c.l.b16 %v2333
    %v2553 = vunpack.c.h.b16 %v2333
    %v2554 = vunpack.c.l.b16 %v2334
    %v2555 = vunpack.c.l.b16 %v2335
    %v2556 = vunpack.c.h.b16 %v2335
    %v2557 = vunpack.c.l.b16 %v2336
    %v2558 = vunpack.c.h.b16 %v2336
    %v2559 = vunpack.c.l.b16 %v2337
    %v2560 = vunpack.c.h.b16 %v2337
    %v2561 = vunpack.c.l.b16 %v2338
    %v2562 = vunpack.c.h.b16 %v2338
    %v2563 = vunpack.c.l.b16 %v2339
    %v2564 = vpack.c.b16 %v2429, %v2420
    %v2565 = vpack.c.b16 %v2430, %v2421
    %v2566 = vpack.c.b16 %v2431, %v2422
    %v2567 = vpack.c.b16 %v2432, %v2423
    %v2568 = vpack.c.b16 %v2433, %v2424
    %v2569 = vpack.c.b16 %v2434, %v2425
    %v2570 = vpack.c.b16 %v2435, %v2426
    %v2571 = vpack.c.b16 %v2436, %v2427
    %v2572 = vpack.c.b16 %v2437, %v2428
    %v2573 = vpack.c.b16 %v2447, %v2438
    %v2574 = vpack.c.b16 %v2448, %v2439
    %v2575 = vpack.c.b16 %v2449, %v2440
    %v2576 = vpack.c.b16 %v2450, %v2441
    %v2577 = vpack.c.b16 %v2451, %v2442
    %v2578 = vpack.c.b16 %v2452, %v2443
    %v2579 = vpack.c.b16 %v2453, %v2444
    %v2580 = vpack.c.b16 %v2454, %v2445
    %v2581 = vpack.c.b16 %v2455, %v2446
    %v2582 = vpack.c.b16 %v2465, %v2456
    %v2583 = vpack.c.b16 %v2466, %v2457
    %v2584 = vpack.c.b16 %v2467, %v2458
    %v2585 = vpack.c.b16 %v2468, %v2459
    %v2586 = vpack.c.b16 %v2469, %v2460
    %v2587 = vpack.c.b16 %v2470, %v2461
    %v2588 = vpack.c.b16 %v2471, %v2462
    %v2589 = vpack.c.b16 %v2472, %v2463
    %v2590 = vpack.c.b16 %v2473, %v2464
    %v2591 = vpack.c.b16 %v2483, %v2474
    %v2592 = vpack.c.b16 %v2484, %v2475
    %v2593 = vpack.c.b16 %v2485, %v2476
    %v2594 = vpack.c.b16 %v2486, %v2477
    %v2595 = vpack.c.b16 %v2487, %v2478
    %v2596 = vpack.c.b16 %v2488, %v2479
    %v2597 = vpack.c.b16 %v2489, %v2480
    %v2598 = vpack.c.b16 %v2490, %v2481
    %v2599 = vpack.c.b16 %v2491, %v2482
    %v2600 = vpack.c.b16 %v2501, %v2492
    %v2601 = vpack.c.b16 %v2502, %v2493
    %v2602 = vpack.c.b16 %v2503, %v2494
    %v2603 = vpack.c.b16 %v2504, %v2495
    %v2604 = vpack.c.b16 %v2505, %v2496
    %v2605 = vpack.c.b16 %v2506, %v2497
    %v2606 = vpack.c.b16 %v2507, %v2498
    %v2607 = vpack.c.b16 %v2508, %v2499
    %v2608 = vpack.c.b16 %v2509, %v2500
    %v2609 = vpack.c.b16 %v2519, %v2510
    %v2610 = vpack.c.b16 %v2520, %v2511
    %v2611 = vpack.c.b16 %v2521, %v2512
    %v2612 = vpack.c.b16 %v2522, %v2513
    %v2613 = vpack.c.b16 %v2523, %v2514
    %v2614 = vpack.c.b16 %v2524, %v2515
    %v2615 = vpack.c.b16 %v2525, %v2516
    %v2616 = vpack.c.b16 %v2526, %v2517
    %v2617 = vpack.c.b16 %v2527, %v2518
    %v2618 = vpack.c.b16 %v2537, %v2528
    %v2619 = vpack.c.b16 %v2538, %v2529
    %v2620 = vpack.c.b16 %v2539, %v2530
    %v2621 = vpack.c.b16 %v2540, %v2531
    %v2622 = vpack.c.b16 %v2541, %v2532
    %v2623 = vpack.c.b16 %v2542, %v2533
    %v2624 = vpack.c.b16 %v2543, %v2534
    %v2625 = vpack.c.b16 %v2544, %v2535
    %v2626 = vpack.c.b16 %v2545, %v2536
    %v2627 = vpack.c.b16 %v2555, %v2546
    %v2628 = vpack.c.b16 %v2556, %v2547
    %v2629 = vpack.c.b16 %v2557, %v2548
    %v2630 = vpack.c.b16 %v2558, %v2549
    %v2631 = vpack.c.b16 %v2559, %v2550
    %v2632 = vpack.c.b16 %v2560, %v2551
    %v2633 = vpack.c.b16 %v2561, %v2552
    %v2634 = vpack.c.b16 %v2562, %v2553
    %v2635 = vpack.c.b16 %v2563, %v2554
    %2708 = vmatprep.subr.bf16.mxu0 %v2628
    %2709 = vmatpush1.bf16.msra.mxu0 %v2627
    %2710 = vmatprep.subr.bf16.mxu0 %v2619
    %2711 = vmatpush1.bf16.msra.mxu0 %v2618
    %2712 = vmatprep.subr.bf16.mxu0 %v2610
    %2713 = vmatpush1.bf16.msra.mxu0 %v2609
    %2714 = vmatprep.subr.bf16.mxu0 %v2601
    %2715 = vmatpush1.bf16.msra.mxu0 %v2600
    %2716 = vmatprep.subr.bf16.mxu0 %v2592
    %2717 = vmatpush1.bf16.msra.mxu0 %v2591
    %2718 = vmatprep.subr.bf16.mxu0 %v2583
    %2719 = vmatpush1.bf16.msra.mxu0 %v2582
    %2720 = vmatprep.subr.bf16.mxu0 %v2574
    %2721 = vmatpush1.bf16.msra.mxu0 %v2573
    %2722 = vmatprep.subr.bf16.mxu0 %v2565
    %2723 = vmatpush1.bf16.msra.mxu0 %v2564
    %2724 = vmatprep.subr.bf16.mxu0 0
    %2725 = vmatpush2.bf16.msra.mxu0 0
    %2726 = vmatprep.subr.bf16.mxu0 0
    %2727 = vmatpush2.bf16.msra.mxu0 0
    %2728 = vmatprep.subr.bf16.mxu0 0
    %2729 = vmatpush2.bf16.msra.mxu0 0
    %2730 = vmatprep.subr.bf16.mxu0 0
    %2731 = vmatpush2.bf16.msra.mxu0 0
    %2732 = vmatprep.subr.bf16.mxu0 0
    %2733 = vmatpush2.bf16.msra.mxu0 0
    %2734 = vmatprep.subr.bf16.mxu0 0
    %2735 = vmatpush2.bf16.msra.mxu0 0
    %2736 = vmatprep.subr.bf16.mxu0 0
    %2737 = vmatpush2.bf16.msra.mxu0 0
    %2738 = vmatprep.subr.bf16.mxu0 0
    %2739 = vmatpush2.bf16.msra.mxu0 0
    %2740 = vmatprep.mubr.bf16.mxu0 0
    %2741 = vmatmul.mubr.bf16.gmra.mxu0 %v2258
    %v2742 = vpop.f32.mrf.mxu0
    %v2743 = vadd.f32 0.0, %v2742
    %v2744 = vpop.f32.mrf.mxu0
    %v2745 = vadd.f32 0.0, %v2744
    %v2746 = vpop.f32.mrf.mxu0
    %v2747 = vadd.f32 0.0, %v2746
    %v2748 = vpop.f32.mrf.mxu0
    %v2749 = vadd.f32 0.0, %v2748
    %2750 = vmatprep.mubr.bf16.mxu0 0
    %2751 = vmatmul.mubr.bf16.gmra.mxu0 %v2259
    %v2752 = vpop.f32.mrf.mxu0
    %v2753 = vadd.f32 0.0, %v2752
    %v2754 = vpop.f32.mrf.mxu0
    %v2755 = vadd.f32 0.0, %v2754
    %v2756 = vpop.f32.mrf.mxu0
    %v2757 = vadd.f32 0.0, %v2756
    %v2758 = vpop.f32.mrf.mxu0
    %v2759 = vadd.f32 0.0, %v2758
    %2760 = vdwg.mxu0
    %2761 = vmatprep.subr.bf16.mxu0 %v2630
    %2762 = vmatpush1.bf16.msra.mxu0 %v2629
    %2763 = vmatprep.subr.bf16.mxu0 %v2621
    %2764 = vmatpush1.bf16.msra.mxu0 %v2620
    %2765 = vmatprep.subr.bf16.mxu0 %v2612
    %2766 = vmatpush1.bf16.msra.mxu0 %v2611
    %2767 = vmatprep.subr.bf16.mxu0 %v2603
    %2768 = vmatpush1.bf16.msra.mxu0 %v2602
    %2769 = vmatprep.subr.bf16.mxu0 %v2594
    %2770 = vmatpush1.bf16.msra.mxu0 %v2593
    %2771 = vmatprep.subr.bf16.mxu0 %v2585
    %2772 = vmatpush1.bf16.msra.mxu0 %v2584
    %2773 = vmatprep.subr.bf16.mxu0 %v2576
    %2774 = vmatpush1.bf16.msra.mxu0 %v2575
    %2775 = vmatprep.subr.bf16.mxu0 %v2567
    %2776 = vmatpush1.bf16.msra.mxu0 %v2566
    %2777 = vmatprep.subr.bf16.mxu0 0
    %2778 = vmatpush2.bf16.msra.mxu0 0
    %2779 = vmatprep.subr.bf16.mxu0 0
    %2780 = vmatpush2.bf16.msra.mxu0 0
    %2781 = vmatprep.subr.bf16.mxu0 0
    %2782 = vmatpush2.bf16.msra.mxu0 0
    %2783 = vmatprep.subr.bf16.mxu0 0
    %2784 = vmatpush2.bf16.msra.mxu0 0
    %2785 = vmatprep.subr.bf16.mxu0 0
    %2786 = vmatpush2.bf16.msra.mxu0 0
    %2787 = vmatprep.subr.bf16.mxu0 0
    %2788 = vmatpush2.bf16.msra.mxu0 0
    %2789 = vmatprep.subr.bf16.mxu0 0
    %2790 = vmatpush2.bf16.msra.mxu0 0
    %2791 = vmatprep.subr.bf16.mxu0 0
    %2792 = vmatpush2.bf16.msra.mxu0 0
    %2793 = vmatprep.mubr.bf16.mxu0 0
    %2794 = vmatmul.mubr.bf16.gmra.mxu0 %v2258
    %v2795 = vpop.f32.mrf.mxu0
    %v2796 = vadd.f32 0.0, %v2795
    %v2797 = vpop.f32.mrf.mxu0
    %v2798 = vadd.f32 0.0, %v2797
    %v2799 = vpop.f32.mrf.mxu0
    %v2800 = vadd.f32 0.0, %v2799
    %v2801 = vpop.f32.mrf.mxu0
    %v2802 = vadd.f32 0.0, %v2801
    %2803 = vmatprep.mubr.bf16.mxu0 0
    %2804 = vmatmul.mubr.bf16.gmra.mxu0 %v2259
    %v2805 = vpop.f32.mrf.mxu0
    %v2806 = vadd.f32 0.0, %v2805
    %v2807 = vpop.f32.mrf.mxu0
    %v2808 = vadd.f32 0.0, %v2807
    %v2809 = vpop.f32.mrf.mxu0
    %v2810 = vadd.f32 0.0, %v2809
    %v2811 = vpop.f32.mrf.mxu0
    %v2812 = vadd.f32 0.0, %v2811
    %2813 = vdwg.mxu0
    %2814 = vmatprep.subr.bf16.mxu0 %v2632
    %2815 = vmatpush1.bf16.msra.mxu0 %v2631
    %2816 = vmatprep.subr.bf16.mxu0 %v2623
    %2817 = vmatpush1.bf16.msra.mxu0 %v2622
    %2818 = vmatprep.subr.bf16.mxu0 %v2614
    %2819 = vmatpush1.bf16.msra.mxu0 %v2613
    %2820 = vmatprep.subr.bf16.mxu0 %v2605
    %2821 = vmatpush1.bf16.msra.mxu0 %v2604
    %2822 = vmatprep.subr.bf16.mxu0 %v2596
    %2823 = vmatpush1.bf16.msra.mxu0 %v2595
    %2824 = vmatprep.subr.bf16.mxu0 %v2587
    %2825 = vmatpush1.bf16.msra.mxu0 %v2586
    %2826 = vmatprep.subr.bf16.mxu0 %v2578
    %2827 = vmatpush1.bf16.msra.mxu0 %v2577
    %2828 = vmatprep.subr.bf16.mxu0 %v2569
    %2829 = vmatpush1.bf16.msra.mxu0 %v2568
    %2830 = vmatprep.subr.bf16.mxu0 0
    %2831 = vmatpush2.bf16.msra.mxu0 0
    %2832 = vmatprep.subr.bf16.mxu0 0
    %2833 = vmatpush2.bf16.msra.mxu0 0
    %2834 = vmatprep.subr.bf16.mxu0 0
    %2835 = vmatpush2.bf16.msra.mxu0 0
    %2836 = vmatprep.subr.bf16.mxu0 0
    %2837 = vmatpush2.bf16.msra.mxu0 0
    %2838 = vmatprep.subr.bf16.mxu0 0
    %2839 = vmatpush2.bf16.msra.mxu0 0
    %2840 = vmatprep.subr.bf16.mxu0 0
    %2841 = vmatpush2.bf16.msra.mxu0 0
    %2842 = vmatprep.subr.bf16.mxu0 0
    %2843 = vmatpush2.bf16.msra.mxu0 0
    %2844 = vmatprep.subr.bf16.mxu0 0
    %2845 = vmatpush2.bf16.msra.mxu0 0
    %2846 = vmatprep.mubr.bf16.mxu0 0
    %2847 = vmatmul.mubr.bf16.gmra.mxu0 %v2258
    %v2848 = vpop.f32.mrf.mxu0
    %v2849 = vadd.f32 0.0, %v2848
    %v2850 = vpop.f32.mrf.mxu0
    %v2851 = vadd.f32 0.0, %v2850
    %v2852 = vpop.f32.mrf.mxu0
    %v2853 = vadd.f32 0.0, %v2852
    %v2854 = vpop.f32.mrf.mxu0
    %v2855 = vadd.f32 0.0, %v2854
    %2856 = vmatprep.mubr.bf16.mxu0 0
    %2857 = vmatmul.mubr.bf16.gmra.mxu0 %v2259
    %v2858 = vpop.f32.mrf.mxu0
    %v2859 = vadd.f32 0.0, %v2858
    %v2860 = vpop.f32.mrf.mxu0
    %v2861 = vadd.f32 0.0, %v2860
    %v2862 = vpop.f32.mrf.mxu0
    %v2863 = vadd.f32 0.0, %v2862
    %v2864 = vpop.f32.mrf.mxu0
    %v2865 = vadd.f32 0.0, %v2864
    %2866 = vdwg.mxu0
    %2867 = vmatprep.subr.bf16.mxu0 %v2634
    %2868 = vmatpush1.bf16.msra.mxu0 %v2633
    %2869 = vmatprep.subr.bf16.mxu0 %v2625
    %2870 = vmatpush1.bf16.msra.mxu0 %v2624
    %2871 = vmatprep.subr.bf16.mxu0 %v2616
    %2872 = vmatpush1.bf16.msra.mxu0 %v2615
    %2873 = vmatprep.subr.bf16.mxu0 %v2607
    %2874 = vmatpush1.bf16.msra.mxu0 %v2606
    %2875 = vmatprep.subr.bf16.mxu0 %v2598
    %2876 = vmatpush1.bf16.msra.mxu0 %v2597
    %2877 = vmatprep.subr.bf16.mxu0 %v2589
    %2878 = vmatpush1.bf16.msra.mxu0 %v2588
    %2879 = vmatprep.subr.bf16.mxu0 %v2580
    %2880 = vmatpush1.bf16.msra.mxu0 %v2579
    %2881 = vmatprep.subr.bf16.mxu0 %v2571
    %2882 = vmatpush1.bf16.msra.mxu0 %v2570
    %2883 = vmatprep.subr.bf16.mxu0 0
    %2884 = vmatpush2.bf16.msra.mxu0 0
    %2885 = vmatprep.subr.bf16.mxu0 0
    %2886 = vmatpush2.bf16.msra.mxu0 0
    %2887 = vmatprep.subr.bf16.mxu0 0
    %2888 = vmatpush2.bf16.msra.mxu0 0
    %2889 = vmatprep.subr.bf16.mxu0 0
    %2890 = vmatpush2.bf16.msra.mxu0 0
    %2891 = vmatprep.subr.bf16.mxu0 0
    %2892 = vmatpush2.bf16.msra.mxu0 0
    %2893 = vmatprep.subr.bf16.mxu0 0
    %2894 = vmatpush2.bf16.msra.mxu0 0
    %2895 = vmatprep.subr.bf16.mxu0 0
    %2896 = vmatpush2.bf16.msra.mxu0 0
    %2897 = vmatprep.subr.bf16.mxu0 0
    %2898 = vmatpush2.bf16.msra.mxu0 0
    %2899 = vmatprep.mubr.bf16.mxu0 0
    %2900 = vmatmul.mubr.bf16.gmra.mxu0 %v2258
    %v2901 = vpop.f32.mrf.mxu0
    %v2902 = vadd.f32 0.0, %v2901
    %v2903 = vpop.f32.mrf.mxu0
    %v2904 = vadd.f32 0.0, %v2903
    %v2905 = vpop.f32.mrf.mxu0
    %v2906 = vadd.f32 0.0, %v2905
    %v2907 = vpop.f32.mrf.mxu0
    %v2908 = vadd.f32 0.0, %v2907
    %2909 = vmatprep.mubr.bf16.mxu0 0
    %2910 = vmatmul.mubr.bf16.gmra.mxu0 %v2259
    %v2911 = vpop.f32.mrf.mxu0
    %v2912 = vadd.f32 0.0, %v2911
    %v2913 = vpop.f32.mrf.mxu0
    %v2914 = vadd.f32 0.0, %v2913
    %v2915 = vpop.f32.mrf.mxu0
    %v2916 = vadd.f32 0.0, %v2915
    %v2917 = vpop.f32.mrf.mxu0
    %v2918 = vadd.f32 0.0, %v2917
    %2919 = vdwg.mxu0
    %2920 = vmatprep.subr.bf16.mxu0 0
    %2921 = vmatpush1.bf16.msra.mxu0 %v2635
    %2922 = vmatprep.subr.bf16.mxu0 0
    %2923 = vmatpush1.bf16.msra.mxu0 %v2626
    %2924 = vmatprep.subr.bf16.mxu0 0
    %2925 = vmatpush1.bf16.msra.mxu0 %v2617
    %2926 = vmatprep.subr.bf16.mxu0 0
    %2927 = vmatpush1.bf16.msra.mxu0 %v2608
    %2928 = vmatprep.subr.bf16.mxu0 0
    %2929 = vmatpush1.bf16.msra.mxu0 %v2599
    %2930 = vmatprep.subr.bf16.mxu0 0
    %2931 = vmatpush1.bf16.msra.mxu0 %v2590
    %2932 = vmatprep.subr.bf16.mxu0 0
    %2933 = vmatpush1.bf16.msra.mxu0 %v2581
    %2934 = vmatprep.subr.bf16.mxu0 0
    %2935 = vmatpush1.bf16.msra.mxu0 %v2572
    %2936 = vmatprep.subr.bf16.mxu0 0
    %2937 = vmatpush2.bf16.msra.mxu0 0
    %2938 = vmatprep.subr.bf16.mxu0 0
    %2939 = vmatpush2.bf16.msra.mxu0 0
    %2940 = vmatprep.subr.bf16.mxu0 0
    %2941 = vmatpush2.bf16.msra.mxu0 0
    %2942 = vmatprep.subr.bf16.mxu0 0
    %2943 = vmatpush2.bf16.msra.mxu0 0
    %2944 = vmatprep.subr.bf16.mxu0 0
    %2945 = vmatpush2.bf16.msra.mxu0 0
    %2946 = vmatprep.subr.bf16.mxu0 0
    %2947 = vmatpush2.bf16.msra.mxu0 0
    %2948 = vmatprep.subr.bf16.mxu0 0
    %2949 = vmatpush2.bf16.msra.mxu0 0
    %2950 = vmatprep.subr.bf16.mxu0 0
    %2951 = vmatpush2.bf16.msra.mxu0 0
    %2952 = vmatprep.mubr.bf16.mxu0 0
    %2953 = vmatmul.mubr.bf16.gmra.mxu0 %v2258
    %v2954 = vpop.f32.mrf.mxu0
    %v2955 = vadd.f32 0.0, %v2954
    %v2956 = vpop.f32.mrf.mxu0
    %v2957 = vpop.f32.mrf.mxu0
    %v2958 = vadd.f32 0.0, %v2957
    %v2959 = vpop.f32.mrf.mxu0
    %2960 = vmatprep.mubr.bf16.mxu0 0
    %2961 = vmatmul.mubr.bf16.gmra.mxu0 %v2259
    %v2962 = vpop.f32.mrf.mxu0
    %v2963 = vadd.f32 0.0, %v2962
    %v2964 = vpop.f32.mrf.mxu0
    %v2965 = vpop.f32.mrf.mxu0
    %v2966 = vadd.f32 0.0, %v2965
    %v2967 = vpop.f32.mrf.mxu0
    %2968 = vdwg.mxu0
    %v2969 = vld [vmem:[%s6] sm:$0xff]
    %s2970 = scalar_lea.vmem %s6, 8
    %v2971 = vld [vmem:[%s2970] sm:$0xff]
    %v2973 = vsel %vm171, %v2971, 0
    %2975 = vmatprep.subr.mxu0 0.0
    %2976 = vmatpush1.msra.mxu0 0.0
    %2977 = vmatprep.subr.mxu0 0.0
    %2978 = vmatpush1.msra.mxu0 0.0
    %2979 = vmatprep.subr.mxu0 0.0
    %2980 = vmatpush1.msra.mxu0 0.0
    %2981 = vmatprep.subr.mxu0 0.0
    %2982 = vmatpush1.msra.mxu0 0.0
    %2983 = vmatprep.subr.mxu0 0.0
    %2984 = vmatpush1.msra.mxu0 0.0
    %2985 = vmatprep.subr.mxu0 0.0
    %2986 = vmatpush1.msra.mxu0 0.0
    %2987 = vmatprep.subr.mxu0 0.0
    %2988 = vmatpush1.msra.mxu0 0.0
    %2989 = vmatprep.subr.mxu0 0.0
    %2990 = vmatpush1.msra.mxu0 0.0
    %2991 = vmatprep.subr.mxu0 0.0
    %2992 = vmatpush1.msra.mxu0 0.0
    %2993 = vmatprep.subr.mxu0 0.0
    %2994 = vmatpush1.msra.mxu0 0.0
    %2995 = vmatprep.subr.mxu0 0.0
    %2996 = vmatpush1.msra.mxu0 0.0
    %2997 = vmatprep.subr.mxu0 0.0
    %2998 = vmatpush1.msra.mxu0 0.0
    %2999 = vmatprep.subr.mxu0 0.0
    %3000 = vmatpush1.msra.mxu0 %v2759
    %3001 = vmatprep.subr.mxu0 0.0
    %3002 = vmatpush1.msra.mxu0 %v2755
    %3003 = vmatprep.subr.mxu0 0.0
    %3004 = vmatpush1.msra.mxu0 %v2749
    %3005 = vmatprep.subr.mxu0 0.0
    %3006 = vmatpush1.msra.mxu0 %v2745
    %3007 = vmatprep.subr.mxu0 0.0
    %3008 = vmatpush2.msra.mxu0 0.0
    %3009 = vmatprep.subr.mxu0 0.0
    %3010 = vmatpush2.msra.mxu0 0.0
    %3011 = vmatprep.subr.mxu0 0.0
    %3012 = vmatpush2.msra.mxu0 0.0
    %3013 = vmatprep.subr.mxu0 0.0
    %3014 = vmatpush2.msra.mxu0 0.0
    %3015 = vmatprep.subr.mxu0 0.0
    %3016 = vmatpush2.msra.mxu0 0.0
    %3017 = vmatprep.subr.mxu0 0.0
    %3018 = vmatpush2.msra.mxu0 0.0
    %3019 = vmatprep.subr.mxu0 0.0
    %3020 = vmatpush2.msra.mxu0 0.0
    %3021 = vmatprep.subr.mxu0 0.0
    %3022 = vmatpush2.msra.mxu0 0.0
    %3023 = vmatprep.subr.mxu0 0.0
    %3024 = vmatpush2.msra.mxu0 0.0
    %3025 = vmatprep.subr.mxu0 0.0
    %3026 = vmatpush2.msra.mxu0 0.0
    %3027 = vmatprep.subr.mxu0 0.0
    %3028 = vmatpush2.msra.mxu0 0.0
    %3029 = vmatprep.subr.mxu0 0.0
    %3030 = vmatpush2.msra.mxu0 0.0
    %3031 = vmatprep.subr.mxu0 0.0
    %3032 = vmatpush2.msra.mxu0 0.0
    %3033 = vmatprep.subr.mxu0 0.0
    %3034 = vmatpush2.msra.mxu0 0.0
    %3035 = vmatprep.subr.mxu0 0.0
    %3036 = vmatpush2.msra.mxu0 0.0
    %3037 = vmatprep.subr.mxu0 0.0
    %3038 = vmatpush2.msra.mxu0 0.0
    %3039 = vmatprep.mubr.f32.mxu0 0.0
    %3040 = vmatmul.mubr.f32.gmra.mxu0 %v2973
    %v3041 = vpop.f32.mrf.mxu0
    %v3042 = vadd.f32 0.0, %v3041
    %v3043 = vpop.f32.mrf.mxu0
    %3044 = vdwg.mxu0
    %v3046 = vsel %vm171, %v2969, 0
    %3048 = vmatprep.subr.mxu0 0.0
    %3049 = vmatpush1.msra.mxu0 0.0
    %3050 = vmatprep.subr.mxu0 0.0
    %3051 = vmatpush1.msra.mxu0 0.0
    %3052 = vmatprep.subr.mxu0 0.0
    %3053 = vmatpush1.msra.mxu0 0.0
    %3054 = vmatprep.subr.mxu0 0.0
    %3055 = vmatpush1.msra.mxu0 0.0
    %3056 = vmatprep.subr.mxu0 0.0
    %3057 = vmatpush1.msra.mxu0 0.0
    %3058 = vmatprep.subr.mxu0 0.0
    %3059 = vmatpush1.msra.mxu0 0.0
    %3060 = vmatprep.subr.mxu0 0.0
    %3061 = vmatpush1.msra.mxu0 0.0
    %3062 = vmatprep.subr.mxu0 0.0
    %3063 = vmatpush1.msra.mxu0 0.0
    %3064 = vmatprep.subr.mxu0 0.0
    %3065 = vmatpush1.msra.mxu0 0.0
    %3066 = vmatprep.subr.mxu0 0.0
    %3067 = vmatpush1.msra.mxu0 0.0
    %3068 = vmatprep.subr.mxu0 0.0
    %3069 = vmatpush1.msra.mxu0 0.0
    %3070 = vmatprep.subr.mxu0 0.0
    %3071 = vmatpush1.msra.mxu0 0.0
    %3072 = vmatprep.subr.mxu0 0.0
    %3073 = vmatpush1.msra.mxu0 %v2757
    %3074 = vmatprep.subr.mxu0 0.0
    %3075 = vmatpush1.msra.mxu0 %v2753
    %3076 = vmatprep.subr.mxu0 0.0
    %3077 = vmatpush1.msra.mxu0 %v2747
    %3078 = vmatprep.subr.mxu0 0.0
    %3079 = vmatpush1.msra.mxu0 %v2743
    %3080 = vmatprep.subr.mxu0 0.0
    %3081 = vmatpush2.msra.mxu0 0.0
    %3082 = vmatprep.subr.mxu0 0.0
    %3083 = vmatpush2.msra.mxu0 0.0
    %3084 = vmatprep.subr.mxu0 0.0
    %3085 = vmatpush2.msra.mxu0 0.0
    %3086 = vmatprep.subr.mxu0 0.0
    %3087 = vmatpush2.msra.mxu0 0.0
    %3088 = vmatprep.subr.mxu0 0.0
    %3089 = vmatpush2.msra.mxu0 0.0
    %3090 = vmatprep.subr.mxu0 0.0
    %3091 = vmatpush2.msra.mxu0 0.0
    %3092 = vmatprep.subr.mxu0 0.0
    %3093 = vmatpush2.msra.mxu0 0.0
    %3094 = vmatprep.subr.mxu0 0.0
    %3095 = vmatpush2.msra.mxu0 0.0
    %3096 = vmatprep.subr.mxu0 0.0
    %3097 = vmatpush2.msra.mxu0 0.0
    %3098 = vmatprep.subr.mxu0 0.0
    %3099 = vmatpush2.msra.mxu0 0.0
    %3100 = vmatprep.subr.mxu0 0.0
    %3101 = vmatpush2.msra.mxu0 0.0
    %3102 = vmatprep.subr.mxu0 0.0
    %3103 = vmatpush2.msra.mxu0 0.0
    %3104 = vmatprep.subr.mxu0 0.0
    %3105 = vmatpush2.msra.mxu0 0.0
    %3106 = vmatprep.subr.mxu0 0.0
    %3107 = vmatpush2.msra.mxu0 0.0
    %3108 = vmatprep.subr.mxu0 0.0
    %3109 = vmatpush2.msra.mxu0 0.0
    %3110 = vmatprep.subr.mxu0 0.0
    %3111 = vmatpush2.msra.mxu0 0.0
    %3112 = vmatprep.mubr.f32.mxu0 0.0
    %3113 = vmatmul.mubr.f32.gmra.mxu0 %v3046
    %v3114 = vpop.f32.mrf.mxu0
    %v3115 = vadd.f32 %v3042, %v3114
    %v3116 = vpop.f32.mrf.mxu0
    %3117 = vdwg.mxu0
    %s3118 = scalar_lea.vmem %s6, 16
    %v3119 = vld [vmem:[%s3118] sm:$0xff]
    %v3121 = vsel %vm171, %v3119, 0
    %3123 = vmatprep.subr.mxu0 0.0
    %3124 = vmatpush1.msra.mxu0 0.0
    %3125 = vmatprep.subr.mxu0 0.0
    %3126 = vmatpush1.msra.mxu0 0.0
    %3127 = vmatprep.subr.mxu0 0.0
    %3128 = vmatpush1.msra.mxu0 0.0
    %3129 = vmatprep.subr.mxu0 0.0
    %3130 = vmatpush1.msra.mxu0 0.0
    %3131 = vmatprep.subr.mxu0 0.0
    %3132 = vmatpush1.msra.mxu0 0.0
    %3133 = vmatprep.subr.mxu0 0.0
    %3134 = vmatpush1.msra.mxu0 0.0
    %3135 = vmatprep.subr.mxu0 0.0
    %3136 = vmatpush1.msra.mxu0 0.0
    %3137 = vmatprep.subr.mxu0 0.0
    %3138 = vmatpush1.msra.mxu0 0.0
    %3139 = vmatprep.subr.mxu0 0.0
    %3140 = vmatpush1.msra.mxu0 0.0
    %3141 = vmatprep.subr.mxu0 0.0
    %3142 = vmatpush1.msra.mxu0 0.0
    %3143 = vmatprep.subr.mxu0 0.0
    %3144 = vmatpush1.msra.mxu0 0.0
    %3145 = vmatprep.subr.mxu0 0.0
    %3146 = vmatpush1.msra.mxu0 0.0
    %3147 = vmatprep.subr.mxu0 0.0
    %3148 = vmatpush1.msra.mxu0 %v2810
    %3149 = vmatprep.subr.mxu0 0.0
    %3150 = vmatpush1.msra.mxu0 %v2806
    %3151 = vmatprep.subr.mxu0 0.0
    %3152 = vmatpush1.msra.mxu0 %v2800
    %3153 = vmatprep.subr.mxu0 0.0
    %3154 = vmatpush1.msra.mxu0 %v2796
    %3155 = vmatprep.subr.mxu0 0.0
    %3156 = vmatpush2.msra.mxu0 0.0
    %3157 = vmatprep.subr.mxu0 0.0
    %3158 = vmatpush2.msra.mxu0 0.0
    %3159 = vmatprep.subr.mxu0 0.0
    %3160 = vmatpush2.msra.mxu0 0.0
    %3161 = vmatprep.subr.mxu0 0.0
    %3162 = vmatpush2.msra.mxu0 0.0
    %3163 = vmatprep.subr.mxu0 0.0
    %3164 = vmatpush2.msra.mxu0 0.0
    %3165 = vmatprep.subr.mxu0 0.0
    %3166 = vmatpush2.msra.mxu0 0.0
    %3167 = vmatprep.subr.mxu0 0.0
    %3168 = vmatpush2.msra.mxu0 0.0
    %3169 = vmatprep.subr.mxu0 0.0
    %3170 = vmatpush2.msra.mxu0 0.0
    %3171 = vmatprep.subr.mxu0 0.0
    %3172 = vmatpush2.msra.mxu0 0.0
    %3173 = vmatprep.subr.mxu0 0.0
    %3174 = vmatpush2.msra.mxu0 0.0
    %3175 = vmatprep.subr.mxu0 0.0
    %3176 = vmatpush2.msra.mxu0 0.0
    %3177 = vmatprep.subr.mxu0 0.0
    %3178 = vmatpush2.msra.mxu0 0.0
    %3179 = vmatprep.subr.mxu0 0.0
    %3180 = vmatpush2.msra.mxu0 0.0
    %3181 = vmatprep.subr.mxu0 0.0
    %3182 = vmatpush2.msra.mxu0 0.0
    %3183 = vmatprep.subr.mxu0 0.0
    %3184 = vmatpush2.msra.mxu0 0.0
    %3185 = vmatprep.subr.mxu0 0.0
    %3186 = vmatpush2.msra.mxu0 0.0
    %3187 = vmatprep.mubr.f32.mxu0 0.0
    %3188 = vmatmul.mubr.f32.gmra.mxu0 %v3121
    %v3189 = vpop.f32.mrf.mxu0
    %v3190 = vadd.f32 0.0, %v3189
    %v3191 = vpop.f32.mrf.mxu0
    %3192 = vdwg.mxu0
    %v3193 = vadd.f32 %v3115, %v3190
    %s3194 = scalar_lea.vmem %s6, 24
    %v3195 = vld [vmem:[%s3194] sm:$0xff]
    %v3197 = vsel %vm171, %v3195, 0
    %3199 = vmatprep.subr.mxu0 0.0
    %3200 = vmatpush1.msra.mxu0 0.0
    %3201 = vmatprep.subr.mxu0 0.0
    %3202 = vmatpush1.msra.mxu0 0.0
    %3203 = vmatprep.subr.mxu0 0.0
    %3204 = vmatpush1.msra.mxu0 0.0
    %3205 = vmatprep.subr.mxu0 0.0
    %3206 = vmatpush1.msra.mxu0 0.0
    %3207 = vmatprep.subr.mxu0 0.0
    %3208 = vmatpush1.msra.mxu0 0.0
    %3209 = vmatprep.subr.mxu0 0.0
    %3210 = vmatpush1.msra.mxu0 0.0
    %3211 = vmatprep.subr.mxu0 0.0
    %3212 = vmatpush1.msra.mxu0 0.0
    %3213 = vmatprep.subr.mxu0 0.0
    %3214 = vmatpush1.msra.mxu0 0.0
    %3215 = vmatprep.subr.mxu0 0.0
    %3216 = vmatpush1.msra.mxu0 0.0
    %3217 = vmatprep.subr.mxu0 0.0
    %3218 = vmatpush1.msra.mxu0 0.0
    %3219 = vmatprep.subr.mxu0 0.0
    %3220 = vmatpush1.msra.mxu0 0.0
    %3221 = vmatprep.subr.mxu0 0.0
    %3222 = vmatpush1.msra.mxu0 0.0
    %3223 = vmatprep.subr.mxu0 0.0
    %3224 = vmatpush1.msra.mxu0 %v2812
    %3225 = vmatprep.subr.mxu0 0.0
    %3226 = vmatpush1.msra.mxu0 %v2808
    %3227 = vmatprep.subr.mxu0 0.0
    %3228 = vmatpush1.msra.mxu0 %v2802
    %3229 = vmatprep.subr.mxu0 0.0
    %3230 = vmatpush1.msra.mxu0 %v2798
    %3231 = vmatprep.subr.mxu0 0.0
    %3232 = vmatpush2.msra.mxu0 0.0
    %3233 = vmatprep.subr.mxu0 0.0
    %3234 = vmatpush2.msra.mxu0 0.0
    %3235 = vmatprep.subr.mxu0 0.0
    %3236 = vmatpush2.msra.mxu0 0.0
    %3237 = vmatprep.subr.mxu0 0.0
    %3238 = vmatpush2.msra.mxu0 0.0
    %3239 = vmatprep.subr.mxu0 0.0
    %3240 = vmatpush2.msra.mxu0 0.0
    %3241 = vmatprep.subr.mxu0 0.0
    %3242 = vmatpush2.msra.mxu0 0.0
    %3243 = vmatprep.subr.mxu0 0.0
    %3244 = vmatpush2.msra.mxu0 0.0
    %3245 = vmatprep.subr.mxu0 0.0
    %3246 = vmatpush2.msra.mxu0 0.0
    %3247 = vmatprep.subr.mxu0 0.0
    %3248 = vmatpush2.msra.mxu0 0.0
    %3249 = vmatprep.subr.mxu0 0.0
    %3250 = vmatpush2.msra.mxu0 0.0
    %3251 = vmatprep.subr.mxu0 0.0
    %3252 = vmatpush2.msra.mxu0 0.0
    %3253 = vmatprep.subr.mxu0 0.0
    %3254 = vmatpush2.msra.mxu0 0.0
    %3255 = vmatprep.subr.mxu0 0.0
    %3256 = vmatpush2.msra.mxu0 0.0
    %3257 = vmatprep.subr.mxu0 0.0
    %3258 = vmatpush2.msra.mxu0 0.0
    %3259 = vmatprep.subr.mxu0 0.0
    %3260 = vmatpush2.msra.mxu0 0.0
    %3261 = vmatprep.subr.mxu0 0.0
    %3262 = vmatpush2.msra.mxu0 0.0
    %3263 = vmatprep.mubr.f32.mxu0 0.0
    %3264 = vmatmul.mubr.f32.gmra.mxu0 %v3197
    %v3265 = vpop.f32.mrf.mxu0
    %v3266 = vadd.f32 0.0, %v3265
    %v3267 = vpop.f32.mrf.mxu0
    %3268 = vdwg.mxu0
    %v3269 = vadd.f32 %v3193, %v3266
    %s3270 = scalar_lea.vmem %s6, 32
    %v3271 = vld [vmem:[%s3270] sm:$0xff]
    %v3273 = vsel %vm171, %v3271, 0
    %3275 = vmatprep.subr.mxu0 0.0
    %3276 = vmatpush1.msra.mxu0 0.0
    %3277 = vmatprep.subr.mxu0 0.0
    %3278 = vmatpush1.msra.mxu0 0.0
    %3279 = vmatprep.subr.mxu0 0.0
    %3280 = vmatpush1.msra.mxu0 0.0
    %3281 = vmatprep.subr.mxu0 0.0
    %3282 = vmatpush1.msra.mxu0 0.0
    %3283 = vmatprep.subr.mxu0 0.0
    %3284 = vmatpush1.msra.mxu0 0.0
    %3285 = vmatprep.subr.mxu0 0.0
    %3286 = vmatpush1.msra.mxu0 0.0
    %3287 = vmatprep.subr.mxu0 0.0
    %3288 = vmatpush1.msra.mxu0 0.0
    %3289 = vmatprep.subr.mxu0 0.0
    %3290 = vmatpush1.msra.mxu0 0.0
    %3291 = vmatprep.subr.mxu0 0.0
    %3292 = vmatpush1.msra.mxu0 0.0
    %3293 = vmatprep.subr.mxu0 0.0
    %3294 = vmatpush1.msra.mxu0 0.0
    %3295 = vmatprep.subr.mxu0 0.0
    %3296 = vmatpush1.msra.mxu0 0.0
    %3297 = vmatprep.subr.mxu0 0.0
    %3298 = vmatpush1.msra.mxu0 0.0
    %3299 = vmatprep.subr.mxu0 0.0
    %3300 = vmatpush1.msra.mxu0 %v2863
    %3301 = vmatprep.subr.mxu0 0.0
    %3302 = vmatpush1.msra.mxu0 %v2859
    %3303 = vmatprep.subr.mxu0 0.0
    %3304 = vmatpush1.msra.mxu0 %v2853
    %3305 = vmatprep.subr.mxu0 0.0
    %3306 = vmatpush1.msra.mxu0 %v2849
    %3307 = vmatprep.subr.mxu0 0.0
    %3308 = vmatpush2.msra.mxu0 0.0
    %3309 = vmatprep.subr.mxu0 0.0
    %3310 = vmatpush2.msra.mxu0 0.0
    %3311 = vmatprep.subr.mxu0 0.0
    %3312 = vmatpush2.msra.mxu0 0.0
    %3313 = vmatprep.subr.mxu0 0.0
    %3314 = vmatpush2.msra.mxu0 0.0
    %3315 = vmatprep.subr.mxu0 0.0
    %3316 = vmatpush2.msra.mxu0 0.0
    %3317 = vmatprep.subr.mxu0 0.0
    %3318 = vmatpush2.msra.mxu0 0.0
    %3319 = vmatprep.subr.mxu0 0.0
    %3320 = vmatpush2.msra.mxu0 0.0
    %3321 = vmatprep.subr.mxu0 0.0
    %3322 = vmatpush2.msra.mxu0 0.0
    %3323 = vmatprep.subr.mxu0 0.0
    %3324 = vmatpush2.msra.mxu0 0.0
    %3325 = vmatprep.subr.mxu0 0.0
    %3326 = vmatpush2.msra.mxu0 0.0
    %3327 = vmatprep.subr.mxu0 0.0
    %3328 = vmatpush2.msra.mxu0 0.0
    %3329 = vmatprep.subr.mxu0 0.0
    %3330 = vmatpush2.msra.mxu0 0.0
    %3331 = vmatprep.subr.mxu0 0.0
    %3332 = vmatpush2.msra.mxu0 0.0
    %3333 = vmatprep.subr.mxu0 0.0
    %3334 = vmatpush2.msra.mxu0 0.0
    %3335 = vmatprep.subr.mxu0 0.0
    %3336 = vmatpush2.msra.mxu0 0.0
    %3337 = vmatprep.subr.mxu0 0.0
    %3338 = vmatpush2.msra.mxu0 0.0
    %3339 = vmatprep.mubr.f32.mxu0 0.0
    %3340 = vmatmul.mubr.f32.gmra.mxu0 %v3273
    %v3341 = vpop.f32.mrf.mxu0
    %v3342 = vadd.f32 0.0, %v3341
    %v3343 = vpop.f32.mrf.mxu0
    %3344 = vdwg.mxu0
    %v3345 = vadd.f32 %v3269, %v3342
    %s3346 = scalar_lea.vmem %s6, 40
    %v3347 = vld [vmem:[%s3346] sm:$0xff]
    %v3349 = vsel %vm171, %v3347, 0
    %3351 = vmatprep.subr.mxu0 0.0
    %3352 = vmatpush1.msra.mxu0 0.0
    %3353 = vmatprep.subr.mxu0 0.0
    %3354 = vmatpush1.msra.mxu0 0.0
    %3355 = vmatprep.subr.mxu0 0.0
    %3356 = vmatpush1.msra.mxu0 0.0
    %3357 = vmatprep.subr.mxu0 0.0
    %3358 = vmatpush1.msra.mxu0 0.0
    %3359 = vmatprep.subr.mxu0 0.0
    %3360 = vmatpush1.msra.mxu0 0.0
    %3361 = vmatprep.subr.mxu0 0.0
    %3362 = vmatpush1.msra.mxu0 0.0
    %3363 = vmatprep.subr.mxu0 0.0
    %3364 = vmatpush1.msra.mxu0 0.0
    %3365 = vmatprep.subr.mxu0 0.0
    %3366 = vmatpush1.msra.mxu0 0.0
    %3367 = vmatprep.subr.mxu0 0.0
    %3368 = vmatpush1.msra.mxu0 0.0
    %3369 = vmatprep.subr.mxu0 0.0
    %3370 = vmatpush1.msra.mxu0 0.0
    %3371 = vmatprep.subr.mxu0 0.0
    %3372 = vmatpush1.msra.mxu0 0.0
    %3373 = vmatprep.subr.mxu0 0.0
    %3374 = vmatpush1.msra.mxu0 0.0
    %3375 = vmatprep.subr.mxu0 0.0
    %3376 = vmatpush1.msra.mxu0 %v2865
    %3377 = vmatprep.subr.mxu0 0.0
    %3378 = vmatpush1.msra.mxu0 %v2861
    %3379 = vmatprep.subr.mxu0 0.0
    %3380 = vmatpush1.msra.mxu0 %v2855
    %3381 = vmatprep.subr.mxu0 0.0
    %3382 = vmatpush1.msra.mxu0 %v2851
    %3383 = vmatprep.subr.mxu0 0.0
    %3384 = vmatpush2.msra.mxu0 0.0
    %3385 = vmatprep.subr.mxu0 0.0
    %3386 = vmatpush2.msra.mxu0 0.0
    %3387 = vmatprep.subr.mxu0 0.0
    %3388 = vmatpush2.msra.mxu0 0.0
    %3389 = vmatprep.subr.mxu0 0.0
    %3390 = vmatpush2.msra.mxu0 0.0
    %3391 = vmatprep.subr.mxu0 0.0
    %3392 = vmatpush2.msra.mxu0 0.0
    %3393 = vmatprep.subr.mxu0 0.0
    %3394 = vmatpush2.msra.mxu0 0.0
    %3395 = vmatprep.subr.mxu0 0.0
    %3396 = vmatpush2.msra.mxu0 0.0
    %3397 = vmatprep.subr.mxu0 0.0
    %3398 = vmatpush2.msra.mxu0 0.0
    %3399 = vmatprep.subr.mxu0 0.0
    %3400 = vmatpush2.msra.mxu0 0.0
    %3401 = vmatprep.subr.mxu0 0.0
    %3402 = vmatpush2.msra.mxu0 0.0
    %3403 = vmatprep.subr.mxu0 0.0
    %3404 = vmatpush2.msra.mxu0 0.0
    %3405 = vmatprep.subr.mxu0 0.0
    %3406 = vmatpush2.msra.mxu0 0.0
    %3407 = vmatprep.subr.mxu0 0.0
    %3408 = vmatpush2.msra.mxu0 0.0
    %3409 = vmatprep.subr.mxu0 0.0
    %3410 = vmatpush2.msra.mxu0 0.0
    %3411 = vmatprep.subr.mxu0 0.0
    %3412 = vmatpush2.msra.mxu0 0.0
    %3413 = vmatprep.subr.mxu0 0.0
    %3414 = vmatpush2.msra.mxu0 0.0
    %3415 = vmatprep.mubr.f32.mxu0 0.0
    %3416 = vmatmul.mubr.f32.gmra.mxu0 %v3349
    %v3417 = vpop.f32.mrf.mxu0
    %v3418 = vadd.f32 0.0, %v3417
    %v3419 = vpop.f32.mrf.mxu0
    %3420 = vdwg.mxu0
    %v3421 = vadd.f32 %v3345, %v3418
    %s3422 = scalar_lea.vmem %s6, 48
    %v3423 = vld [vmem:[%s3422] sm:$0xff]
    %v3425 = vsel %vm171, %v3423, 0
    %3427 = vmatprep.subr.mxu0 0.0
    %3428 = vmatpush1.msra.mxu0 0.0
    %3429 = vmatprep.subr.mxu0 0.0
    %3430 = vmatpush1.msra.mxu0 0.0
    %3431 = vmatprep.subr.mxu0 0.0
    %3432 = vmatpush1.msra.mxu0 0.0
    %3433 = vmatprep.subr.mxu0 0.0
    %3434 = vmatpush1.msra.mxu0 0.0
    %3435 = vmatprep.subr.mxu0 0.0
    %3436 = vmatpush1.msra.mxu0 0.0
    %3437 = vmatprep.subr.mxu0 0.0
    %3438 = vmatpush1.msra.mxu0 0.0
    %3439 = vmatprep.subr.mxu0 0.0
    %3440 = vmatpush1.msra.mxu0 0.0
    %3441 = vmatprep.subr.mxu0 0.0
    %3442 = vmatpush1.msra.mxu0 0.0
    %3443 = vmatprep.subr.mxu0 0.0
    %3444 = vmatpush1.msra.mxu0 0.0
    %3445 = vmatprep.subr.mxu0 0.0
    %3446 = vmatpush1.msra.mxu0 0.0
    %3447 = vmatprep.subr.mxu0 0.0
    %3448 = vmatpush1.msra.mxu0 0.0
    %3449 = vmatprep.subr.mxu0 0.0
    %3450 = vmatpush1.msra.mxu0 0.0
    %3451 = vmatprep.subr.mxu0 0.0
    %3452 = vmatpush1.msra.mxu0 %v2916
    %3453 = vmatprep.subr.mxu0 0.0
    %3454 = vmatpush1.msra.mxu0 %v2912
    %3455 = vmatprep.subr.mxu0 0.0
    %3456 = vmatpush1.msra.mxu0 %v2906
    %3457 = vmatprep.subr.mxu0 0.0
    %3458 = vmatpush1.msra.mxu0 %v2902
    %3459 = vmatprep.subr.mxu0 0.0
    %3460 = vmatpush2.msra.mxu0 0.0
    %3461 = vmatprep.subr.mxu0 0.0
    %3462 = vmatpush2.msra.mxu0 0.0
    %3463 = vmatprep.subr.mxu0 0.0
    %3464 = vmatpush2.msra.mxu0 0.0
    %3465 = vmatprep.subr.mxu0 0.0
    %3466 = vmatpush2.msra.mxu0 0.0
    %3467 = vmatprep.subr.mxu0 0.0
    %3468 = vmatpush2.msra.mxu0 0.0
    %3469 = vmatprep.subr.mxu0 0.0
    %3470 = vmatpush2.msra.mxu0 0.0
    %3471 = vmatprep.subr.mxu0 0.0
    %3472 = vmatpush2.msra.mxu0 0.0
    %3473 = vmatprep.subr.mxu0 0.0
    %3474 = vmatpush2.msra.mxu0 0.0
    %3475 = vmatprep.subr.mxu0 0.0
    %3476 = vmatpush2.msra.mxu0 0.0
    %3477 = vmatprep.subr.mxu0 0.0
    %3478 = vmatpush2.msra.mxu0 0.0
    %3479 = vmatprep.subr.mxu0 0.0
    %3480 = vmatpush2.msra.mxu0 0.0
    %3481 = vmatprep.subr.mxu0 0.0
    %3482 = vmatpush2.msra.mxu0 0.0
    %3483 = vmatprep.subr.mxu0 0.0
    %3484 = vmatpush2.msra.mxu0 0.0
    %3485 = vmatprep.subr.mxu0 0.0
    %3486 = vmatpush2.msra.mxu0 0.0
    %3487 = vmatprep.subr.mxu0 0.0
    %3488 = vmatpush2.msra.mxu0 0.0
    %3489 = vmatprep.subr.mxu0 0.0
    %3490 = vmatpush2.msra.mxu0 0.0
    %3491 = vmatprep.mubr.f32.mxu0 0.0
    %3492 = vmatmul.mubr.f32.gmra.mxu0 %v3425
    %v3493 = vpop.f32.mrf.mxu0
    %v3494 = vadd.f32 0.0, %v3493
    %v3495 = vpop.f32.mrf.mxu0
    %3496 = vdwg.mxu0
    %v3497 = vadd.f32 %v3421, %v3494
    %s3498 = scalar_lea.vmem %s6, 56
    %v3499 = vld [vmem:[%s3498] sm:$0xff]
    %v3501 = vsel %vm171, %v3499, 0
    %3503 = vmatprep.subr.mxu0 0.0
    %3504 = vmatpush1.msra.mxu0 0.0
    %3505 = vmatprep.subr.mxu0 0.0
    %3506 = vmatpush1.msra.mxu0 0.0
    %3507 = vmatprep.subr.mxu0 0.0
    %3508 = vmatpush1.msra.mxu0 0.0
    %3509 = vmatprep.subr.mxu0 0.0
    %3510 = vmatpush1.msra.mxu0 0.0
    %3511 = vmatprep.subr.mxu0 0.0
    %3512 = vmatpush1.msra.mxu0 0.0
    %3513 = vmatprep.subr.mxu0 0.0
    %3514 = vmatpush1.msra.mxu0 0.0
    %3515 = vmatprep.subr.mxu0 0.0
    %3516 = vmatpush1.msra.mxu0 0.0
    %3517 = vmatprep.subr.mxu0 0.0
    %3518 = vmatpush1.msra.mxu0 0.0
    %3519 = vmatprep.subr.mxu0 0.0
    %3520 = vmatpush1.msra.mxu0 0.0
    %3521 = vmatprep.subr.mxu0 0.0
    %3522 = vmatpush1.msra.mxu0 0.0
    %3523 = vmatprep.subr.mxu0 0.0
    %3524 = vmatpush1.msra.mxu0 0.0
    %3525 = vmatprep.subr.mxu0 0.0
    %3526 = vmatpush1.msra.mxu0 0.0
    %3527 = vmatprep.subr.mxu0 0.0
    %3528 = vmatpush1.msra.mxu0 %v2918
    %3529 = vmatprep.subr.mxu0 0.0
    %3530 = vmatpush1.msra.mxu0 %v2914
    %3531 = vmatprep.subr.mxu0 0.0
    %3532 = vmatpush1.msra.mxu0 %v2908
    %3533 = vmatprep.subr.mxu0 0.0
    %3534 = vmatpush1.msra.mxu0 %v2904
    %3535 = vmatprep.subr.mxu0 0.0
    %3536 = vmatpush2.msra.mxu0 0.0
    %3537 = vmatprep.subr.mxu0 0.0
    %3538 = vmatpush2.msra.mxu0 0.0
    %3539 = vmatprep.subr.mxu0 0.0
    %3540 = vmatpush2.msra.mxu0 0.0
    %3541 = vmatprep.subr.mxu0 0.0
    %3542 = vmatpush2.msra.mxu0 0.0
    %3543 = vmatprep.subr.mxu0 0.0
    %3544 = vmatpush2.msra.mxu0 0.0
    %3545 = vmatprep.subr.mxu0 0.0
    %3546 = vmatpush2.msra.mxu0 0.0
    %3547 = vmatprep.subr.mxu0 0.0
    %3548 = vmatpush2.msra.mxu0 0.0
    %3549 = vmatprep.subr.mxu0 0.0
    %3550 = vmatpush2.msra.mxu0 0.0
    %3551 = vmatprep.subr.mxu0 0.0
    %3552 = vmatpush2.msra.mxu0 0.0
    %3553 = vmatprep.subr.mxu0 0.0
    %3554 = vmatpush2.msra.mxu0 0.0
    %3555 = vmatprep.subr.mxu0 0.0
    %3556 = vmatpush2.msra.mxu0 0.0
    %3557 = vmatprep.subr.mxu0 0.0
    %3558 = vmatpush2.msra.mxu0 0.0
    %3559 = vmatprep.subr.mxu0 0.0
    %3560 = vmatpush2.msra.mxu0 0.0
    %3561 = vmatprep.subr.mxu0 0.0
    %3562 = vmatpush2.msra.mxu0 0.0
    %3563 = vmatprep.subr.mxu0 0.0
    %3564 = vmatpush2.msra.mxu0 0.0
    %3565 = vmatprep.subr.mxu0 0.0
    %3566 = vmatpush2.msra.mxu0 0.0
    %3567 = vmatprep.mubr.f32.mxu0 0.0
    %3568 = vmatmul.mubr.f32.gmra.mxu0 %v3501
    %v3569 = vpop.f32.mrf.mxu0
    %v3570 = vadd.f32 0.0, %v3569
    %v3571 = vpop.f32.mrf.mxu0
    %3572 = vdwg.mxu0
    %v3573 = vadd.f32 %v3497, %v3570
    %s3574 = scalar_lea.vmem %s6, 64
    %v3575 = vld [vmem:[%s3574] sm:$0xff]
    %v3577 = vsel %vm171, %v3575, 0
    %3579 = vmatprep.subr.mxu0 0.0
    %3580 = vmatpush1.msra.mxu0 0.0
    %3581 = vmatprep.subr.mxu0 0.0
    %3582 = vmatpush1.msra.mxu0 0.0
    %3583 = vmatprep.subr.mxu0 0.0
    %3584 = vmatpush1.msra.mxu0 0.0
    %3585 = vmatprep.subr.mxu0 0.0
    %3586 = vmatpush1.msra.mxu0 0.0
    %3587 = vmatprep.subr.mxu0 0.0
    %3588 = vmatpush1.msra.mxu0 0.0
    %3589 = vmatprep.subr.mxu0 0.0
    %3590 = vmatpush1.msra.mxu0 0.0
    %3591 = vmatprep.subr.mxu0 0.0
    %3592 = vmatpush1.msra.mxu0 0.0
    %3593 = vmatprep.subr.mxu0 0.0
    %3594 = vmatpush1.msra.mxu0 0.0
    %3595 = vmatprep.subr.mxu0 0.0
    %3596 = vmatpush1.msra.mxu0 0.0
    %3597 = vmatprep.subr.mxu0 0.0
    %3598 = vmatpush1.msra.mxu0 0.0
    %3599 = vmatprep.subr.mxu0 0.0
    %3600 = vmatpush1.msra.mxu0 0.0
    %3601 = vmatprep.subr.mxu0 0.0
    %3602 = vmatpush1.msra.mxu0 0.0
    %3603 = vmatprep.subr.mxu0 0.0
    %3604 = vmatpush1.msra.mxu0 %v2966
    %3605 = vmatprep.subr.mxu0 0.0
    %3606 = vmatpush1.msra.mxu0 %v2963
    %3607 = vmatprep.subr.mxu0 0.0
    %3608 = vmatpush1.msra.mxu0 %v2958
    %3609 = vmatprep.subr.mxu0 0.0
    %3610 = vmatpush1.msra.mxu0 %v2955
    %3611 = vmatprep.subr.mxu0 0.0
    %3612 = vmatpush2.msra.mxu0 0.0
    %3613 = vmatprep.subr.mxu0 0.0
    %3614 = vmatpush2.msra.mxu0 0.0
    %3615 = vmatprep.subr.mxu0 0.0
    %3616 = vmatpush2.msra.mxu0 0.0
    %3617 = vmatprep.subr.mxu0 0.0
    %3618 = vmatpush2.msra.mxu0 0.0
    %3619 = vmatprep.subr.mxu0 0.0
    %3620 = vmatpush2.msra.mxu0 0.0
    %3621 = vmatprep.subr.mxu0 0.0
    %3622 = vmatpush2.msra.mxu0 0.0
    %3623 = vmatprep.subr.mxu0 0.0
    %3624 = vmatpush2.msra.mxu0 0.0
    %3625 = vmatprep.subr.mxu0 0.0
    %3626 = vmatpush2.msra.mxu0 0.0
    %3627 = vmatprep.subr.mxu0 0.0
    %3628 = vmatpush2.msra.mxu0 0.0
    %3629 = vmatprep.subr.mxu0 0.0
    %3630 = vmatpush2.msra.mxu0 0.0
    %3631 = vmatprep.subr.mxu0 0.0
    %3632 = vmatpush2.msra.mxu0 0.0
    %3633 = vmatprep.subr.mxu0 0.0
    %3634 = vmatpush2.msra.mxu0 0.0
    %3635 = vmatprep.subr.mxu0 0.0
    %3636 = vmatpush2.msra.mxu0 0.0
    %3637 = vmatprep.subr.mxu0 0.0
    %3638 = vmatpush2.msra.mxu0 0.0
    %3639 = vmatprep.subr.mxu0 0.0
    %3640 = vmatpush2.msra.mxu0 0.0
    %3641 = vmatprep.subr.mxu0 0.0
    %3642 = vmatpush2.msra.mxu0 0.0
    %3643 = vmatprep.mubr.f32.mxu0 0.0
    %3644 = vmatmul.mubr.f32.gmra.mxu0 %v3577
    %v3645 = vpop.f32.mrf.mxu0
    %v3646 = vadd.f32 0.0, %v3645
    %v3647 = vpop.f32.mrf.mxu0
    %3648 = vdwg.mxu0
    %v3649 = vadd.f32 %v3573, %v3646
    %v3650 = vld [vmem:[#allocation4] sm:$0x1]
    %v3652 = vlaneseq
    %v3653 = vshrl.u32 %v3652, 7
    %v3654 = vsub.s32 0, %v3653
    %v3655 = vrot.slane %v3650, %v3654
    %v3657 = vadd.f32 %v3649, %v3655
    %v3658 = vmul.f32 %v3657, 0.2
    %v3659 = vmax.f32 %v3657, %v3658
    %s3660 = scalar_lea.vmem [#allocation4], 1
    %v3661 = vld [vmem:[%s3660] sm:$0x1]
    %v3663 = vlaneseq
    %v3664 = vshrl.u32 %v3663, 7
    %v3665 = vsub.s32 0, %v3664
    %v3666 = vrot.slane %v3661, %v3665
    %v3668 = vmul.f32 %v3659, %v3666
    %s3669 = scalar_lea.vmem [#allocation4], 2
    %v3670 = vld [vmem:[%s3669] sm:$0x1]
    %v3672 = vlaneseq
    %v3673 = vshrl.u32 %v3672, 7
    %v3674 = vsub.s32 0, %v3673
    %v3675 = vrot.slane %v3670, %v3674
    %v3677 = vadd.f32 %v3668, %v3675
    %v3678 = vpack.c.bf16 %v3677, %v3677
    %v3679 = vld [vmem:[%s10] sm:$0xff]
    %v3680 = vld [vmem:[%s10 + $0x8] sm:$0xff]
    %v3681 = vld [vmem:[%s10 + $0x10] sm:$0xff]
    %v3682 = vld [vmem:[%s10 + $0x18] sm:$0xff]
    %v3683 = vld [vmem:[%s10 + $0x20] sm:$0xf]
    %v3684 = vld [vmem:[%s10 + $0x24] sm:$0xff]
    %v3685 = vld [vmem:[%s10 + $0x2c] sm:$0xff]
    %v3686 = vld [vmem:[%s10 + $0x34] sm:$0xff]
    %v3687 = vld [vmem:[%s10 + $0x3c] sm:$0xff]
    %v3688 = vld [vmem:[%s10 + $0x44] sm:$0xf]
    %v3689 = vld [vmem:[%s10 + $0x48] sm:$0xff]
    %v3690 = vld [vmem:[%s10 + $0x50] sm:$0xff]
    %v3691 = vld [vmem:[%s10 + $0x58] sm:$0xff]
    %v3692 = vld [vmem:[%s10 + $0x60] sm:$0xff]
    %v3693 = vld [vmem:[%s10 + $0x68] sm:$0xf]
    %v3694 = vld [vmem:[%s10 + $0x6c] sm:$0xff]
    %v3695 = vld [vmem:[%s10 + $0x74] sm:$0xff]
    %v3696 = vld [vmem:[%s10 + $0x7c] sm:$0xff]
    %v3697 = vld [vmem:[%s10 + $0x84] sm:$0xff]
    %v3698 = vld [vmem:[%s10 + $0x8c] sm:$0xf]
    %v3699 = vld [vmem:[%s10 + $0x90] sm:$0xff]
    %v3700 = vld [vmem:[%s10 + $0x98] sm:$0xff]
    %v3701 = vld [vmem:[%s10 + $0xa0] sm:$0xff]
    %v3702 = vld [vmem:[%s10 + $0xa8] sm:$0xff]
    %v3703 = vld [vmem:[%s10 + $0xb0] sm:$0xf]
    %v3704 = vld [vmem:[%s10 + $0xb4] sm:$0xff]
    %v3705 = vld [vmem:[%s10 + $0xbc] sm:$0xff]
    %v3706 = vld [vmem:[%s10 + $0xc4] sm:$0xff]
    %v3707 = vld [vmem:[%s10 + $0xcc] sm:$0xff]
    %v3708 = vld [vmem:[%s10 + $0xd4] sm:$0xf]
    %v3709 = vld [vmem:[%s10 + $0xd8] sm:$0xff]
    %v3710 = vld [vmem:[%s10 + $0xe0] sm:$0xff]
    %v3711 = vld [vmem:[%s10 + $0xe8] sm:$0xff]
    %v3712 = vld [vmem:[%s10 + $0xf0] sm:$0xff]
    %v3713 = vld [vmem:[%s10 + $0xf8] sm:$0xf]
    %v3714 = vld [vmem:[%s10 + $0xfc] sm:$0xff]
    %v3715 = vld [vmem:[%s10 + $0x104] sm:$0xff]
    %v3716 = vld [vmem:[%s10 + $0x10c] sm:$0xff]
    %v3717 = vld [vmem:[%s10 + $0x114] sm:$0xff]
    %v3718 = vld [vmem:[%s10 + $0x11c] sm:$0xf]
    %v3719 = vld [vmem:[%s10 + $0x120] sm:$0xff]
    %v3720 = vld [vmem:[%s10 + $0x128] sm:$0xff]
    %v3721 = vld [vmem:[%s10 + $0x130] sm:$0xff]
    %v3722 = vld [vmem:[%s10 + $0x138] sm:$0xff]
    %v3723 = vld [vmem:[%s10 + $0x140] sm:$0xf]
    %v3724 = vld [vmem:[%s10 + $0x144] sm:$0xff]
    %v3725 = vld [vmem:[%s10 + $0x14c] sm:$0xff]
    %v3726 = vld [vmem:[%s10 + $0x154] sm:$0xff]
    %v3727 = vld [vmem:[%s10 + $0x15c] sm:$0xff]
    %v3728 = vld [vmem:[%s10 + $0x164] sm:$0xf]
    %v3729 = vld [vmem:[%s10 + $0x168] sm:$0xff]
    %v3730 = vld [vmem:[%s10 + $0x170] sm:$0xff]
    %v3731 = vld [vmem:[%s10 + $0x178] sm:$0xff]
    %v3732 = vld [vmem:[%s10 + $0x180] sm:$0xff]
    %v3733 = vld [vmem:[%s10 + $0x188] sm:$0xf]
    %v3734 = vld [vmem:[%s10 + $0x18c] sm:$0xff]
    %v3735 = vld [vmem:[%s10 + $0x194] sm:$0xff]
    %v3736 = vld [vmem:[%s10 + $0x19c] sm:$0xff]
    %v3737 = vld [vmem:[%s10 + $0x1a4] sm:$0xff]
    %v3738 = vld [vmem:[%s10 + $0x1ac] sm:$0xf]
    %v3739 = vld [vmem:[%s10 + $0x1b0] sm:$0xff]
    %v3740 = vld [vmem:[%s10 + $0x1b8] sm:$0xff]
    %v3741 = vld [vmem:[%s10 + $0x1c0] sm:$0xff]
    %v3742 = vld [vmem:[%s10 + $0x1c8] sm:$0xff]
    %v3743 = vld [vmem:[%s10 + $0x1d0] sm:$0xf]
    %v3744 = vld [vmem:[%s10 + $0x1d4] sm:$0xff]
    %v3745 = vld [vmem:[%s10 + $0x1dc] sm:$0xff]
    %v3746 = vld [vmem:[%s10 + $0x1e4] sm:$0xff]
    %v3747 = vld [vmem:[%s10 + $0x1ec] sm:$0xff]
    %v3748 = vld [vmem:[%s10 + $0x1f4] sm:$0xf]
    %v3749 = vld [vmem:[%s10 + $0x1f8] sm:$0xff]
    %v3750 = vld [vmem:[%s10 + $0x200] sm:$0xff]
    %v3751 = vld [vmem:[%s10 + $0x208] sm:$0xff]
    %v3752 = vld [vmem:[%s10 + $0x210] sm:$0xff]
    %v3753 = vld [vmem:[%s10 + $0x218] sm:$0xf]
    %v3754 = vld [vmem:[%s10 + $0x21c] sm:$0xff]
    %v3755 = vld [vmem:[%s10 + $0x224] sm:$0xff]
    %v3756 = vld [vmem:[%s10 + $0x22c] sm:$0xff]
    %v3757 = vld [vmem:[%s10 + $0x234] sm:$0xff]
    %v3758 = vld [vmem:[%s10 + $0x23c] sm:$0xf]
    %v3839 = vunpack.c.l.b16 %v3679
    %v3840 = vunpack.c.h.b16 %v3679
    %v3841 = vunpack.c.l.b16 %v3680
    %v3842 = vunpack.c.h.b16 %v3680
    %v3843 = vunpack.c.l.b16 %v3681
    %v3844 = vunpack.c.h.b16 %v3681
    %v3845 = vunpack.c.l.b16 %v3682
    %v3846 = vunpack.c.h.b16 %v3682
    %v3847 = vunpack.c.l.b16 %v3683
    %v3848 = vunpack.c.l.b16 %v3684
    %v3849 = vunpack.c.h.b16 %v3684
    %v3850 = vunpack.c.l.b16 %v3685
    %v3851 = vunpack.c.h.b16 %v3685
    %v3852 = vunpack.c.l.b16 %v3686
    %v3853 = vunpack.c.h.b16 %v3686
    %v3854 = vunpack.c.l.b16 %v3687
    %v3855 = vunpack.c.h.b16 %v3687
    %v3856 = vunpack.c.l.b16 %v3688
    %v3857 = vunpack.c.l.b16 %v3689
    %v3858 = vunpack.c.h.b16 %v3689
    %v3859 = vunpack.c.l.b16 %v3690
    %v3860 = vunpack.c.h.b16 %v3690
    %v3861 = vunpack.c.l.b16 %v3691
    %v3862 = vunpack.c.h.b16 %v3691
    %v3863 = vunpack.c.l.b16 %v3692
    %v3864 = vunpack.c.h.b16 %v3692
    %v3865 = vunpack.c.l.b16 %v3693
    %v3866 = vunpack.c.l.b16 %v3694
    %v3867 = vunpack.c.h.b16 %v3694
    %v3868 = vunpack.c.l.b16 %v3695
    %v3869 = vunpack.c.h.b16 %v3695
    %v3870 = vunpack.c.l.b16 %v3696
    %v3871 = vunpack.c.h.b16 %v3696
    %v3872 = vunpack.c.l.b16 %v3697
    %v3873 = vunpack.c.h.b16 %v3697
    %v3874 = vunpack.c.l.b16 %v3698
    %v3875 = vunpack.c.l.b16 %v3699
    %v3876 = vunpack.c.h.b16 %v3699
    %v3877 = vunpack.c.l.b16 %v3700
    %v3878 = vunpack.c.h.b16 %v3700
    %v3879 = vunpack.c.l.b16 %v3701
    %v3880 = vunpack.c.h.b16 %v3701
    %v3881 = vunpack.c.l.b16 %v3702
    %v3882 = vunpack.c.h.b16 %v3702
    %v3883 = vunpack.c.l.b16 %v3703
    %v3884 = vunpack.c.l.b16 %v3704
    %v3885 = vunpack.c.h.b16 %v3704
    %v3886 = vunpack.c.l.b16 %v3705
    %v3887 = vunpack.c.h.b16 %v3705
    %v3888 = vunpack.c.l.b16 %v3706
    %v3889 = vunpack.c.h.b16 %v3706
    %v3890 = vunpack.c.l.b16 %v3707
    %v3891 = vunpack.c.h.b16 %v3707
    %v3892 = vunpack.c.l.b16 %v3708
    %v3893 = vunpack.c.l.b16 %v3709
    %v3894 = vunpack.c.h.b16 %v3709
    %v3895 = vunpack.c.l.b16 %v3710
    %v3896 = vunpack.c.h.b16 %v3710
    %v3897 = vunpack.c.l.b16 %v3711
    %v3898 = vunpack.c.h.b16 %v3711
    %v3899 = vunpack.c.l.b16 %v3712
    %v3900 = vunpack.c.h.b16 %v3712
    %v3901 = vunpack.c.l.b16 %v3713
    %v3902 = vunpack.c.l.b16 %v3714
    %v3903 = vunpack.c.h.b16 %v3714
    %v3904 = vunpack.c.l.b16 %v3715
    %v3905 = vunpack.c.h.b16 %v3715
    %v3906 = vunpack.c.l.b16 %v3716
    %v3907 = vunpack.c.h.b16 %v3716
    %v3908 = vunpack.c.l.b16 %v3717
    %v3909 = vunpack.c.h.b16 %v3717
    %v3910 = vunpack.c.l.b16 %v3718
    %v3911 = vunpack.c.l.b16 %v3719
    %v3912 = vunpack.c.h.b16 %v3719
    %v3913 = vunpack.c.l.b16 %v3720
    %v3914 = vunpack.c.h.b16 %v3720
    %v3915 = vunpack.c.l.b16 %v3721
    %v3916 = vunpack.c.h.b16 %v3721
    %v3917 = vunpack.c.l.b16 %v3722
    %v3918 = vunpack.c.h.b16 %v3722
    %v3919 = vunpack.c.l.b16 %v3723
    %v3920 = vunpack.c.l.b16 %v3724
    %v3921 = vunpack.c.h.b16 %v3724
    %v3922 = vunpack.c.l.b16 %v3725
    %v3923 = vunpack.c.h.b16 %v3725
    %v3924 = vunpack.c.l.b16 %v3726
    %v3925 = vunpack.c.h.b16 %v3726
    %v3926 = vunpack.c.l.b16 %v3727
    %v3927 = vunpack.c.h.b16 %v3727
    %v3928 = vunpack.c.l.b16 %v3728
    %v3929 = vunpack.c.l.b16 %v3729
    %v3930 = vunpack.c.h.b16 %v3729
    %v3931 = vunpack.c.l.b16 %v3730
    %v3932 = vunpack.c.h.b16 %v3730
    %v3933 = vunpack.c.l.b16 %v3731
    %v3934 = vunpack.c.h.b16 %v3731
    %v3935 = vunpack.c.l.b16 %v3732
    %v3936 = vunpack.c.h.b16 %v3732
    %v3937 = vunpack.c.l.b16 %v3733
    %v3938 = vunpack.c.l.b16 %v3734
    %v3939 = vunpack.c.h.b16 %v3734
    %v3940 = vunpack.c.l.b16 %v3735
    %v3941 = vunpack.c.h.b16 %v3735
    %v3942 = vunpack.c.l.b16 %v3736
    %v3943 = vunpack.c.h.b16 %v3736
    %v3944 = vunpack.c.l.b16 %v3737
    %v3945 = vunpack.c.h.b16 %v3737
    %v3946 = vunpack.c.l.b16 %v3738
    %v3947 = vunpack.c.l.b16 %v3739
    %v3948 = vunpack.c.h.b16 %v3739
    %v3949 = vunpack.c.l.b16 %v3740
    %v3950 = vunpack.c.h.b16 %v3740
    %v3951 = vunpack.c.l.b16 %v3741
    %v3952 = vunpack.c.h.b16 %v3741
    %v3953 = vunpack.c.l.b16 %v3742
    %v3954 = vunpack.c.h.b16 %v3742
    %v3955 = vunpack.c.l.b16 %v3743
    %v3956 = vunpack.c.l.b16 %v3744
    %v3957 = vunpack.c.h.b16 %v3744
    %v3958 = vunpack.c.l.b16 %v3745
    %v3959 = vunpack.c.h.b16 %v3745
    %v3960 = vunpack.c.l.b16 %v3746
    %v3961 = vunpack.c.h.b16 %v3746
    %v3962 = vunpack.c.l.b16 %v3747
    %v3963 = vunpack.c.h.b16 %v3747
    %v3964 = vunpack.c.l.b16 %v3748
    %v3965 = vunpack.c.l.b16 %v3749
    %v3966 = vunpack.c.h.b16 %v3749
    %v3967 = vunpack.c.l.b16 %v3750
    %v3968 = vunpack.c.h.b16 %v3750
    %v3969 = vunpack.c.l.b16 %v3751
    %v3970 = vunpack.c.h.b16 %v3751
    %v3971 = vunpack.c.l.b16 %v3752
    %v3972 = vunpack.c.h.b16 %v3752
    %v3973 = vunpack.c.l.b16 %v3753
    %v3974 = vunpack.c.l.b16 %v3754
    %v3975 = vunpack.c.h.b16 %v3754
    %v3976 = vunpack.c.l.b16 %v3755
    %v3977 = vunpack.c.h.b16 %v3755
    %v3978 = vunpack.c.l.b16 %v3756
    %v3979 = vunpack.c.h.b16 %v3756
    %v3980 = vunpack.c.l.b16 %v3757
    %v3981 = vunpack.c.h.b16 %v3757
    %v3982 = vunpack.c.l.b16 %v3758
    %v3983 = vpack.c.b16 %v3848, %v3839
    %v3984 = vpack.c.b16 %v3849, %v3840
    %v3985 = vpack.c.b16 %v3850, %v3841
    %v3986 = vpack.c.b16 %v3851, %v3842
    %v3987 = vpack.c.b16 %v3852, %v3843
    %v3988 = vpack.c.b16 %v3853, %v3844
    %v3989 = vpack.c.b16 %v3854, %v3845
    %v3990 = vpack.c.b16 %v3855, %v3846
    %v3991 = vpack.c.b16 %v3856, %v3847
    %v3992 = vpack.c.b16 %v3866, %v3857
    %v3993 = vpack.c.b16 %v3867, %v3858
    %v3994 = vpack.c.b16 %v3868, %v3859
    %v3995 = vpack.c.b16 %v3869, %v3860
    %v3996 = vpack.c.b16 %v3870, %v3861
    %v3997 = vpack.c.b16 %v3871, %v3862
    %v3998 = vpack.c.b16 %v3872, %v3863
    %v3999 = vpack.c.b16 %v3873, %v3864
    %v4000 = vpack.c.b16 %v3874, %v3865
    %v4001 = vpack.c.b16 %v3884, %v3875
    %v4002 = vpack.c.b16 %v3885, %v3876
    %v4003 = vpack.c.b16 %v3886, %v3877
    %v4004 = vpack.c.b16 %v3887, %v3878
    %v4005 = vpack.c.b16 %v3888, %v3879
    %v4006 = vpack.c.b16 %v3889, %v3880
    %v4007 = vpack.c.b16 %v3890, %v3881
    %v4008 = vpack.c.b16 %v3891, %v3882
    %v4009 = vpack.c.b16 %v3892, %v3883
    %v4010 = vpack.c.b16 %v3902, %v3893
    %v4011 = vpack.c.b16 %v3903, %v3894
    %v4012 = vpack.c.b16 %v3904, %v3895
    %v4013 = vpack.c.b16 %v3905, %v3896
    %v4014 = vpack.c.b16 %v3906, %v3897
    %v4015 = vpack.c.b16 %v3907, %v3898
    %v4016 = vpack.c.b16 %v3908, %v3899
    %v4017 = vpack.c.b16 %v3909, %v3900
    %v4018 = vpack.c.b16 %v3910, %v3901
    %v4019 = vpack.c.b16 %v3920, %v3911
    %v4020 = vpack.c.b16 %v3921, %v3912
    %v4021 = vpack.c.b16 %v3922, %v3913
    %v4022 = vpack.c.b16 %v3923, %v3914
    %v4023 = vpack.c.b16 %v3924, %v3915
    %v4024 = vpack.c.b16 %v3925, %v3916
    %v4025 = vpack.c.b16 %v3926, %v3917
    %v4026 = vpack.c.b16 %v3927, %v3918
    %v4027 = vpack.c.b16 %v3928, %v3919
    %v4028 = vpack.c.b16 %v3938, %v3929
    %v4029 = vpack.c.b16 %v3939, %v3930
    %v4030 = vpack.c.b16 %v3940, %v3931
    %v4031 = vpack.c.b16 %v3941, %v3932
    %v4032 = vpack.c.b16 %v3942, %v3933
    %v4033 = vpack.c.b16 %v3943, %v3934
    %v4034 = vpack.c.b16 %v3944, %v3935
    %v4035 = vpack.c.b16 %v3945, %v3936
    %v4036 = vpack.c.b16 %v3946, %v3937
    %v4037 = vpack.c.b16 %v3956, %v3947
    %v4038 = vpack.c.b16 %v3957, %v3948
    %v4039 = vpack.c.b16 %v3958, %v3949
    %v4040 = vpack.c.b16 %v3959, %v3950
    %v4041 = vpack.c.b16 %v3960, %v3951
    %v4042 = vpack.c.b16 %v3961, %v3952
    %v4043 = vpack.c.b16 %v3962, %v3953
    %v4044 = vpack.c.b16 %v3963, %v3954
    %v4045 = vpack.c.b16 %v3964, %v3955
    %v4046 = vpack.c.b16 %v3974, %v3965
    %v4047 = vpack.c.b16 %v3975, %v3966
    %v4048 = vpack.c.b16 %v3976, %v3967
    %v4049 = vpack.c.b16 %v3977, %v3968
    %v4050 = vpack.c.b16 %v3978, %v3969
    %v4051 = vpack.c.b16 %v3979, %v3970
    %v4052 = vpack.c.b16 %v3980, %v3971
    %v4053 = vpack.c.b16 %v3981, %v3972
    %v4054 = vpack.c.b16 %v3982, %v3973
    %4127 = vmatprep.subr.bf16.mxu0 %v4047
    %4128 = vmatpush1.bf16.msra.mxu0 %v4046
    %4129 = vmatprep.subr.bf16.mxu0 %v4038
    %4130 = vmatpush1.bf16.msra.mxu0 %v4037
    %4131 = vmatprep.subr.bf16.mxu0 %v4029
    %4132 = vmatpush1.bf16.msra.mxu0 %v4028
    %4133 = vmatprep.subr.bf16.mxu0 %v4020
    %4134 = vmatpush1.bf16.msra.mxu0 %v4019
    %4135 = vmatprep.subr.bf16.mxu0 %v4011
    %4136 = vmatpush1.bf16.msra.mxu0 %v4010
    %4137 = vmatprep.subr.bf16.mxu0 %v4002
    %4138 = vmatpush1.bf16.msra.mxu0 %v4001
    %4139 = vmatprep.subr.bf16.mxu0 %v3993
    %4140 = vmatpush1.bf16.msra.mxu0 %v3992
    %4141 = vmatprep.subr.bf16.mxu0 %v3984
    %4142 = vmatpush1.bf16.msra.mxu0 %v3983
    %4143 = vmatprep.subr.bf16.mxu0 0
    %4144 = vmatpush2.bf16.msra.mxu0 0
    %4145 = vmatprep.subr.bf16.mxu0 0
    %4146 = vmatpush2.bf16.msra.mxu0 0
    %4147 = vmatprep.subr.bf16.mxu0 0
    %4148 = vmatpush2.bf16.msra.mxu0 0
    %4149 = vmatprep.subr.bf16.mxu0 0
    %4150 = vmatpush2.bf16.msra.mxu0 0
    %4151 = vmatprep.subr.bf16.mxu0 0
    %4152 = vmatpush2.bf16.msra.mxu0 0
    %4153 = vmatprep.subr.bf16.mxu0 0
    %4154 = vmatpush2.bf16.msra.mxu0 0
    %4155 = vmatprep.subr.bf16.mxu0 0
    %4156 = vmatpush2.bf16.msra.mxu0 0
    %4157 = vmatprep.subr.bf16.mxu0 0
    %4158 = vmatpush2.bf16.msra.mxu0 0
    %4159 = vmatprep.mubr.bf16.mxu0 0
    %4160 = vmatmul.mubr.bf16.gmra.mxu0 %v3678
    %v4161 = vpop.f32.mrf.mxu0
    %v4162 = vadd.f32 0.0, %v4161
    %v4163 = vpop.f32.mrf.mxu0
    %v4164 = vadd.f32 0.0, %v4163
    %v4165 = vpop.f32.mrf.mxu0
    %v4166 = vpop.f32.mrf.mxu0
    %4167 = vdwg.mxu0
    %4168 = vmatprep.subr.bf16.mxu0 %v4049
    %4169 = vmatpush1.bf16.msra.mxu0 %v4048
    %4170 = vmatprep.subr.bf16.mxu0 %v4040
    %4171 = vmatpush1.bf16.msra.mxu0 %v4039
    %4172 = vmatprep.subr.bf16.mxu0 %v4031
    %4173 = vmatpush1.bf16.msra.mxu0 %v4030
    %4174 = vmatprep.subr.bf16.mxu0 %v4022
    %4175 = vmatpush1.bf16.msra.mxu0 %v4021
    %4176 = vmatprep.subr.bf16.mxu0 %v4013
    %4177 = vmatpush1.bf16.msra.mxu0 %v4012
    %4178 = vmatprep.subr.bf16.mxu0 %v4004
    %4179 = vmatpush1.bf16.msra.mxu0 %v4003
    %4180 = vmatprep.subr.bf16.mxu0 %v3995
    %4181 = vmatpush1.bf16.msra.mxu0 %v3994
    %4182 = vmatprep.subr.bf16.mxu0 %v3986
    %4183 = vmatpush1.bf16.msra.mxu0 %v3985
    %4184 = vmatprep.subr.bf16.mxu0 0
    %4185 = vmatpush2.bf16.msra.mxu0 0
    %4186 = vmatprep.subr.bf16.mxu0 0
    %4187 = vmatpush2.bf16.msra.mxu0 0
    %4188 = vmatprep.subr.bf16.mxu0 0
    %4189 = vmatpush2.bf16.msra.mxu0 0
    %4190 = vmatprep.subr.bf16.mxu0 0
    %4191 = vmatpush2.bf16.msra.mxu0 0
    %4192 = vmatprep.subr.bf16.mxu0 0
    %4193 = vmatpush2.bf16.msra.mxu0 0
    %4194 = vmatprep.subr.bf16.mxu0 0
    %4195 = vmatpush2.bf16.msra.mxu0 0
    %4196 = vmatprep.subr.bf16.mxu0 0
    %4197 = vmatpush2.bf16.msra.mxu0 0
    %4198 = vmatprep.subr.bf16.mxu0 0
    %4199 = vmatpush2.bf16.msra.mxu0 0
    %4200 = vmatprep.mubr.bf16.mxu0 0
    %4201 = vmatmul.mubr.bf16.gmra.mxu0 %v3678
    %v4202 = vpop.f32.mrf.mxu0
    %v4203 = vadd.f32 0.0, %v4202
    %v4204 = vpop.f32.mrf.mxu0
    %v4205 = vadd.f32 0.0, %v4204
    %v4206 = vpop.f32.mrf.mxu0
    %v4207 = vpop.f32.mrf.mxu0
    %4208 = vdwg.mxu0
    %4209 = vmatprep.subr.bf16.mxu0 %v4051
    %4210 = vmatpush1.bf16.msra.mxu0 %v4050
    %4211 = vmatprep.subr.bf16.mxu0 %v4042
    %4212 = vmatpush1.bf16.msra.mxu0 %v4041
    %4213 = vmatprep.subr.bf16.mxu0 %v4033
    %4214 = vmatpush1.bf16.msra.mxu0 %v4032
    %4215 = vmatprep.subr.bf16.mxu0 %v4024
    %4216 = vmatpush1.bf16.msra.mxu0 %v4023
    %4217 = vmatprep.subr.bf16.mxu0 %v4015
    %4218 = vmatpush1.bf16.msra.mxu0 %v4014
    %4219 = vmatprep.subr.bf16.mxu0 %v4006
    %4220 = vmatpush1.bf16.msra.mxu0 %v4005
    %4221 = vmatprep.subr.bf16.mxu0 %v3997
    %4222 = vmatpush1.bf16.msra.mxu0 %v3996
    %4223 = vmatprep.subr.bf16.mxu0 %v3988
    %4224 = vmatpush1.bf16.msra.mxu0 %v3987
    %4225 = vmatprep.subr.bf16.mxu0 0
    %4226 = vmatpush2.bf16.msra.mxu0 0
    %4227 = vmatprep.subr.bf16.mxu0 0
    %4228 = vmatpush2.bf16.msra.mxu0 0
    %4229 = vmatprep.subr.bf16.mxu0 0
    %4230 = vmatpush2.bf16.msra.mxu0 0
    %4231 = vmatprep.subr.bf16.mxu0 0
    %4232 = vmatpush2.bf16.msra.mxu0 0
    %4233 = vmatprep.subr.bf16.mxu0 0
    %4234 = vmatpush2.bf16.msra.mxu0 0
    %4235 = vmatprep.subr.bf16.mxu0 0
    %4236 = vmatpush2.bf16.msra.mxu0 0
    %4237 = vmatprep.subr.bf16.mxu0 0
    %4238 = vmatpush2.bf16.msra.mxu0 0
    %4239 = vmatprep.subr.bf16.mxu0 0
    %4240 = vmatpush2.bf16.msra.mxu0 0
    %4241 = vmatprep.mubr.bf16.mxu0 0
    %4242 = vmatmul.mubr.bf16.gmra.mxu0 %v3678
    %v4243 = vpop.f32.mrf.mxu0
    %v4244 = vadd.f32 0.0, %v4243
    %v4245 = vpop.f32.mrf.mxu0
    %v4246 = vadd.f32 0.0, %v4245
    %v4247 = vpop.f32.mrf.mxu0
    %v4248 = vpop.f32.mrf.mxu0
    %4249 = vdwg.mxu0
    %4250 = vmatprep.subr.bf16.mxu0 %v4053
    %4251 = vmatpush1.bf16.msra.mxu0 %v4052
    %4252 = vmatprep.subr.bf16.mxu0 %v4044
    %4253 = vmatpush1.bf16.msra.mxu0 %v4043
    %4254 = vmatprep.subr.bf16.mxu0 %v4035
    %4255 = vmatpush1.bf16.msra.mxu0 %v4034
    %4256 = vmatprep.subr.bf16.mxu0 %v4026
    %4257 = vmatpush1.bf16.msra.mxu0 %v4025
    %4258 = vmatprep.subr.bf16.mxu0 %v4017
    %4259 = vmatpush1.bf16.msra.mxu0 %v4016
    %4260 = vmatprep.subr.bf16.mxu0 %v4008
    %4261 = vmatpush1.bf16.msra.mxu0 %v4007
    %4262 = vmatprep.subr.bf16.mxu0 %v3999
    %4263 = vmatpush1.bf16.msra.mxu0 %v3998
    %4264 = vmatprep.subr.bf16.mxu0 %v3990
    %4265 = vmatpush1.bf16.msra.mxu0 %v3989
    %4266 = vmatprep.subr.bf16.mxu0 0
    %4267 = vmatpush2.bf16.msra.mxu0 0
    %4268 = vmatprep.subr.bf16.mxu0 0
    %4269 = vmatpush2.bf16.msra.mxu0 0
    %4270 = vmatprep.subr.bf16.mxu0 0
    %4271 = vmatpush2.bf16.msra.mxu0 0
    %4272 = vmatprep.subr.bf16.mxu0 0
    %4273 = vmatpush2.bf16.msra.mxu0 0
    %4274 = vmatprep.subr.bf16.mxu0 0
    %4275 = vmatpush2.bf16.msra.mxu0 0
    %4276 = vmatprep.subr.bf16.mxu0 0
    %4277 = vmatpush2.bf16.msra.mxu0 0
    %4278 = vmatprep.subr.bf16.mxu0 0
    %4279 = vmatpush2.bf16.msra.mxu0 0
    %4280 = vmatprep.subr.bf16.mxu0 0
    %4281 = vmatpush2.bf16.msra.mxu0 0
    %4282 = vmatprep.mubr.bf16.mxu0 0
    %4283 = vmatmul.mubr.bf16.gmra.mxu0 %v3678
    %v4284 = vpop.f32.mrf.mxu0
    %v4285 = vadd.f32 0.0, %v4284
    %v4286 = vpop.f32.mrf.mxu0
    %v4287 = vadd.f32 0.0, %v4286
    %v4288 = vpop.f32.mrf.mxu0
    %v4289 = vpop.f32.mrf.mxu0
    %4290 = vdwg.mxu0
    %4291 = vmatprep.subr.bf16.mxu0 0
    %4292 = vmatpush1.bf16.msra.mxu0 %v4054
    %4293 = vmatprep.subr.bf16.mxu0 0
    %4294 = vmatpush1.bf16.msra.mxu0 %v4045
    %4295 = vmatprep.subr.bf16.mxu0 0
    %4296 = vmatpush1.bf16.msra.mxu0 %v4036
    %4297 = vmatprep.subr.bf16.mxu0 0
    %4298 = vmatpush1.bf16.msra.mxu0 %v4027
    %4299 = vmatprep.subr.bf16.mxu0 0
    %4300 = vmatpush1.bf16.msra.mxu0 %v4018
    %4301 = vmatprep.subr.bf16.mxu0 0
    %4302 = vmatpush1.bf16.msra.mxu0 %v4009
    %4303 = vmatprep.subr.bf16.mxu0 0
    %4304 = vmatpush1.bf16.msra.mxu0 %v4000
    %4305 = vmatprep.subr.bf16.mxu0 0
    %4306 = vmatpush1.bf16.msra.mxu0 %v3991
    %4307 = vmatprep.subr.bf16.mxu0 0
    %4308 = vmatpush2.bf16.msra.mxu0 0
    %4309 = vmatprep.subr.bf16.mxu0 0
    %4310 = vmatpush2.bf16.msra.mxu0 0
    %4311 = vmatprep.subr.bf16.mxu0 0
    %4312 = vmatpush2.bf16.msra.mxu0 0
    %4313 = vmatprep.subr.bf16.mxu0 0
    %4314 = vmatpush2.bf16.msra.mxu0 0
    %4315 = vmatprep.subr.bf16.mxu0 0
    %4316 = vmatpush2.bf16.msra.mxu0 0
    %4317 = vmatprep.subr.bf16.mxu0 0
    %4318 = vmatpush2.bf16.msra.mxu0 0
    %4319 = vmatprep.subr.bf16.mxu0 0
    %4320 = vmatpush2.bf16.msra.mxu0 0
    %4321 = vmatprep.subr.bf16.mxu0 0
    %4322 = vmatpush2.bf16.msra.mxu0 0
    %4323 = vmatprep.mubr.bf16.mxu0 0
    %4324 = vmatmul.mubr.bf16.gmra.mxu0 %v3678
    %v4325 = vpop.f32.mrf.mxu0
    %v4326 = vadd.f32 0.0, %v4325
    %v4327 = vpop.f32.mrf.mxu0
    %v4328 = vpop.f32.mrf.mxu0
    %v4329 = vpop.f32.mrf.mxu0
    %4330 = vdwg.mxu0
    %v4331 = vld [vmem:[%s9] sm:$0x3]
    %s4332 = scalar_lea.vmem %s9, 2
    %v4333 = vld [vmem:[%s4332] sm:$0x3]
    %vm4334 = vcmask 64512
    %v4336 = vsel %vm4334, %v4333, 0
    %4338 = vmatprep.subr.mxu0 0.0
    %4339 = vmatpush1.msra.mxu0 0.0
    %4340 = vmatprep.subr.mxu0 0.0
    %4341 = vmatpush1.msra.mxu0 0.0
    %4342 = vmatprep.subr.mxu0 0.0
    %4343 = vmatpush1.msra.mxu0 0.0
    %4344 = vmatprep.subr.mxu0 0.0
    %4345 = vmatpush1.msra.mxu0 0.0
    %4346 = vmatprep.subr.mxu0 0.0
    %4347 = vmatpush1.msra.mxu0 0.0
    %4348 = vmatprep.subr.mxu0 0.0
    %4349 = vmatpush1.msra.mxu0 0.0
    %4350 = vmatprep.subr.mxu0 0.0
    %4351 = vmatpush1.msra.mxu0 0.0
    %4352 = vmatprep.subr.mxu0 0.0
    %4353 = vmatpush1.msra.mxu0 0.0
    %4354 = vmatprep.subr.mxu0 0.0
    %4355 = vmatpush1.msra.mxu0 0.0
    %4356 = vmatprep.subr.mxu0 0.0
    %4357 = vmatpush1.msra.mxu0 0.0
    %4358 = vmatprep.subr.mxu0 0.0
    %4359 = vmatpush1.msra.mxu0 0.0
    %4360 = vmatprep.subr.mxu0 0.0
    %4361 = vmatpush1.msra.mxu0 0.0
    %4362 = vmatprep.subr.mxu0 0.0
    %4363 = vmatpush1.msra.mxu0 0.0
    %4364 = vmatprep.subr.mxu0 0.0
    %4365 = vmatpush1.msra.mxu0 0.0
    %4366 = vmatprep.subr.mxu0 0.0
    %4367 = vmatpush1.msra.mxu0 0.0
    %4368 = vmatprep.subr.mxu0 0.0
    %4369 = vmatpush1.msra.mxu0 %v4164
    %4370 = vmatprep.subr.mxu0 0.0
    %4371 = vmatpush2.msra.mxu0 0.0
    %4372 = vmatprep.subr.mxu0 0.0
    %4373 = vmatpush2.msra.mxu0 0.0
    %4374 = vmatprep.subr.mxu0 0.0
    %4375 = vmatpush2.msra.mxu0 0.0
    %4376 = vmatprep.subr.mxu0 0.0
    %4377 = vmatpush2.msra.mxu0 0.0
    %4378 = vmatprep.subr.mxu0 0.0
    %4379 = vmatpush2.msra.mxu0 0.0
    %4380 = vmatprep.subr.mxu0 0.0
    %4381 = vmatpush2.msra.mxu0 0.0
    %4382 = vmatprep.subr.mxu0 0.0
    %4383 = vmatpush2.msra.mxu0 0.0
    %4384 = vmatprep.subr.mxu0 0.0
    %4385 = vmatpush2.msra.mxu0 0.0
    %4386 = vmatprep.subr.mxu0 0.0
    %4387 = vmatpush2.msra.mxu0 0.0
    %4388 = vmatprep.subr.mxu0 0.0
    %4389 = vmatpush2.msra.mxu0 0.0
    %4390 = vmatprep.subr.mxu0 0.0
    %4391 = vmatpush2.msra.mxu0 0.0
    %4392 = vmatprep.subr.mxu0 0.0
    %4393 = vmatpush2.msra.mxu0 0.0
    %4394 = vmatprep.subr.mxu0 0.0
    %4395 = vmatpush2.msra.mxu0 0.0
    %4396 = vmatprep.subr.mxu0 0.0
    %4397 = vmatpush2.msra.mxu0 0.0
    %4398 = vmatprep.subr.mxu0 0.0
    %4399 = vmatpush2.msra.mxu0 0.0
    %4400 = vmatprep.subr.mxu0 0.0
    %4401 = vmatpush2.msra.mxu0 0.0
    %4402 = vmatprep.mubr.f32.mxu0 0.0
    %4403 = vmatmul.mubr.f32.gmra.mxu0 %v4336
    %v4404 = vpop.f32.mrf.mxu0
    %v4405 = vadd.f32 0.0, %v4404
    %v4406 = vpop.f32.mrf.mxu0
    %4407 = vdwg.mxu0
    %v4409 = vsel %vm4334, %v4331, 0
    %4411 = vmatprep.subr.mxu0 0.0
    %4412 = vmatpush1.msra.mxu0 0.0
    %4413 = vmatprep.subr.mxu0 0.0
    %4414 = vmatpush1.msra.mxu0 0.0
    %4415 = vmatprep.subr.mxu0 0.0
    %4416 = vmatpush1.msra.mxu0 0.0
    %4417 = vmatprep.subr.mxu0 0.0
    %4418 = vmatpush1.msra.mxu0 0.0
    %4419 = vmatprep.subr.mxu0 0.0
    %4420 = vmatpush1.msra.mxu0 0.0
    %4421 = vmatprep.subr.mxu0 0.0
    %4422 = vmatpush1.msra.mxu0 0.0
    %4423 = vmatprep.subr.mxu0 0.0
    %4424 = vmatpush1.msra.mxu0 0.0
    %4425 = vmatprep.subr.mxu0 0.0
    %4426 = vmatpush1.msra.mxu0 0.0
    %4427 = vmatprep.subr.mxu0 0.0
    %4428 = vmatpush1.msra.mxu0 0.0
    %4429 = vmatprep.subr.mxu0 0.0
    %4430 = vmatpush1.msra.mxu0 0.0
    %4431 = vmatprep.subr.mxu0 0.0
    %4432 = vmatpush1.msra.mxu0 0.0
    %4433 = vmatprep.subr.mxu0 0.0
    %4434 = vmatpush1.msra.mxu0 0.0
    %4435 = vmatprep.subr.mxu0 0.0
    %4436 = vmatpush1.msra.mxu0 0.0
    %4437 = vmatprep.subr.mxu0 0.0
    %4438 = vmatpush1.msra.mxu0 0.0
    %4439 = vmatprep.subr.mxu0 0.0
    %4440 = vmatpush1.msra.mxu0 0.0
    %4441 = vmatprep.subr.mxu0 0.0
    %4442 = vmatpush1.msra.mxu0 %v4162
    %4443 = vmatprep.subr.mxu0 0.0
    %4444 = vmatpush2.msra.mxu0 0.0
    %4445 = vmatprep.subr.mxu0 0.0
    %4446 = vmatpush2.msra.mxu0 0.0
    %4447 = vmatprep.subr.mxu0 0.0
    %4448 = vmatpush2.msra.mxu0 0.0
    %4449 = vmatprep.subr.mxu0 0.0
    %4450 = vmatpush2.msra.mxu0 0.0
    %4451 = vmatprep.subr.mxu0 0.0
    %4452 = vmatpush2.msra.mxu0 0.0
    %4453 = vmatprep.subr.mxu0 0.0
    %4454 = vmatpush2.msra.mxu0 0.0
    %4455 = vmatprep.subr.mxu0 0.0
    %4456 = vmatpush2.msra.mxu0 0.0
    %4457 = vmatprep.subr.mxu0 0.0
    %4458 = vmatpush2.msra.mxu0 0.0
    %4459 = vmatprep.subr.mxu0 0.0
    %4460 = vmatpush2.msra.mxu0 0.0
    %4461 = vmatprep.subr.mxu0 0.0
    %4462 = vmatpush2.msra.mxu0 0.0
    %4463 = vmatprep.subr.mxu0 0.0
    %4464 = vmatpush2.msra.mxu0 0.0
    %4465 = vmatprep.subr.mxu0 0.0
    %4466 = vmatpush2.msra.mxu0 0.0
    %4467 = vmatprep.subr.mxu0 0.0
    %4468 = vmatpush2.msra.mxu0 0.0
    %4469 = vmatprep.subr.mxu0 0.0
    %4470 = vmatpush2.msra.mxu0 0.0
    %4471 = vmatprep.subr.mxu0 0.0
    %4472 = vmatpush2.msra.mxu0 0.0
    %4473 = vmatprep.subr.mxu0 0.0
    %4474 = vmatpush2.msra.mxu0 0.0
    %4475 = vmatprep.mubr.f32.mxu0 0.0
    %4476 = vmatmul.mubr.f32.gmra.mxu0 %v4409
    %v4477 = vpop.f32.mrf.mxu0
    %v4478 = vadd.f32 %v4405, %v4477
    %v4479 = vpop.f32.mrf.mxu0
    %4480 = vdwg.mxu0
    %s4481 = scalar_lea.vmem %s9, 4
    %v4482 = vld [vmem:[%s4481] sm:$0x3]
    %v4484 = vsel %vm4334, %v4482, 0
    %4486 = vmatprep.subr.mxu0 0.0
    %4487 = vmatpush1.msra.mxu0 0.0
    %4488 = vmatprep.subr.mxu0 0.0
    %4489 = vmatpush1.msra.mxu0 0.0
    %4490 = vmatprep.subr.mxu0 0.0
    %4491 = vmatpush1.msra.mxu0 0.0
    %4492 = vmatprep.subr.mxu0 0.0
    %4493 = vmatpush1.msra.mxu0 0.0
    %4494 = vmatprep.subr.mxu0 0.0
    %4495 = vmatpush1.msra.mxu0 0.0
    %4496 = vmatprep.subr.mxu0 0.0
    %4497 = vmatpush1.msra.mxu0 0.0
    %4498 = vmatprep.subr.mxu0 0.0
    %4499 = vmatpush1.msra.mxu0 0.0
    %4500 = vmatprep.subr.mxu0 0.0
    %4501 = vmatpush1.msra.mxu0 0.0
    %4502 = vmatprep.subr.mxu0 0.0
    %4503 = vmatpush1.msra.mxu0 0.0
    %4504 = vmatprep.subr.mxu0 0.0
    %4505 = vmatpush1.msra.mxu0 0.0
    %4506 = vmatprep.subr.mxu0 0.0
    %4507 = vmatpush1.msra.mxu0 0.0
    %4508 = vmatprep.subr.mxu0 0.0
    %4509 = vmatpush1.msra.mxu0 0.0
    %4510 = vmatprep.subr.mxu0 0.0
    %4511 = vmatpush1.msra.mxu0 0.0
    %4512 = vmatprep.subr.mxu0 0.0
    %4513 = vmatpush1.msra.mxu0 0.0
    %4514 = vmatprep.subr.mxu0 0.0
    %4515 = vmatpush1.msra.mxu0 0.0
    %4516 = vmatprep.subr.mxu0 0.0
    %4517 = vmatpush1.msra.mxu0 %v4203
    %4518 = vmatprep.subr.mxu0 0.0
    %4519 = vmatpush2.msra.mxu0 0.0
    %4520 = vmatprep.subr.mxu0 0.0
    %4521 = vmatpush2.msra.mxu0 0.0
    %4522 = vmatprep.subr.mxu0 0.0
    %4523 = vmatpush2.msra.mxu0 0.0
    %4524 = vmatprep.subr.mxu0 0.0
    %4525 = vmatpush2.msra.mxu0 0.0
    %4526 = vmatprep.subr.mxu0 0.0
    %4527 = vmatpush2.msra.mxu0 0.0
    %4528 = vmatprep.subr.mxu0 0.0
    %4529 = vmatpush2.msra.mxu0 0.0
    %4530 = vmatprep.subr.mxu0 0.0
    %4531 = vmatpush2.msra.mxu0 0.0
    %4532 = vmatprep.subr.mxu0 0.0
    %4533 = vmatpush2.msra.mxu0 0.0
    %4534 = vmatprep.subr.mxu0 0.0
    %4535 = vmatpush2.msra.mxu0 0.0
    %4536 = vmatprep.subr.mxu0 0.0
    %4537 = vmatpush2.msra.mxu0 0.0
    %4538 = vmatprep.subr.mxu0 0.0
    %4539 = vmatpush2.msra.mxu0 0.0
    %4540 = vmatprep.subr.mxu0 0.0
    %4541 = vmatpush2.msra.mxu0 0.0
    %4542 = vmatprep.subr.mxu0 0.0
    %4543 = vmatpush2.msra.mxu0 0.0
    %4544 = vmatprep.subr.mxu0 0.0
    %4545 = vmatpush2.msra.mxu0 0.0
    %4546 = vmatprep.subr.mxu0 0.0
    %4547 = vmatpush2.msra.mxu0 0.0
    %4548 = vmatprep.subr.mxu0 0.0
    %4549 = vmatpush2.msra.mxu0 0.0
    %4550 = vmatprep.mubr.f32.mxu0 0.0
    %4551 = vmatmul.mubr.f32.gmra.mxu0 %v4484
    %v4552 = vpop.f32.mrf.mxu0
    %v4553 = vadd.f32 0.0, %v4552
    %v4554 = vpop.f32.mrf.mxu0
    %4555 = vdwg.mxu0
    %v4556 = vadd.f32 %v4478, %v4553
    %s4557 = scalar_lea.vmem %s9, 6
    %v4558 = vld [vmem:[%s4557] sm:$0x3]
    %v4560 = vsel %vm4334, %v4558, 0
    %4562 = vmatprep.subr.mxu0 0.0
    %4563 = vmatpush1.msra.mxu0 0.0
    %4564 = vmatprep.subr.mxu0 0.0
    %4565 = vmatpush1.msra.mxu0 0.0
    %4566 = vmatprep.subr.mxu0 0.0
    %4567 = vmatpush1.msra.mxu0 0.0
    %4568 = vmatprep.subr.mxu0 0.0
    %4569 = vmatpush1.msra.mxu0 0.0
    %4570 = vmatprep.subr.mxu0 0.0
    %4571 = vmatpush1.msra.mxu0 0.0
    %4572 = vmatprep.subr.mxu0 0.0
    %4573 = vmatpush1.msra.mxu0 0.0
    %4574 = vmatprep.subr.mxu0 0.0
    %4575 = vmatpush1.msra.mxu0 0.0
    %4576 = vmatprep.subr.mxu0 0.0
    %4577 = vmatpush1.msra.mxu0 0.0
    %4578 = vmatprep.subr.mxu0 0.0
    %4579 = vmatpush1.msra.mxu0 0.0
    %4580 = vmatprep.subr.mxu0 0.0
    %4581 = vmatpush1.msra.mxu0 0.0
    %4582 = vmatprep.subr.mxu0 0.0
    %4583 = vmatpush1.msra.mxu0 0.0
    %4584 = vmatprep.subr.mxu0 0.0
    %4585 = vmatpush1.msra.mxu0 0.0
    %4586 = vmatprep.subr.mxu0 0.0
    %4587 = vmatpush1.msra.mxu0 0.0
    %4588 = vmatprep.subr.mxu0 0.0
    %4589 = vmatpush1.msra.mxu0 0.0
    %4590 = vmatprep.subr.mxu0 0.0
    %4591 = vmatpush1.msra.mxu0 0.0
    %4592 = vmatprep.subr.mxu0 0.0
    %4593 = vmatpush1.msra.mxu0 %v4205
    %4594 = vmatprep.subr.mxu0 0.0
    %4595 = vmatpush2.msra.mxu0 0.0
    %4596 = vmatprep.subr.mxu0 0.0
    %4597 = vmatpush2.msra.mxu0 0.0
    %4598 = vmatprep.subr.mxu0 0.0
    %4599 = vmatpush2.msra.mxu0 0.0
    %4600 = vmatprep.subr.mxu0 0.0
    %4601 = vmatpush2.msra.mxu0 0.0
    %4602 = vmatprep.subr.mxu0 0.0
    %4603 = vmatpush2.msra.mxu0 0.0
    %4604 = vmatprep.subr.mxu0 0.0
    %4605 = vmatpush2.msra.mxu0 0.0
    %4606 = vmatprep.subr.mxu0 0.0
    %4607 = vmatpush2.msra.mxu0 0.0
    %4608 = vmatprep.subr.mxu0 0.0
    %4609 = vmatpush2.msra.mxu0 0.0
    %4610 = vmatprep.subr.mxu0 0.0
    %4611 = vmatpush2.msra.mxu0 0.0
    %4612 = vmatprep.subr.mxu0 0.0
    %4613 = vmatpush2.msra.mxu0 0.0
    %4614 = vmatprep.subr.mxu0 0.0
    %4615 = vmatpush2.msra.mxu0 0.0
    %4616 = vmatprep.subr.mxu0 0.0
    %4617 = vmatpush2.msra.mxu0 0.0
    %4618 = vmatprep.subr.mxu0 0.0
    %4619 = vmatpush2.msra.mxu0 0.0
    %4620 = vmatprep.subr.mxu0 0.0
    %4621 = vmatpush2.msra.mxu0 0.0
    %4622 = vmatprep.subr.mxu0 0.0
    %4623 = vmatpush2.msra.mxu0 0.0
    %4624 = vmatprep.subr.mxu0 0.0
    %4625 = vmatpush2.msra.mxu0 0.0
    %4626 = vmatprep.mubr.f32.mxu0 0.0
    %4627 = vmatmul.mubr.f32.gmra.mxu0 %v4560
    %v4628 = vpop.f32.mrf.mxu0
    %v4629 = vadd.f32 0.0, %v4628
    %v4630 = vpop.f32.mrf.mxu0
    %4631 = vdwg.mxu0
    %v4632 = vadd.f32 %v4556, %v4629
    %s4633 = scalar_lea.vmem %s9, 8
    %v4634 = vld [vmem:[%s4633] sm:$0x3]
    %v4636 = vsel %vm4334, %v4634, 0
    %4638 = vmatprep.subr.mxu0 0.0
    %4639 = vmatpush1.msra.mxu0 0.0
    %4640 = vmatprep.subr.mxu0 0.0
    %4641 = vmatpush1.msra.mxu0 0.0
    %4642 = vmatprep.subr.mxu0 0.0
    %4643 = vmatpush1.msra.mxu0 0.0
    %4644 = vmatprep.subr.mxu0 0.0
    %4645 = vmatpush1.msra.mxu0 0.0
    %4646 = vmatprep.subr.mxu0 0.0
    %4647 = vmatpush1.msra.mxu0 0.0
    %4648 = vmatprep.subr.mxu0 0.0
    %4649 = vmatpush1.msra.mxu0 0.0
    %4650 = vmatprep.subr.mxu0 0.0
    %4651 = vmatpush1.msra.mxu0 0.0
    %4652 = vmatprep.subr.mxu0 0.0
    %4653 = vmatpush1.msra.mxu0 0.0
    %4654 = vmatprep.subr.mxu0 0.0
    %4655 = vmatpush1.msra.mxu0 0.0
    %4656 = vmatprep.subr.mxu0 0.0
    %4657 = vmatpush1.msra.mxu0 0.0
    %4658 = vmatprep.subr.mxu0 0.0
    %4659 = vmatpush1.msra.mxu0 0.0
    %4660 = vmatprep.subr.mxu0 0.0
    %4661 = vmatpush1.msra.mxu0 0.0
    %4662 = vmatprep.subr.mxu0 0.0
    %4663 = vmatpush1.msra.mxu0 0.0
    %4664 = vmatprep.subr.mxu0 0.0
    %4665 = vmatpush1.msra.mxu0 0.0
    %4666 = vmatprep.subr.mxu0 0.0
    %4667 = vmatpush1.msra.mxu0 0.0
    %4668 = vmatprep.subr.mxu0 0.0
    %4669 = vmatpush1.msra.mxu0 %v4244
    %4670 = vmatprep.subr.mxu0 0.0
    %4671 = vmatpush2.msra.mxu0 0.0
    %4672 = vmatprep.subr.mxu0 0.0
    %4673 = vmatpush2.msra.mxu0 0.0
    %4674 = vmatprep.subr.mxu0 0.0
    %4675 = vmatpush2.msra.mxu0 0.0
    %4676 = vmatprep.subr.mxu0 0.0
    %4677 = vmatpush2.msra.mxu0 0.0
    %4678 = vmatprep.subr.mxu0 0.0
    %4679 = vmatpush2.msra.mxu0 0.0
    %4680 = vmatprep.subr.mxu0 0.0
    %4681 = vmatpush2.msra.mxu0 0.0
    %4682 = vmatprep.subr.mxu0 0.0
    %4683 = vmatpush2.msra.mxu0 0.0
    %4684 = vmatprep.subr.mxu0 0.0
    %4685 = vmatpush2.msra.mxu0 0.0
    %4686 = vmatprep.subr.mxu0 0.0
    %4687 = vmatpush2.msra.mxu0 0.0
    %4688 = vmatprep.subr.mxu0 0.0
    %4689 = vmatpush2.msra.mxu0 0.0
    %4690 = vmatprep.subr.mxu0 0.0
    %4691 = vmatpush2.msra.mxu0 0.0
    %4692 = vmatprep.subr.mxu0 0.0
    %4693 = vmatpush2.msra.mxu0 0.0
    %4694 = vmatprep.subr.mxu0 0.0
    %4695 = vmatpush2.msra.mxu0 0.0
    %4696 = vmatprep.subr.mxu0 0.0
    %4697 = vmatpush2.msra.mxu0 0.0
    %4698 = vmatprep.subr.mxu0 0.0
    %4699 = vmatpush2.msra.mxu0 0.0
    %4700 = vmatprep.subr.mxu0 0.0
    %4701 = vmatpush2.msra.mxu0 0.0
    %4702 = vmatprep.mubr.f32.mxu0 0.0
    %4703 = vmatmul.mubr.f32.gmra.mxu0 %v4636
    %v4704 = vpop.f32.mrf.mxu0
    %v4705 = vadd.f32 0.0, %v4704
    %v4706 = vpop.f32.mrf.mxu0
    %4707 = vdwg.mxu0
    %v4708 = vadd.f32 %v4632, %v4705
    %s4709 = scalar_lea.vmem %s9, 10
    %v4710 = vld [vmem:[%s4709] sm:$0x3]
    %v4712 = vsel %vm4334, %v4710, 0
    %4714 = vmatprep.subr.mxu0 0.0
    %4715 = vmatpush1.msra.mxu0 0.0
    %4716 = vmatprep.subr.mxu0 0.0
    %4717 = vmatpush1.msra.mxu0 0.0
    %4718 = vmatprep.subr.mxu0 0.0
    %4719 = vmatpush1.msra.mxu0 0.0
    %4720 = vmatprep.subr.mxu0 0.0
    %4721 = vmatpush1.msra.mxu0 0.0
    %4722 = vmatprep.subr.mxu0 0.0
    %4723 = vmatpush1.msra.mxu0 0.0
    %4724 = vmatprep.subr.mxu0 0.0
    %4725 = vmatpush1.msra.mxu0 0.0
    %4726 = vmatprep.subr.mxu0 0.0
    %4727 = vmatpush1.msra.mxu0 0.0
    %4728 = vmatprep.subr.mxu0 0.0
    %4729 = vmatpush1.msra.mxu0 0.0
    %4730 = vmatprep.subr.mxu0 0.0
    %4731 = vmatpush1.msra.mxu0 0.0
    %4732 = vmatprep.subr.mxu0 0.0
    %4733 = vmatpush1.msra.mxu0 0.0
    %4734 = vmatprep.subr.mxu0 0.0
    %4735 = vmatpush1.msra.mxu0 0.0
    %4736 = vmatprep.subr.mxu0 0.0
    %4737 = vmatpush1.msra.mxu0 0.0
    %4738 = vmatprep.subr.mxu0 0.0
    %4739 = vmatpush1.msra.mxu0 0.0
    %4740 = vmatprep.subr.mxu0 0.0
    %4741 = vmatpush1.msra.mxu0 0.0
    %4742 = vmatprep.subr.mxu0 0.0
    %4743 = vmatpush1.msra.mxu0 0.0
    %4744 = vmatprep.subr.mxu0 0.0
    %4745 = vmatpush1.msra.mxu0 %v4246
    %4746 = vmatprep.subr.mxu0 0.0
    %4747 = vmatpush2.msra.mxu0 0.0
    %4748 = vmatprep.subr.mxu0 0.0
    %4749 = vmatpush2.msra.mxu0 0.0
    %4750 = vmatprep.subr.mxu0 0.0
    %4751 = vmatpush2.msra.mxu0 0.0
    %4752 = vmatprep.subr.mxu0 0.0
    %4753 = vmatpush2.msra.mxu0 0.0
    %4754 = vmatprep.subr.mxu0 0.0
    %4755 = vmatpush2.msra.mxu0 0.0
    %4756 = vmatprep.subr.mxu0 0.0
    %4757 = vmatpush2.msra.mxu0 0.0
    %4758 = vmatprep.subr.mxu0 0.0
    %4759 = vmatpush2.msra.mxu0 0.0
    %4760 = vmatprep.subr.mxu0 0.0
    %4761 = vmatpush2.msra.mxu0 0.0
    %4762 = vmatprep.subr.mxu0 0.0
    %4763 = vmatpush2.msra.mxu0 0.0
    %4764 = vmatprep.subr.mxu0 0.0
    %4765 = vmatpush2.msra.mxu0 0.0
    %4766 = vmatprep.subr.mxu0 0.0
    %4767 = vmatpush2.msra.mxu0 0.0
    %4768 = vmatprep.subr.mxu0 0.0
    %4769 = vmatpush2.msra.mxu0 0.0
    %4770 = vmatprep.subr.mxu0 0.0
    %4771 = vmatpush2.msra.mxu0 0.0
    %4772 = vmatprep.subr.mxu0 0.0
    %4773 = vmatpush2.msra.mxu0 0.0
    %4774 = vmatprep.subr.mxu0 0.0
    %4775 = vmatpush2.msra.mxu0 0.0
    %4776 = vmatprep.subr.mxu0 0.0
    %4777 = vmatpush2.msra.mxu0 0.0
    %4778 = vmatprep.mubr.f32.mxu0 0.0
    %4779 = vmatmul.mubr.f32.gmra.mxu0 %v4712
    %v4780 = vpop.f32.mrf.mxu0
    %v4781 = vadd.f32 0.0, %v4780
    %v4782 = vpop.f32.mrf.mxu0
    %4783 = vdwg.mxu0
    %v4784 = vadd.f32 %v4708, %v4781
    %s4785 = scalar_lea.vmem %s9, 12
    %v4786 = vld [vmem:[%s4785] sm:$0x3]
    %v4788 = vsel %vm4334, %v4786, 0
    %4790 = vmatprep.subr.mxu0 0.0
    %4791 = vmatpush1.msra.mxu0 0.0
    %4792 = vmatprep.subr.mxu0 0.0
    %4793 = vmatpush1.msra.mxu0 0.0
    %4794 = vmatprep.subr.mxu0 0.0
    %4795 = vmatpush1.msra.mxu0 0.0
    %4796 = vmatprep.subr.mxu0 0.0
    %4797 = vmatpush1.msra.mxu0 0.0
    %4798 = vmatprep.subr.mxu0 0.0
    %4799 = vmatpush1.msra.mxu0 0.0
    %4800 = vmatprep.subr.mxu0 0.0
    %4801 = vmatpush1.msra.mxu0 0.0
    %4802 = vmatprep.subr.mxu0 0.0
    %4803 = vmatpush1.msra.mxu0 0.0
    %4804 = vmatprep.subr.mxu0 0.0
    %4805 = vmatpush1.msra.mxu0 0.0
    %4806 = vmatprep.subr.mxu0 0.0
    %4807 = vmatpush1.msra.mxu0 0.0
    %4808 = vmatprep.subr.mxu0 0.0
    %4809 = vmatpush1.msra.mxu0 0.0
    %4810 = vmatprep.subr.mxu0 0.0
    %4811 = vmatpush1.msra.mxu0 0.0
    %4812 = vmatprep.subr.mxu0 0.0
    %4813 = vmatpush1.msra.mxu0 0.0
    %4814 = vmatprep.subr.mxu0 0.0
    %4815 = vmatpush1.msra.mxu0 0.0
    %4816 = vmatprep.subr.mxu0 0.0
    %4817 = vmatpush1.msra.mxu0 0.0
    %4818 = vmatprep.subr.mxu0 0.0
    %4819 = vmatpush1.msra.mxu0 0.0
    %4820 = vmatprep.subr.mxu0 0.0
    %4821 = vmatpush1.msra.mxu0 %v4285
    %4822 = vmatprep.subr.mxu0 0.0
    %4823 = vmatpush2.msra.mxu0 0.0
    %4824 = vmatprep.subr.mxu0 0.0
    %4825 = vmatpush2.msra.mxu0 0.0
    %4826 = vmatprep.subr.mxu0 0.0
    %4827 = vmatpush2.msra.mxu0 0.0
    %4828 = vmatprep.subr.mxu0 0.0
    %4829 = vmatpush2.msra.mxu0 0.0
    %4830 = vmatprep.subr.mxu0 0.0
    %4831 = vmatpush2.msra.mxu0 0.0
    %4832 = vmatprep.subr.mxu0 0.0
    %4833 = vmatpush2.msra.mxu0 0.0
    %4834 = vmatprep.subr.mxu0 0.0
    %4835 = vmatpush2.msra.mxu0 0.0
    %4836 = vmatprep.subr.mxu0 0.0
    %4837 = vmatpush2.msra.mxu0 0.0
    %4838 = vmatprep.subr.mxu0 0.0
    %4839 = vmatpush2.msra.mxu0 0.0
    %4840 = vmatprep.subr.mxu0 0.0
    %4841 = vmatpush2.msra.mxu0 0.0
    %4842 = vmatprep.subr.mxu0 0.0
    %4843 = vmatpush2.msra.mxu0 0.0
    %4844 = vmatprep.subr.mxu0 0.0
    %4845 = vmatpush2.msra.mxu0 0.0
    %4846 = vmatprep.subr.mxu0 0.0
    %4847 = vmatpush2.msra.mxu0 0.0
    %4848 = vmatprep.subr.mxu0 0.0
    %4849 = vmatpush2.msra.mxu0 0.0
    %4850 = vmatprep.subr.mxu0 0.0
    %4851 = vmatpush2.msra.mxu0 0.0
    %4852 = vmatprep.subr.mxu0 0.0
    %4853 = vmatpush2.msra.mxu0 0.0
    %4854 = vmatprep.mubr.f32.mxu0 0.0
    %4855 = vmatmul.mubr.f32.gmra.mxu0 %v4788
    %v4856 = vpop.f32.mrf.mxu0
    %v4857 = vadd.f32 0.0, %v4856
    %v4858 = vpop.f32.mrf.mxu0
    %4859 = vdwg.mxu0
    %v4860 = vadd.f32 %v4784, %v4857
    %s4861 = scalar_lea.vmem %s9, 14
    %v4862 = vld [vmem:[%s4861] sm:$0x3]
    %v4864 = vsel %vm4334, %v4862, 0
    %4866 = vmatprep.subr.mxu0 0.0
    %4867 = vmatpush1.msra.mxu0 0.0
    %4868 = vmatprep.subr.mxu0 0.0
    %4869 = vmatpush1.msra.mxu0 0.0
    %4870 = vmatprep.subr.mxu0 0.0
    %4871 = vmatpush1.msra.mxu0 0.0
    %4872 = vmatprep.subr.mxu0 0.0
    %4873 = vmatpush1.msra.mxu0 0.0
    %4874 = vmatprep.subr.mxu0 0.0
    %4875 = vmatpush1.msra.mxu0 0.0
    %4876 = vmatprep.subr.mxu0 0.0
    %4877 = vmatpush1.msra.mxu0 0.0
    %4878 = vmatprep.subr.mxu0 0.0
    %4879 = vmatpush1.msra.mxu0 0.0
    %4880 = vmatprep.subr.mxu0 0.0
    %4881 = vmatpush1.msra.mxu0 0.0
    %4882 = vmatprep.subr.mxu0 0.0
    %4883 = vmatpush1.msra.mxu0 0.0
    %4884 = vmatprep.subr.mxu0 0.0
    %4885 = vmatpush1.msra.mxu0 0.0
    %4886 = vmatprep.subr.mxu0 0.0
    %4887 = vmatpush1.msra.mxu0 0.0
    %4888 = vmatprep.subr.mxu0 0.0
    %4889 = vmatpush1.msra.mxu0 0.0
    %4890 = vmatprep.subr.mxu0 0.0
    %4891 = vmatpush1.msra.mxu0 0.0
    %4892 = vmatprep.subr.mxu0 0.0
    %4893 = vmatpush1.msra.mxu0 0.0
    %4894 = vmatprep.subr.mxu0 0.0
    %4895 = vmatpush1.msra.mxu0 0.0
    %4896 = vmatprep.subr.mxu0 0.0
    %4897 = vmatpush1.msra.mxu0 %v4287
    %4898 = vmatprep.subr.mxu0 0.0
    %4899 = vmatpush2.msra.mxu0 0.0
    %4900 = vmatprep.subr.mxu0 0.0
    %4901 = vmatpush2.msra.mxu0 0.0
    %4902 = vmatprep.subr.mxu0 0.0
    %4903 = vmatpush2.msra.mxu0 0.0
    %4904 = vmatprep.subr.mxu0 0.0
    %4905 = vmatpush2.msra.mxu0 0.0
    %4906 = vmatprep.subr.mxu0 0.0
    %4907 = vmatpush2.msra.mxu0 0.0
    %4908 = vmatprep.subr.mxu0 0.0
    %4909 = vmatpush2.msra.mxu0 0.0
    %4910 = vmatprep.subr.mxu0 0.0
    %4911 = vmatpush2.msra.mxu0 0.0
    %4912 = vmatprep.subr.mxu0 0.0
    %4913 = vmatpush2.msra.mxu0 0.0
    %4914 = vmatprep.subr.mxu0 0.0
    %4915 = vmatpush2.msra.mxu0 0.0
    %4916 = vmatprep.subr.mxu0 0.0
    %4917 = vmatpush2.msra.mxu0 0.0
    %4918 = vmatprep.subr.mxu0 0.0
    %4919 = vmatpush2.msra.mxu0 0.0
    %4920 = vmatprep.subr.mxu0 0.0
    %4921 = vmatpush2.msra.mxu0 0.0
    %4922 = vmatprep.subr.mxu0 0.0
    %4923 = vmatpush2.msra.mxu0 0.0
    %4924 = vmatprep.subr.mxu0 0.0
    %4925 = vmatpush2.msra.mxu0 0.0
    %4926 = vmatprep.subr.mxu0 0.0
    %4927 = vmatpush2.msra.mxu0 0.0
    %4928 = vmatprep.subr.mxu0 0.0
    %4929 = vmatpush2.msra.mxu0 0.0
    %4930 = vmatprep.mubr.f32.mxu0 0.0
    %4931 = vmatmul.mubr.f32.gmra.mxu0 %v4864
    %v4932 = vpop.f32.mrf.mxu0
    %v4933 = vadd.f32 0.0, %v4932
    %v4934 = vpop.f32.mrf.mxu0
    %4935 = vdwg.mxu0
    %v4936 = vadd.f32 %v4860, %v4933
    %s4937 = scalar_lea.vmem %s9, 16
    %v4938 = vld [vmem:[%s4937] sm:$0x3]
    %v4940 = vsel %vm4334, %v4938, 0
    %4942 = vmatprep.subr.mxu0 0.0
    %4943 = vmatpush1.msra.mxu0 0.0
    %4944 = vmatprep.subr.mxu0 0.0
    %4945 = vmatpush1.msra.mxu0 0.0
    %4946 = vmatprep.subr.mxu0 0.0
    %4947 = vmatpush1.msra.mxu0 0.0
    %4948 = vmatprep.subr.mxu0 0.0
    %4949 = vmatpush1.msra.mxu0 0.0
    %4950 = vmatprep.subr.mxu0 0.0
    %4951 = vmatpush1.msra.mxu0 0.0
    %4952 = vmatprep.subr.mxu0 0.0
    %4953 = vmatpush1.msra.mxu0 0.0
    %4954 = vmatprep.subr.mxu0 0.0
    %4955 = vmatpush1.msra.mxu0 0.0
    %4956 = vmatprep.subr.mxu0 0.0
    %4957 = vmatpush1.msra.mxu0 0.0
    %4958 = vmatprep.subr.mxu0 0.0
    %4959 = vmatpush1.msra.mxu0 0.0
    %4960 = vmatprep.subr.mxu0 0.0
    %4961 = vmatpush1.msra.mxu0 0.0
    %4962 = vmatprep.subr.mxu0 0.0
    %4963 = vmatpush1.msra.mxu0 0.0
    %4964 = vmatprep.subr.mxu0 0.0
    %4965 = vmatpush1.msra.mxu0 0.0
    %4966 = vmatprep.subr.mxu0 0.0
    %4967 = vmatpush1.msra.mxu0 0.0
    %4968 = vmatprep.subr.mxu0 0.0
    %4969 = vmatpush1.msra.mxu0 0.0
    %4970 = vmatprep.subr.mxu0 0.0
    %4971 = vmatpush1.msra.mxu0 0.0
    %4972 = vmatprep.subr.mxu0 0.0
    %4973 = vmatpush1.msra.mxu0 %v4326
    %4974 = vmatprep.subr.mxu0 0.0
    %4975 = vmatpush2.msra.mxu0 0.0
    %4976 = vmatprep.subr.mxu0 0.0
    %4977 = vmatpush2.msra.mxu0 0.0
    %4978 = vmatprep.subr.mxu0 0.0
    %4979 = vmatpush2.msra.mxu0 0.0
    %4980 = vmatprep.subr.mxu0 0.0
    %4981 = vmatpush2.msra.mxu0 0.0
    %4982 = vmatprep.subr.mxu0 0.0
    %4983 = vmatpush2.msra.mxu0 0.0
    %4984 = vmatprep.subr.mxu0 0.0
    %4985 = vmatpush2.msra.mxu0 0.0
    %4986 = vmatprep.subr.mxu0 0.0
    %4987 = vmatpush2.msra.mxu0 0.0
    %4988 = vmatprep.subr.mxu0 0.0
    %4989 = vmatpush2.msra.mxu0 0.0
    %4990 = vmatprep.subr.mxu0 0.0
    %4991 = vmatpush2.msra.mxu0 0.0
    %4992 = vmatprep.subr.mxu0 0.0
    %4993 = vmatpush2.msra.mxu0 0.0
    %4994 = vmatprep.subr.mxu0 0.0
    %4995 = vmatpush2.msra.mxu0 0.0
    %4996 = vmatprep.subr.mxu0 0.0
    %4997 = vmatpush2.msra.mxu0 0.0
    %4998 = vmatprep.subr.mxu0 0.0
    %4999 = vmatpush2.msra.mxu0 0.0
    %5000 = vmatprep.subr.mxu0 0.0
    %5001 = vmatpush2.msra.mxu0 0.0
    %5002 = vmatprep.subr.mxu0 0.0
    %5003 = vmatpush2.msra.mxu0 0.0
    %5004 = vmatprep.subr.mxu0 0.0
    %5005 = vmatpush2.msra.mxu0 0.0
    %5006 = vmatprep.mubr.f32.mxu0 0.0
    %5007 = vmatmul.mubr.f32.gmra.mxu0 %v4940
    %v5008 = vpop.f32.mrf.mxu0
    %v5009 = vadd.f32 0.0, %v5008
    %v5010 = vpop.f32.mrf.mxu0
    %5011 = vdwg.mxu0
    %v5012 = vadd.f32 %v4936, %v5009
    %v5013 = vld [vmem:[#allocation6] sm:$0x1]
    %v5015 = vlaneseq
    %v5016 = vshrl.u32 %v5015, 7
    %v5017 = vsub.s32 0, %v5016
    %v5018 = vrot.slane %v5013, %v5017
    %v5020 = vadd.f32 %v5012, %v5018
    %v5021 = vmul.f32 %v5020, 0.2
    %v5022 = vmax.f32 %v5020, %v5021
    %s5023 = scalar_lea.vmem [#allocation6], 1
    %v5024 = vld [vmem:[%s5023] sm:$0x1]
    %v5026 = vlaneseq
    %v5027 = vshrl.u32 %v5026, 7
    %v5028 = vsub.s32 0, %v5027
    %v5029 = vrot.slane %v5024, %v5028
    %v5031 = vmul.f32 %v5022, %v5029
    %s5032 = scalar_lea.vmem [#allocation6], 2
    %v5033 = vld [vmem:[%s5032] sm:$0x1]
    %v5035 = vlaneseq
    %v5036 = vshrl.u32 %v5035, 7
    %v5037 = vsub.s32 0, %v5036
    %v5038 = vrot.slane %v5033, %v5037
    %v5040 = vadd.f32 %v5031, %v5038
    %v5041 = vpack.c.bf16 %v5040, %v5040
    %v5042 = vld [vmem:[%s13] sm:$0xf]
    %v5043 = vld [vmem:[%s13 + $0x4] sm:$0xf]
    %v5044 = vld [vmem:[%s13 + $0x8] sm:$0xf]
    %v5045 = vld [vmem:[%s13 + $0xc] sm:$0xf]
    %v5046 = vld [vmem:[%s13 + $0x10] sm:$0xf]
    %v5047 = vld [vmem:[%s13 + $0x14] sm:$0xf]
    %v5048 = vld [vmem:[%s13 + $0x18] sm:$0xf]
    %v5049 = vld [vmem:[%s13 + $0x1c] sm:$0xf]
    %v5050 = vld [vmem:[%s13 + $0x20] sm:$0xf]
    %v5051 = vld [vmem:[%s13 + $0x24] sm:$0xf]
    %v5052 = vld [vmem:[%s13 + $0x28] sm:$0xf]
    %v5053 = vld [vmem:[%s13 + $0x2c] sm:$0xf]
    %v5054 = vld [vmem:[%s13 + $0x30] sm:$0xf]
    %v5055 = vld [vmem:[%s13 + $0x34] sm:$0xf]
    %v5056 = vld [vmem:[%s13 + $0x38] sm:$0xf]
    %v5057 = vld [vmem:[%s13 + $0x3c] sm:$0xf]
    %v5074 = vunpack.c.l.b16 %v5042
    %v5075 = vunpack.c.l.b16 %v5043
    %v5076 = vunpack.c.l.b16 %v5044
    %v5077 = vunpack.c.l.b16 %v5045
    %v5078 = vunpack.c.l.b16 %v5046
    %v5079 = vunpack.c.l.b16 %v5047
    %v5080 = vunpack.c.l.b16 %v5048
    %v5081 = vunpack.c.l.b16 %v5049
    %v5082 = vunpack.c.l.b16 %v5050
    %v5083 = vunpack.c.l.b16 %v5051
    %v5084 = vunpack.c.l.b16 %v5052
    %v5085 = vunpack.c.l.b16 %v5053
    %v5086 = vunpack.c.l.b16 %v5054
    %v5087 = vunpack.c.l.b16 %v5055
    %v5088 = vunpack.c.l.b16 %v5056
    %v5089 = vunpack.c.l.b16 %v5057
    %v5090 = vpack.c.b16 %v5075, %v5074
    %v5091 = vpack.c.b16 %v5077, %v5076
    %v5092 = vpack.c.b16 %v5079, %v5078
    %v5093 = vpack.c.b16 %v5081, %v5080
    %v5094 = vpack.c.b16 %v5083, %v5082
    %v5095 = vpack.c.b16 %v5085, %v5084
    %v5096 = vpack.c.b16 %v5087, %v5086
    %v5097 = vpack.c.b16 %v5089, %v5088
    %5106 = vmatprep.subr.bf16.mxu0 0
    %5107 = vmatpush1.bf16.msra.mxu0 %v5097
    %5108 = vmatprep.subr.bf16.mxu0 0
    %5109 = vmatpush1.bf16.msra.mxu0 %v5096
    %5110 = vmatprep.subr.bf16.mxu0 0
    %5111 = vmatpush1.bf16.msra.mxu0 %v5095
    %5112 = vmatprep.subr.bf16.mxu0 0
    %5113 = vmatpush1.bf16.msra.mxu0 %v5094
    %5114 = vmatprep.subr.bf16.mxu0 0
    %5115 = vmatpush1.bf16.msra.mxu0 %v5093
    %5116 = vmatprep.subr.bf16.mxu0 0
    %5117 = vmatpush1.bf16.msra.mxu0 %v5092
    %5118 = vmatprep.subr.bf16.mxu0 0
    %5119 = vmatpush1.bf16.msra.mxu0 %v5091
    %5120 = vmatprep.subr.bf16.mxu0 0
    %5121 = vmatpush1.bf16.msra.mxu0 %v5090
    %5122 = vmatprep.subr.bf16.mxu0 0
    %5123 = vmatpush2.bf16.msra.mxu0 0
    %5124 = vmatprep.subr.bf16.mxu0 0
    %5125 = vmatpush2.bf16.msra.mxu0 0
    %5126 = vmatprep.subr.bf16.mxu0 0
    %5127 = vmatpush2.bf16.msra.mxu0 0
    %5128 = vmatprep.subr.bf16.mxu0 0
    %5129 = vmatpush2.bf16.msra.mxu0 0
    %5130 = vmatprep.subr.bf16.mxu0 0
    %5131 = vmatpush2.bf16.msra.mxu0 0
    %5132 = vmatprep.subr.bf16.mxu0 0
    %5133 = vmatpush2.bf16.msra.mxu0 0
    %5134 = vmatprep.subr.bf16.mxu0 0
    %5135 = vmatpush2.bf16.msra.mxu0 0
    %5136 = vmatprep.subr.bf16.mxu0 0
    %5137 = vmatpush2.bf16.msra.mxu0 0
    %5138 = vmatprep.mubr.bf16.mxu0 0
    %5139 = vmatmul.mubr.bf16.gmra.mxu0 %v5041
    %v5140 = vpop.f32.mrf.mxu0
    %v5141 = vadd.f32 0.0, %v5140
    %v5142 = vpop.f32.mrf.mxu0
    %v5143 = vpop.f32.mrf.mxu0
    %v5144 = vpop.f32.mrf.mxu0
    %5145 = vdwg.mxu0
    %v5146 = vld [vmem:[%s12] sm:$0x3]
    %v5147 = vld [vmem:[%s14] sm:$0x1]
    %v5149 = vlaneseq
    %v5150 = vshrl.u32 %v5149, 7
    %v5151 = vsub.s32 0, %v5150
    %v5152 = vrot.slane %v5147, %v5151
    %vm5154 = vcmask 15360
    %v5156 = vsel %vm5154, %v5146, 0
    %vm5158 = vcmask 1041408
    %v5160 = vsel %vm5158, %v5141, 0
    %5162 = vmatprep.subr.mxu0 0.0
    %5163 = vmatpush1.msra.mxu0 0.0
    %5164 = vmatprep.subr.mxu0 0.0
    %5165 = vmatpush1.msra.mxu0 0.0
    %5166 = vmatprep.subr.mxu0 0.0
    %5167 = vmatpush1.msra.mxu0 0.0
    %5168 = vmatprep.subr.mxu0 0.0
    %5169 = vmatpush1.msra.mxu0 0.0
    %5170 = vmatprep.subr.mxu0 0.0
    %5171 = vmatpush1.msra.mxu0 0.0
    %5172 = vmatprep.subr.mxu0 0.0
    %5173 = vmatpush1.msra.mxu0 0.0
    %5174 = vmatprep.subr.mxu0 0.0
    %5175 = vmatpush1.msra.mxu0 0.0
    %5176 = vmatprep.subr.mxu0 0.0
    %5177 = vmatpush1.msra.mxu0 0.0
    %5178 = vmatprep.subr.mxu0 0.0
    %5179 = vmatpush1.msra.mxu0 0.0
    %5180 = vmatprep.subr.mxu0 0.0
    %5181 = vmatpush1.msra.mxu0 0.0
    %5182 = vmatprep.subr.mxu0 0.0
    %5183 = vmatpush1.msra.mxu0 0.0
    %5184 = vmatprep.subr.mxu0 0.0
    %5185 = vmatpush1.msra.mxu0 0.0
    %5186 = vmatprep.subr.mxu0 0.0
    %5187 = vmatpush1.msra.mxu0 0.0
    %5188 = vmatprep.subr.mxu0 0.0
    %5189 = vmatpush1.msra.mxu0 0.0
    %5190 = vmatprep.subr.mxu0 0.0
    %5191 = vmatpush1.msra.mxu0 0.0
    %5192 = vmatprep.subr.mxu0 0.0
    %5193 = vmatpush1.msra.mxu0 %v5160
    %5194 = vmatprep.subr.mxu0 0.0
    %5195 = vmatpush2.msra.mxu0 0.0
    %5196 = vmatprep.subr.mxu0 0.0
    %5197 = vmatpush2.msra.mxu0 0.0
    %5198 = vmatprep.subr.mxu0 0.0
    %5199 = vmatpush2.msra.mxu0 0.0
    %5200 = vmatprep.subr.mxu0 0.0
    %5201 = vmatpush2.msra.mxu0 0.0
    %5202 = vmatprep.subr.mxu0 0.0
    %5203 = vmatpush2.msra.mxu0 0.0
    %5204 = vmatprep.subr.mxu0 0.0
    %5205 = vmatpush2.msra.mxu0 0.0
    %5206 = vmatprep.subr.mxu0 0.0
    %5207 = vmatpush2.msra.mxu0 0.0
    %5208 = vmatprep.subr.mxu0 0.0
    %5209 = vmatpush2.msra.mxu0 0.0
    %5210 = vmatprep.subr.mxu0 0.0
    %5211 = vmatpush2.msra.mxu0 0.0
    %5212 = vmatprep.subr.mxu0 0.0
    %5213 = vmatpush2.msra.mxu0 0.0
    %5214 = vmatprep.subr.mxu0 0.0
    %5215 = vmatpush2.msra.mxu0 0.0
    %5216 = vmatprep.subr.mxu0 0.0
    %5217 = vmatpush2.msra.mxu0 0.0
    %5218 = vmatprep.subr.mxu0 0.0
    %5219 = vmatpush2.msra.mxu0 0.0
    %5220 = vmatprep.subr.mxu0 0.0
    %5221 = vmatpush2.msra.mxu0 0.0
    %5222 = vmatprep.subr.mxu0 0.0
    %5223 = vmatpush2.msra.mxu0 0.0
    %5224 = vmatprep.subr.mxu0 0.0
    %5225 = vmatpush2.msra.mxu0 0.0
    %5226 = vmatprep.mubr.f32.mxu0 0.0
    %5227 = vmatmul.mubr.f32.gmra.mxu0 %v5156
    %v5228 = vpop.f32.mrf.mxu0
    %v5229 = vadd.f32 %v5152, %v5228
    %v5230 = vpop.f32.mrf.mxu0
    %5231 = vdwg.mxu0
    %5232 = vst [vmem:[%s15] sm:$0x3] %v5229
    // Predicated region
    $region74: #{conditional_discriminator_forward.1} parent=1 // pred_check
      _
    $region75: #{conditional_discriminator_forward.1} parent=1 // pred_check_branch
      %5234 = sbr.rel (0) target = $region77
    $region76: #{conditional_discriminator_forward.1} parent=1 // pred_region
      _
    $region77: #{conditional_discriminator_forward.1} parent=1 // pred_fallthru
      _
    // Predicated region
    $region78: #{conditional_discriminator_forward.1} parent=1 // pred_check
      _
    $region79: #{conditional_discriminator_forward.1} parent=1 // pred_check_branch
      %5236 = sbr.rel (0) target = $region81
    $region80: #{conditional_discriminator_forward.1} parent=1 // pred_region
      _
    $region81: #{conditional_discriminator_forward.1} parent=1 // pred_fallthru
      _
    %5237 = vsyncpa [#allocation3], 1
    %5238 = vsyncpa [#allocation5], 1

</llo_original>
